<compile_context>
chip_gen: v7x
topology: tpu7x:2x2x1
jax: 0.10.0
libtpu: 0.0.40
codegen_flags: <defaults>
</compile_context>

<pallas_src>
import numpy as np
import jax
import jax.numpy as jnp
from jax import lax
from jax.experimental import pallas as pl
from jax.experimental.pallas import tpu as pltpu


# ----------------------------------------------------------------------------
# Weight layout helpers (trace-time, tiny)
# ----------------------------------------------------------------------------
def _tap_weight_matrix(w):
    """(Cout, C, 3, 3) conv weight -> (9*Cout, C) tap-major bf16.

    Row k*Cout + co holds w[co, :, kh, kw] with k = kh*3 + kw."""
    Co, Ci = w.shape[0], w.shape[1]
    return jnp.transpose(w, (2, 3, 0, 1)).reshape(9 * Co, Ci).astype(jnp.bfloat16)


# ----------------------------------------------------------------------------
# Fused DeconvBlock forward
# ----------------------------------------------------------------------------
def deconv_block_forward(params, x_nchw, residual_nchw, eps=1e-5):
    """Pallas implementation of DeconvBlock.forward (NCHW in / NCHW out)."""
    N, Cin, H, W = x_nchw.shape
    Cout = params["up_w"].shape[1]
    Cres = Cin - Cout
    Hout, Wout = 2 * H, 2 * W
    Hph, Wph = H + 2, W + 2                       # half-res planes + 1-px zero pad ring
    Np = N * Hph * Wph                            # flat size of one parity plane
    NW = ((Np + 127) // 128) * 128                # epilogue / output window (lane aligned)
    W0 = 128                                      # left margin, multiple of 128
    NT = W0 + NW + 128                            # total flat width of plane tensors
    assert W0 >= Wph + 1 and NT - W0 - Np >= Wph + 1, "tap shifts would escape margins"
    count = N * Hout * Wout                       # BatchNorm reduction count per channel
    inv_count = 1.0 / float(count)

    # ---- host-side layout prep (input/output plumbing only; hot path is in-kernel) ----
    def planes_to_flat(a_cnhw):                   # (C, N, H, W) -> (C, NT) bf16, zero padded
        C = a_cnhw.shape[0]
        ap = jnp.pad(a_cnhw, ((0, 0), (0, 0), (1, 1), (1, 1))).reshape(C, Np)
        return jnp.pad(ap, ((0, 0), (W0, NT - W0 - Np))).astype(jnp.bfloat16)

    x_pf = planes_to_flat(jnp.transpose(x_nchw, (1, 0, 2, 3)))              # (Cin, NT)
    r = residual_nchw.reshape(N, Cres, H, 2, W, 2)
    r = jnp.transpose(r, (3, 5, 1, 0, 2, 4)).reshape(4 * Cres, N, H, W)     # parity-major
    res_pf = planes_to_flat(r)                                              # (4*Cres, NT)

    # ConvTranspose2d(k=2, s=2) weight (Cin, Cout, 2, 2) -> phase-major (4*Cout, Cin)
    w_up_r = jnp.transpose(params["up_w"], (2, 3, 1, 0)).reshape(4 * Cout, Cin)
    w_up_r = w_up_r.astype(jnp.bfloat16)
    up_b = jnp.tile(params["up_b"], 4).reshape(4 * Cout, 1).astype(jnp.float32)
    w1u = _tap_weight_matrix(params["c1_w"][:, :Cout])                      # (9*Cout, Cout)
    w1r = _tap_weight_matrix(params["c1_w"][:, Cout:])                      # (9*Cout, Cres)
    w2 = _tap_weight_matrix(params["c2_w"])                                 # (9*Cout, Cout)
    g1 = params["bn1_g"].reshape(Cout, 1).astype(jnp.float32)
    b1 = params["bn1_b"].reshape(Cout, 1).astype(jnp.float32)
    g2 = params["bn2_g"].reshape(Cout, 1).astype(jnp.float32)
    b2 = params["bn2_b"].reshape(Cout, 1).astype(jnp.float32)
    # NOTE: conv biases c1_b / c2_b are exactly cancelled by the training-mode
    # BatchNorm mean subtraction, so they are not passed to the kernel (rounding-level
    # difference only vs. the reference which keeps them).

    # static mask of valid (non-pad) half-res flat positions, built at trace time
    mask_np = np.zeros((1, NT), np.float32)
    pos = np.arange(Np)
    rr = pos % (Hph * Wph)
    ii, jj = rr // Wph, rr % Wph
    mask_np[0, W0:W0 + Np] = ((ii >= 1) & (ii <= H) &
                              (jj >= 1) & (jj <= W)).astype(np.float32)
    mask = jnp.asarray(mask_np)

    taps = [(dy, dx) for dy in (-1, 0, 1) for dx in (-1, 0, 1)]             # k = (dy+1)*3+(dx+1)

    def kernel(x_ref, res_ref, wup_ref, bup_ref, w1u_ref, w1r_ref, w2_ref,
               g1_ref, b1_ref, g2_ref, b2_ref, m_ref, o_ref,
               up_scr, h1_scr, p_scr):
        mfull = m_ref[...]                        # (1, NT)
        mwin = m_ref[:, W0:W0 + NW]               # (1, NW), lane-aligned slice

        # -- Stage 1: ConvTranspose2d(2,2,s=2) == one phase-major matmul on the half-res grid
        up = jnp.dot(wup_ref[...], x_ref[...], preferred_element_type=jnp.float32)
        up = up + bup_ref[...] * mfull            # masked bias: pad ring / margins stay zero
        up_scr[...] = up.astype(up_scr.dtype)

        def tap_accumulate(get_p):
            """get_p(ip) -> (9*Cout, NT) tap-major matmul for input parity plane ip."""
            accs = [jnp.zeros((Cout, NW), jnp.float32) for _ in range(4)]
            for ip in range(4):
                pp, qq = ip // 2, ip % 2
                p_scr[...] = get_p(ip)
                for k, (dy, dx) in enumerate(taps):
                    py, px = (pp - dy) % 2, (qq - dx) % 2          # output parity fed
                    d = ((py + dy) // 2) * Wph + ((px + dx) // 2)  # static lane shift
                    accs[py * 2 + px] = accs[py * 2 + px] + \
                        p_scr[k * Cout:(k + 1) * Cout, W0 + d:W0 + d + NW]
            return accs

        def bn_relu(accs, g_ref, beta_ref):
            mean = jnp.zeros((Cout, 1), jnp.float32)
            for a in accs:
                mean = mean + jnp.sum(a * mwin, axis=1, keepdims=True)
            mean = mean * inv_count
            ycs = [(a - mean) * mwin for a in accs]                # centered, 0 off-mask
            var = jnp.zeros((Cout, 1), jnp.float32)
            for yc in ycs:
                var = var + jnp.sum(yc * yc, axis=1, keepdims=True)
            var = var * inv_count
            scale = g_ref[...] * lax.rsqrt(var + eps)              # EUP
            shift = beta_ref[...] * mwin                           # hoisted once per stage
            return [jnp.maximum(yc * scale + shift, 0.0) for yc in ycs]

        # -- Stage 2: conv1 + BN1 + ReLU; split-K over the (up, residual) channel concat
        w1u_v, w1r_v = w1u_ref[...], w1r_ref[...]

        def p_conv1(ip):
            return (jnp.dot(w1u_v, up_scr[ip * Cout:(ip + 1) * Cout, :],
                            preferred_element_type=jnp.float32)
                    + jnp.dot(w1r_v, res_ref[ip * Cres:(ip + 1) * Cres, :],
                              preferred_element_type=jnp.float32))

        h1 = bn_relu(tap_accumulate(p_conv1), g1_ref, b1_ref)

        h1_scr[...] = jnp.zeros_like(h1_scr)      # margins must read back as zero
        for op in range(4):
            h1_scr[op * Cout:(op + 1) * Cout, W0:W0 + NW] = h1[op].astype(h1_scr.dtype)

        # -- Stage 3: conv2 + BN2 + ReLU
        w2_v = w2_ref[...]

        def p_conv2(ip):
            return jnp.dot(w2_v, h1_scr[ip * Cout:(ip + 1) * Cout, :],
                           preferred_element_type=jnp.float32)

        h2 = bn_relu(tap_accumulate(p_conv2), g2_ref, b2_ref)
        for op in range(4):                        # full 256-lane (unmasked-lane) stores
            o_ref[op * Cout:(op + 1) * Cout, :] = h2[op].astype(o_ref.dtype)

    args = [x_pf, res_pf, w_up_r, up_b, w1u, w1r, w2, g1, b1, g2, b2, mask]
    out = pl.pallas_call(
        kernel,
        out_shape=jax.ShapeDtypeStruct((4 * Cout, NW), jnp.float32),
        grid=(1,),
        in_specs=[pl.BlockSpec(a.shape, lambda i: (0, 0)) for a in args],
        out_specs=pl.BlockSpec((4 * Cout, NW), lambda i: (0, 0)),
        scratch_shapes=[pltpu.VMEM((4 * Cout, NT), jnp.bfloat16),   # deconv phase planes
                        pltpu.VMEM((4 * Cout, NT), jnp.bfloat16),   # conv1 output planes
                        pltpu.VMEM((9 * Cout, NT), jnp.float32)],   # per-plane tap matmul
        compiler_params=pltpu.CompilerParams(
            dimension_semantics=("arbitrary",),
            vmem_limit_bytes=32 * 1024 * 1024),
    )(*args)

    # Reassemble the 4 output parity planes into NCHW (output-side layout plumbing only).
    out = out[:, :Np].reshape(2, 2, Cout, N, Hph, Wph)[:, :, :, :, 1:1 + H, 1:1 + W]
    return jnp.transpose(out, (3, 2, 4, 0, 5, 1)).reshape(N, Cout, Hout, Wout)
    # TODO(synk): BatchNorm running_mean/running_var updates (training bookkeeping)
    # are not produced; they do not affect the training-mode forward output.


# ----------------------------------------------------------------------------
# Pure-XLA reference mirroring the same bf16-matmul / f32-accumulate precision
# ----------------------------------------------------------------------------
def _reference_forward(params, x, residual, eps=1e-5):
    bf = jnp.bfloat16
    up = jnp.einsum("ncij,cdkl->ndikjl", x.astype(bf), params["up_w"].astype(bf),
                    preferred_element_type=jnp.float32)
    N, Cout, H, _, W, _ = up.shape
    up = up.reshape(N, Cout, 2 * H, 2 * W) + params["up_b"][None, :, None, None]
    h = jnp.concatenate([up, residual], axis=1)
    for wk, bk, gk, bbk in (("c1_w", "c1_b", "bn1_g", "bn1_b"),
                            ("c2_w", "c2_b", "bn2_g", "bn2_b")):
        h = lax.conv_general_dilated(
            h.astype(bf), params[wk].astype(bf), window_strides=(1, 1),
            padding=((1, 1), (1, 1)),
            dimension_numbers=("NCHW", "OIHW", "NCHW"),
            preferred_element_type=jnp.float32)
        h = h + params[bk][None, :, None, None]
        mean = h.mean(axis=(0, 2, 3), keepdims=True)
        var = ((h - mean) ** 2).mean(axis=(0, 2, 3), keepdims=True)
        h = (h - mean) / jnp.sqrt(var + eps)
        h = h * params[gk][None, :, None, None] + params[bbk][None, :, None, None]
        h = jnp.maximum(h, 0.0)
    return h


# ----------------------------------------------------------------------------
if __name__ == "__main__":
    key = jax.random.PRNGKey(0)
    N, Cin, Cout, H, W = 2, 8, 4, 8, 8          # in_channels=8, out_channels=4
    ks = jax.random.split(key, 12)

    params = {
        # ConvTranspose2d(Cin, Cout, kernel_size=2, stride=2): weight (Cin, Cout, 2, 2)
        "up_w": 0.1 * jax.random.normal(ks[0], (Cin, Cout, 2, 2), jnp.float32),
        "up_b": 0.1 * jax.random.normal(ks[1], (Cout,), jnp.float32),
        # conv1: Conv2d(Cin, Cout, 3, padding=1, bias=True) + BatchNorm2d(Cout)
        "c1_w": 0.1 * jax.random.normal(ks[2], (Cout, Cin, 3, 3), jnp.float32),
        "c1_b": 0.1 * jax.random.normal(ks[3], (Cout,), jnp.float32),
        "bn1_g": 1.0 + 0.1 * jax.random.normal(ks[4], (Cout,), jnp.float32),
        "bn1_b": 0.1 * jax.random.normal(ks[5], (Cout,), jnp.float32),
        # conv2: Conv2d(Cout, Cout, 3, padding=1, bias=True) + BatchNorm2d(Cout)
        "c2_w": 0.1 * jax.random.normal(ks[6], (Cout, Cout, 3, 3), jnp.float32),
        "c2_b": 0.1 * jax.random.normal(ks[7], (Cout,), jnp.float32),
        "bn2_g": 1.0 + 0.1 * jax.random.normal(ks[8], (Cout,), jnp.float32),
        "bn2_b": 0.1 * jax.random.normal(ks[9], (Cout,), jnp.float32),
    }

    x = jax.random.normal(ks[10], (N, Cin, H, W), jnp.float32)
    residual = jax.random.normal(ks[11], (N, Cin - Cout, 2 * H, 2 * W), jnp.float32)

    fwd = jax.jit(deconv_block_forward)
    out = jax.block_until_ready(fwd(params, x, residual))
    assert out.shape == (N, Cout, 2 * H, 2 * W), out.shape

    ref = _reference_forward(params, x, residual)
    err = float(jnp.max(jnp.abs(out - ref)))
    assert jnp.allclose(out, ref, atol=1e-2, rtol=1e-2), err

    print("KERNEL_OK")
</pallas_src>

<mosaic_0001>
module attributes {stable_mosaic.version = 11 : i64} {
  func.func @kernel(%arg0: i32, %arg1: memref<8x512xbf16, #tpu.memory_space<vmem>>, %arg2: memref<16x512xbf16, #tpu.memory_space<vmem>>, %arg3: memref<16x8xbf16, #tpu.memory_space<vmem>>, %arg4: memref<16x1xf32, #tpu.memory_space<vmem>>, %arg5: memref<36x4xbf16, #tpu.memory_space<vmem>>, %arg6: memref<36x4xbf16, #tpu.memory_space<vmem>>, %arg7: memref<36x4xbf16, #tpu.memory_space<vmem>>, %arg8: memref<4x1xf32, #tpu.memory_space<vmem>>, %arg9: memref<4x1xf32, #tpu.memory_space<vmem>>, %arg10: memref<4x1xf32, #tpu.memory_space<vmem>>, %arg11: memref<4x1xf32, #tpu.memory_space<vmem>>, %arg12: memref<1x512xf32, #tpu.memory_space<vmem>>, %arg13: memref<16x256xf32, #tpu.memory_space<vmem>>, %arg14: memref<16x512xbf16, #tpu.memory_space<vmem>>, %arg15: memref<16x512xbf16, #tpu.memory_space<vmem>>, %arg16: memref<36x512xf32, #tpu.memory_space<vmem>>) attributes {dimension_semantics = [#tpu.dimension_semantics<arbitrary>], iteration_bounds = array<i64: 1>, scalar_prefetch = 0 : i64, scratch_operands = 3 : i64, tpu.core_type = #tpu.core_type<tc>, window_params = [{pipeline_mode = #tpu.pipeline_mode<synchronous>, transform_indices = @transform_0, window_bounds = array<i64: 8, 512>}, {pipeline_mode = #tpu.pipeline_mode<synchronous>, transform_indices = @transform_1, window_bounds = array<i64: 16, 512>}, {pipeline_mode = #tpu.pipeline_mode<synchronous>, transform_indices = @transform_2, window_bounds = array<i64: 16, 8>}, {pipeline_mode = #tpu.pipeline_mode<synchronous>, transform_indices = @transform_3, window_bounds = array<i64: 16, 1>}, {pipeline_mode = #tpu.pipeline_mode<synchronous>, transform_indices = @transform_4, window_bounds = array<i64: 36, 4>}, {pipeline_mode = #tpu.pipeline_mode<synchronous>, transform_indices = @transform_5, window_bounds = array<i64: 36, 4>}, {pipeline_mode = #tpu.pipeline_mode<synchronous>, transform_indices = @transform_6, window_bounds = array<i64: 36, 4>}, {pipeline_mode = #tpu.pipeline_mode<synchronous>, transform_indices = @transform_7, window_bounds = array<i64: 4, 1>}, {pipeline_mode = #tpu.pipeline_mode<synchronous>, transform_indices = @transform_8, window_bounds = array<i64: 4, 1>}, {pipeline_mode = #tpu.pipeline_mode<synchronous>, transform_indices = @transform_9, window_bounds = array<i64: 4, 1>}, {pipeline_mode = #tpu.pipeline_mode<synchronous>, transform_indices = @transform_10, window_bounds = array<i64: 4, 1>}, {pipeline_mode = #tpu.pipeline_mode<synchronous>, transform_indices = @transform_11, window_bounds = array<i64: 1, 512>}, {pipeline_mode = #tpu.pipeline_mode<synchronous>, transform_indices = @transform_12, window_bounds = array<i64: 16, 256>}]} {
    %c0 = arith.constant 0 : index
    %c0_0 = arith.constant 0 : index
    %0 = vector.load %arg12[%c0, %c0_0] : memref<1x512xf32, #tpu.memory_space<vmem>>, vector<1x512xf32>
    %c0_1 = arith.constant 0 : index
    %c128 = arith.constant 128 : index
    %1 = vector.load %arg12[%c0_1, %c128] : memref<1x512xf32, #tpu.memory_space<vmem>>, vector<1x256xf32>
    %c0_2 = arith.constant 0 : index
    %c0_3 = arith.constant 0 : index
    %2 = vector.load %arg3[%c0_2, %c0_3] : memref<16x8xbf16, #tpu.memory_space<vmem>>, vector<16x8xbf16>
    %c0_4 = arith.constant 0 : index
    %c0_5 = arith.constant 0 : index
    %3 = vector.load %arg1[%c0_4, %c0_5] : memref<8x512xbf16, #tpu.memory_space<vmem>>, vector<8x512xbf16>
    %cst = arith.constant dense<0.000000e+00> : vector<16x512xf32>
    %4 = tpu.matmul %2, %3, %cst {dimension_numbers = #tpu.dot_dimension_numbers<[1], [0], [0], [1], [0, 0, 1, 1], [], []>} : vector<16x8xbf16>, vector<8x512xbf16>, vector<16x512xf32> -> vector<16x512xf32>
    %c0_6 = arith.constant 0 : index
    %c0_7 = arith.constant 0 : index
    %5 = vector.load %arg4[%c0_6, %c0_7] : memref<16x1xf32, #tpu.memory_space<vmem>>, vector<16x1xf32>
    %6 = vector.broadcast %5 : vector<16x1xf32> to vector<16x512xf32>
    %7 = vector.broadcast %0 : vector<1x512xf32> to vector<16x512xf32>
    %8 = arith.mulf %6, %7 : vector<16x512xf32>
    %9 = arith.addf %4, %8 : vector<16x512xf32>
    %10 = arith.truncf %9 : vector<16x512xf32> to vector<16x512xbf16>
    %c0_8 = arith.constant 0 : index
    %c0_9 = arith.constant 0 : index
    %11 = vector.load %arg14[%c0_8, %c0_9] : memref<16x512xbf16, #tpu.memory_space<vmem>>, vector<16x512xbf16>
    tpu.vector_store %arg14[%c0_8, %c0_9], %10 {strides = array<i32>} : memref<16x512xbf16, #tpu.memory_space<vmem>>, vector<16x512xbf16>,
    %c0_10 = arith.constant 0 : index
    %c0_11 = arith.constant 0 : index
    %12 = vector.load %arg5[%c0_10, %c0_11] : memref<36x4xbf16, #tpu.memory_space<vmem>>, vector<36x4xbf16>
    %c0_12 = arith.constant 0 : index
    %c0_13 = arith.constant 0 : index
    %13 = vector.load %arg6[%c0_12, %c0_13] : memref<36x4xbf16, #tpu.memory_space<vmem>>, vector<36x4xbf16>
    %cst_14 = arith.constant 0.000000e+00 : f32
    %14 = vector.broadcast %cst_14 : f32 to vector<4x256xf32>
    %cst_15 = arith.constant 0.000000e+00 : f32
    %15 = vector.broadcast %cst_15 : f32 to vector<4x256xf32>
    %cst_16 = arith.constant 0.000000e+00 : f32
    %16 = vector.broadcast %cst_16 : f32 to vector<4x256xf32>
    %cst_17 = arith.constant 0.000000e+00 : f32
    %17 = vector.broadcast %cst_17 : f32 to vector<4x256xf32>
    %c0_18 = arith.constant 0 : index
    %c0_19 = arith.constant 0 : index
    %18 = vector.load %arg14[%c0_18, %c0_19] : memref<16x512xbf16, #tpu.memory_space<vmem>>, vector<4x512xbf16>
    %cst_20 = arith.constant dense<0.000000e+00> : vector<36x512xf32>
    %19 = tpu.matmul %12, %18, %cst_20 {dimension_numbers = #tpu.dot_dimension_numbers<[1], [0], [0], [1], [0, 0, 1, 1], [], []>} : vector<36x4xbf16>, vector<4x512xbf16>, vector<36x512xf32> -> vector<36x512xf32>
    %c0_21 = arith.constant 0 : index
    %c0_22 = arith.constant 0 : index
    %20 = vector.load %arg2[%c0_21, %c0_22] : memref<16x512xbf16, #tpu.memory_space<vmem>>, vector<4x512xbf16>
    %cst_23 = arith.constant dense<0.000000e+00> : vector<36x512xf32>
    %21 = tpu.matmul %13, %20, %cst_23 {dimension_numbers = #tpu.dot_dimension_numbers<[1], [0], [0], [1], [0, 0, 1, 1], [], []>} : vector<36x4xbf16>, vector<4x512xbf16>, vector<36x512xf32> -> vector<36x512xf32>
    %22 = arith.addf %19, %21 : vector<36x512xf32>
    %c0_24 = arith.constant 0 : index
    %c0_25 = arith.constant 0 : index
    %23 = vector.load %arg16[%c0_24, %c0_25] : memref<36x512xf32, #tpu.memory_space<vmem>>, vector<36x512xf32>
    tpu.vector_store %arg16[%c0_24, %c0_25], %22 {strides = array<i32>} : memref<36x512xf32, #tpu.memory_space<vmem>>, vector<36x512xf32>,
    %c0_26 = arith.constant 0 : index
    %c128_27 = arith.constant 128 : index
    %24 = vector.load %arg16[%c0_26, %c128_27] : memref<36x512xf32, #tpu.memory_space<vmem>>, vector<4x256xf32>
    %25 = arith.addf %17, %24 : vector<4x256xf32>
    %c4 = arith.constant 4 : index
    %c128_28 = arith.constant 128 : index
    %26 = vector.load %arg16[%c4, %c128_28] : memref<36x512xf32, #tpu.memory_space<vmem>>, vector<4x256xf32>
    %27 = arith.addf %16, %26 : vector<4x256xf32>
    %c8 = arith.constant 8 : index
    %c129 = arith.constant 129 : index
    %28 = vector.load %arg16[%c8, %c129] : memref<36x512xf32, #tpu.memory_space<vmem>>, vector<4x256xf32>
    %29 = arith.addf %25, %28 : vector<4x256xf32>
    %c12 = arith.constant 12 : index
    %c128_29 = arith.constant 128 : index
    %30 = vector.load %arg16[%c12, %c128_29] : memref<36x512xf32, #tpu.memory_space<vmem>>, vector<4x256xf32>
    %31 = arith.addf %15, %30 : vector<4x256xf32>
    %c16 = arith.constant 16 : index
    %c128_30 = arith.constant 128 : index
    %32 = vector.load %arg16[%c16, %c128_30] : memref<36x512xf32, #tpu.memory_space<vmem>>, vector<4x256xf32>
    %33 = arith.addf %14, %32 : vector<4x256xf32>
    %c20 = arith.constant 20 : index
    %c129_31 = arith.constant 129 : index
    %34 = vector.load %arg16[%c20, %c129_31] : memref<36x512xf32, #tpu.memory_space<vmem>>, vector<4x256xf32>
    %35 = arith.addf %31, %34 : vector<4x256xf32>
    %c24 = arith.constant 24 : index
    %c138 = arith.constant 138 : index
    %36 = vector.load %arg16[%c24, %c138] : memref<36x512xf32, #tpu.memory_space<vmem>>, vector<4x256xf32>
    %37 = arith.addf %29, %36 : vector<4x256xf32>
    %c28 = arith.constant 28 : index
    %c138_32 = arith.constant 138 : index
    %38 = vector.load %arg16[%c28, %c138_32] : memref<36x512xf32, #tpu.memory_space<vmem>>, vector<4x256xf32>
    %39 = arith.addf %27, %38 : vector<4x256xf32>
    %c32 = arith.constant 32 : index
    %c139 = arith.constant 139 : index
    %40 = vector.load %arg16[%c32, %c139] : memref<36x512xf32, #tpu.memory_space<vmem>>, vector<4x256xf32>
    %41 = arith.addf %37, %40 : vector<4x256xf32>
    %c4_33 = arith.constant 4 : index
    %c0_34 = arith.constant 0 : index
    %42 = vector.load %arg14[%c4_33, %c0_34] : memref<16x512xbf16, #tpu.memory_space<vmem>>, vector<4x512xbf16>
    %cst_35 = arith.constant dense<0.000000e+00> : vector<36x512xf32>
    %43 = tpu.matmul %12, %42, %cst_35 {dimension_numbers = #tpu.dot_dimension_numbers<[1], [0], [0], [1], [0, 0, 1, 1], [], []>} : vector<36x4xbf16>, vector<4x512xbf16>, vector<36x512xf32> -> vector<36x512xf32>
    %c4_36 = arith.constant 4 : index
    %c0_37 = arith.constant 0 : index
    %44 = vector.load %arg2[%c4_36, %c0_37] : memref<16x512xbf16, #tpu.memory_space<vmem>>, vector<4x512xbf16>
    %cst_38 = arith.constant dense<0.000000e+00> : vector<36x512xf32>
    %45 = tpu.matmul %13, %44, %cst_38 {dimension_numbers = #tpu.dot_dimension_numbers<[1], [0], [0], [1], [0, 0, 1, 1], [], []>} : vector<36x4xbf16>, vector<4x512xbf16>, vector<36x512xf32> -> vector<36x512xf32>
    %46 = arith.addf %43, %45 : vector<36x512xf32>
    %c0_39 = arith.constant 0 : index
    %c0_40 = arith.constant 0 : index
    %47 = vector.load %arg16[%c0_39, %c0_40] : memref<36x512xf32, #tpu.memory_space<vmem>>, vector<36x512xf32>
    tpu.vector_store %arg16[%c0_39, %c0_40], %46 {strides = array<i32>} : memref<36x512xf32, #tpu.memory_space<vmem>>, vector<36x512xf32>,
    %c0_41 = arith.constant 0 : index
    %c127 = arith.constant 127 : index
    %48 = vector.load %arg16[%c0_41, %c127] : memref<36x512xf32, #tpu.memory_space<vmem>>, vector<4x256xf32>
    %49 = arith.addf %39, %48 : vector<4x256xf32>
    %c4_42 = arith.constant 4 : index
    %c128_43 = arith.constant 128 : index
    %50 = vector.load %arg16[%c4_42, %c128_43] : memref<36x512xf32, #tpu.memory_space<vmem>>, vector<4x256xf32>
    %51 = arith.addf %41, %50 : vector<4x256xf32>
    %c8_44 = arith.constant 8 : index
    %c128_45 = arith.constant 128 : index
    %52 = vector.load %arg16[%c8_44, %c128_45] : memref<36x512xf32, #tpu.memory_space<vmem>>, vector<4x256xf32>
    %53 = arith.addf %49, %52 : vector<4x256xf32>
    %c12_46 = arith.constant 12 : index
    %c127_47 = arith.constant 127 : index
    %54 = vector.load %arg16[%c12_46, %c127_47] : memref<36x512xf32, #tpu.memory_space<vmem>>, vector<4x256xf32>
    %55 = arith.addf %33, %54 : vector<4x256xf32>
    %c16_48 = arith.constant 16 : index
    %c128_49 = arith.constant 128 : index
    %56 = vector.load %arg16[%c16_48, %c128_49] : memref<36x512xf32, #tpu.memory_space<vmem>>, vector<4x256xf32>
    %57 = arith.addf %35, %56 : vector<4x256xf32>
    %c20_50 = arith.constant 20 : index
    %c128_51 = arith.constant 128 : index
    %58 = vector.load %arg16[%c20_50, %c128_51] : memref<36x512xf32, #tpu.memory_space<vmem>>, vector<4x256xf32>
    %59 = arith.addf %55, %58 : vector<4x256xf32>
    %c24_52 = arith.constant 24 : index
    %c137 = arith.constant 137 : index
    %60 = vector.load %arg16[%c24_52, %c137] : memref<36x512xf32, #tpu.memory_space<vmem>>, vector<4x256xf32>
    %61 = arith.addf %53, %60 : vector<4x256xf32>
    %c28_53 = arith.constant 28 : index
    %c138_54 = arith.constant 138 : index
    %62 = vector.load %arg16[%c28_53, %c138_54] : memref<36x512xf32, #tpu.memory_space<vmem>>, vector<4x256xf32>
    %63 = arith.addf %51, %62 : vector<4x256xf32>
    %c32_55 = arith.constant 32 : index
    %c138_56 = arith.constant 138 : index
    %64 = vector.load %arg16[%c32_55, %c138_56] : memref<36x512xf32, #tpu.memory_space<vmem>>, vector<4x256xf32>
    %65 = arith.addf %61, %64 : vector<4x256xf32>
    %c8_57 = arith.constant 8 : index
    %c0_58 = arith.constant 0 : index
    %66 = vector.load %arg14[%c8_57, %c0_58] : memref<16x512xbf16, #tpu.memory_space<vmem>>, vector<4x512xbf16>
    %cst_59 = arith.constant dense<0.000000e+00> : vector<36x512xf32>
    %67 = tpu.matmul %12, %66, %cst_59 {dimension_numbers = #tpu.dot_dimension_numbers<[1], [0], [0], [1], [0, 0, 1, 1], [], []>} : vector<36x4xbf16>, vector<4x512xbf16>, vector<36x512xf32> -> vector<36x512xf32>
    %c8_60 = arith.constant 8 : index
    %c0_61 = arith.constant 0 : index
    %68 = vector.load %arg2[%c8_60, %c0_61] : memref<16x512xbf16, #tpu.memory_space<vmem>>, vector<4x512xbf16>
    %cst_62 = arith.constant dense<0.000000e+00> : vector<36x512xf32>
    %69 = tpu.matmul %13, %68, %cst_62 {dimension_numbers = #tpu.dot_dimension_numbers<[1], [0], [0], [1], [0, 0, 1, 1], [], []>} : vector<36x4xbf16>, vector<4x512xbf16>, vector<36x512xf32> -> vector<36x512xf32>
    %70 = arith.addf %67, %69 : vector<36x512xf32>
    %c0_63 = arith.constant 0 : index
    %c0_64 = arith.constant 0 : index
    %71 = vector.load %arg16[%c0_63, %c0_64] : memref<36x512xf32, #tpu.memory_space<vmem>>, vector<36x512xf32>
    tpu.vector_store %arg16[%c0_63, %c0_64], %70 {strides = array<i32>} : memref<36x512xf32, #tpu.memory_space<vmem>>, vector<36x512xf32>,
    %c0_65 = arith.constant 0 : index
    %c118 = arith.constant 118 : index
    %72 = vector.load %arg16[%c0_65, %c118] : memref<36x512xf32, #tpu.memory_space<vmem>>, vector<4x256xf32>
    %73 = arith.addf %57, %72 : vector<4x256xf32>
    %c4_66 = arith.constant 4 : index
    %c118_67 = arith.constant 118 : index
    %74 = vector.load %arg16[%c4_66, %c118_67] : memref<36x512xf32, #tpu.memory_space<vmem>>, vector<4x256xf32>
    %75 = arith.addf %59, %74 : vector<4x256xf32>
    %c8_68 = arith.constant 8 : index
    %c119 = arith.constant 119 : index
    %76 = vector.load %arg16[%c8_68, %c119] : memref<36x512xf32, #tpu.memory_space<vmem>>, vector<4x256xf32>
    %77 = arith.addf %73, %76 : vector<4x256xf32>
    %c12_69 = arith.constant 12 : index
    %c128_70 = arith.constant 128 : index
    %78 = vector.load %arg16[%c12_69, %c128_70] : memref<36x512xf32, #tpu.memory_space<vmem>>, vector<4x256xf32>
    %79 = arith.addf %63, %78 : vector<4x256xf32>
    %c16_71 = arith.constant 16 : index
    %c128_72 = arith.constant 128 : index
    %80 = vector.load %arg16[%c16_71, %c128_72] : memref<36x512xf32, #tpu.memory_space<vmem>>, vector<4x256xf32>
    %81 = arith.addf %65, %80 : vector<4x256xf32>
    %c20_73 = arith.constant 20 : index
    %c129_74 = arith.constant 129 : index
    %82 = vector.load %arg16[%c20_73, %c129_74] : memref<36x512xf32, #tpu.memory_space<vmem>>, vector<4x256xf32>
    %83 = arith.addf %79, %82 : vector<4x256xf32>
    %c24_75 = arith.constant 24 : index
    %c128_76 = arith.constant 128 : index
    %84 = vector.load %arg16[%c24_75, %c128_76] : memref<36x512xf32, #tpu.memory_space<vmem>>, vector<4x256xf32>
    %85 = arith.addf %77, %84 : vector<4x256xf32>
    %c28_77 = arith.constant 28 : index
    %c128_78 = arith.constant 128 : index
    %86 = vector.load %arg16[%c28_77, %c128_78] : memref<36x512xf32, #tpu.memory_space<vmem>>, vector<4x256xf32>
    %87 = arith.addf %75, %86 : vector<4x256xf32>
    %c32_79 = arith.constant 32 : index
    %c129_80 = arith.constant 129 : index
    %88 = vector.load %arg16[%c32_79, %c129_80] : memref<36x512xf32, #tpu.memory_space<vmem>>, vector<4x256xf32>
    %89 = arith.addf %85, %88 : vector<4x256xf32>
    %c12_81 = arith.constant 12 : index
    %c0_82 = arith.constant 0 : index
    %90 = vector.load %arg14[%c12_81, %c0_82] : memref<16x512xbf16, #tpu.memory_space<vmem>>, vector<4x512xbf16>
    %cst_83 = arith.constant dense<0.000000e+00> : vector<36x512xf32>
    %91 = tpu.matmul %12, %90, %cst_83 {dimension_numbers = #tpu.dot_dimension_numbers<[1], [0], [0], [1], [0, 0, 1, 1], [], []>} : vector<36x4xbf16>, vector<4x512xbf16>, vector<36x512xf32> -> vector<36x512xf32>
    %c12_84 = arith.constant 12 : index
    %c0_85 = arith.constant 0 : index
    %92 = vector.load %arg2[%c12_84, %c0_85] : memref<16x512xbf16, #tpu.memory_space<vmem>>, vector<4x512xbf16>
    %cst_86 = arith.constant dense<0.000000e+00> : vector<36x512xf32>
    %93 = tpu.matmul %13, %92, %cst_86 {dimension_numbers = #tpu.dot_dimension_numbers<[1], [0], [0], [1], [0, 0, 1, 1], [], []>} : vector<36x4xbf16>, vector<4x512xbf16>, vector<36x512xf32> -> vector<36x512xf32>
    %94 = arith.addf %91, %93 : vector<36x512xf32>
    %c0_87 = arith.constant 0 : index
    %c0_88 = arith.constant 0 : index
    %95 = vector.load %arg16[%c0_87, %c0_88] : memref<36x512xf32, #tpu.memory_space<vmem>>, vector<36x512xf32>
    tpu.vector_store %arg16[%c0_87, %c0_88], %94 {strides = array<i32>} : memref<36x512xf32, #tpu.memory_space<vmem>>, vector<36x512xf32>,
    %c0_89 = arith.constant 0 : index
    %c117 = arith.constant 117 : index
    %96 = vector.load %arg16[%c0_89, %c117] : memref<36x512xf32, #tpu.memory_space<vmem>>, vector<4x256xf32>
    %97 = arith.addf %87, %96 : vector<4x256xf32>
    %c4_90 = arith.constant 4 : index
    %c118_91 = arith.constant 118 : index
    %98 = vector.load %arg16[%c4_90, %c118_91] : memref<36x512xf32, #tpu.memory_space<vmem>>, vector<4x256xf32>
    %99 = arith.addf %89, %98 : vector<4x256xf32>
    %c8_92 = arith.constant 8 : index
    %c118_93 = arith.constant 118 : index
    %100 = vector.load %arg16[%c8_92, %c118_93] : memref<36x512xf32, #tpu.memory_space<vmem>>, vector<4x256xf32>
    %101 = arith.addf %97, %100 : vector<4x256xf32>
    %c12_94 = arith.constant 12 : index
    %c127_95 = arith.constant 127 : index
    %102 = vector.load %arg16[%c12_94, %c127_95] : memref<36x512xf32, #tpu.memory_space<vmem>>, vector<4x256xf32>
    %103 = arith.addf %81, %102 : vector<4x256xf32>
    %c16_96 = arith.constant 16 : index
    %c128_97 = arith.constant 128 : index
    %104 = vector.load %arg16[%c16_96, %c128_97] : memref<36x512xf32, #tpu.memory_space<vmem>>, vector<4x256xf32>
    %105 = arith.addf %83, %104 : vector<4x256xf32>
    %c20_98 = arith.constant 20 : index
    %c128_99 = arith.constant 128 : index
    %106 = vector.load %arg16[%c20_98, %c128_99] : memref<36x512xf32, #tpu.memory_space<vmem>>, vector<4x256xf32>
    %107 = arith.addf %103, %106 : vector<4x256xf32>
    %c24_100 = arith.constant 24 : index
    %c127_101 = arith.constant 127 : index
    %108 = vector.load %arg16[%c24_100, %c127_101] : memref<36x512xf32, #tpu.memory_space<vmem>>, vector<4x256xf32>
    %109 = arith.addf %101, %108 : vector<4x256xf32>
    %c28_102 = arith.constant 28 : index
    %c128_103 = arith.constant 128 : index
    %110 = vector.load %arg16[%c28_102, %c128_103] : memref<36x512xf32, #tpu.memory_space<vmem>>, vector<4x256xf32>
    %111 = arith.addf %99, %110 : vector<4x256xf32>
    %c32_104 = arith.constant 32 : index
    %c128_105 = arith.constant 128 : index
    %112 = vector.load %arg16[%c32_104, %c128_105] : memref<36x512xf32, #tpu.memory_space<vmem>>, vector<4x256xf32>
    %113 = arith.addf %109, %112 : vector<4x256xf32>
    %cst_106 = arith.constant 0.000000e+00 : f32
    %114 = vector.broadcast %cst_106 : f32 to vector<4x1xf32>
    %115 = vector.broadcast %1 : vector<1x256xf32> to vector<4x256xf32>
    %116 = arith.mulf %113, %115 : vector<4x256xf32>
    %cst_107 = arith.constant dense<0.000000e+00> : vector<4xf32>
    %117 = vector.multi_reduction <add>, %116, %cst_107 [1] : vector<4x256xf32> to vector<4xf32>
    %118 = vector.shape_cast %117 : vector<4xf32> to vector<4x1xf32>
    %119 = arith.addf %114, %118 : vector<4x1xf32>
    %120 = vector.broadcast %1 : vector<1x256xf32> to vector<4x256xf32>
    %121 = arith.mulf %111, %120 : vector<4x256xf32>
    %cst_108 = arith.constant dense<0.000000e+00> : vector<4xf32>
    %122 = vector.multi_reduction <add>, %121, %cst_108 [1] : vector<4x256xf32> to vector<4xf32>
    %123 = vector.shape_cast %122 : vector<4xf32> to vector<4x1xf32>
    %124 = arith.addf %119, %123 : vector<4x1xf32>
    %125 = vector.broadcast %1 : vector<1x256xf32> to vector<4x256xf32>
    %126 = arith.mulf %107, %125 : vector<4x256xf32>
    %cst_109 = arith.constant dense<0.000000e+00> : vector<4xf32>
    %127 = vector.multi_reduction <add>, %126, %cst_109 [1] : vector<4x256xf32> to vector<4xf32>
    %128 = vector.shape_cast %127 : vector<4xf32> to vector<4x1xf32>
    %129 = arith.addf %124, %128 : vector<4x1xf32>
    %130 = vector.broadcast %1 : vector<1x256xf32> to vector<4x256xf32>
    %131 = arith.mulf %105, %130 : vector<4x256xf32>
    %cst_110 = arith.constant dense<0.000000e+00> : vector<4xf32>
    %132 = vector.multi_reduction <add>, %131, %cst_110 [1] : vector<4x256xf32> to vector<4xf32>
    %133 = vector.shape_cast %132 : vector<4xf32> to vector<4x1xf32>
    %134 = arith.addf %129, %133 : vector<4x1xf32>
    %cst_111 = arith.constant 0.001953125 : f32
    %135 = vector.broadcast %cst_111 : f32 to vector<4x1xf32>
    %136 = arith.mulf %134, %135 : vector<4x1xf32>
    %137 = vector.broadcast %136 : vector<4x1xf32> to vector<4x256xf32>
    %138 = arith.subf %113, %137 : vector<4x256xf32>
    %139 = vector.broadcast %1 : vector<1x256xf32> to vector<4x256xf32>
    %140 = arith.mulf %138, %139 : vector<4x256xf32>
    %141 = vector.broadcast %136 : vector<4x1xf32> to vector<4x256xf32>
    %142 = arith.subf %111, %141 : vector<4x256xf32>
    %143 = vector.broadcast %1 : vector<1x256xf32> to vector<4x256xf32>
    %144 = arith.mulf %142, %143 : vector<4x256xf32>
    %145 = vector.broadcast %136 : vector<4x1xf32> to vector<4x256xf32>
    %146 = arith.subf %107, %145 : vector<4x256xf32>
    %147 = vector.broadcast %1 : vector<1x256xf32> to vector<4x256xf32>
    %148 = arith.mulf %146, %147 : vector<4x256xf32>
    %149 = vector.broadcast %136 : vector<4x1xf32> to vector<4x256xf32>
    %150 = arith.subf %105, %149 : vector<4x256xf32>
    %151 = vector.broadcast %1 : vector<1x256xf32> to vector<4x256xf32>
    %152 = arith.mulf %150, %151 : vector<4x256xf32>
    %cst_112 = arith.constant 0.000000e+00 : f32
    %153 = vector.broadcast %cst_112 : f32 to vector<4x1xf32>
    %154 = arith.mulf %140, %140 : vector<4x256xf32>
    %cst_113 = arith.constant dense<0.000000e+00> : vector<4xf32>
    %155 = vector.multi_reduction <add>, %154, %cst_113 [1] : vector<4x256xf32> to vector<4xf32>
    %156 = vector.shape_cast %155 : vector<4xf32> to vector<4x1xf32>
    %157 = arith.addf %153, %156 : vector<4x1xf32>
    %158 = arith.mulf %144, %144 : vector<4x256xf32>
    %cst_114 = arith.constant dense<0.000000e+00> : vector<4xf32>
    %159 = vector.multi_reduction <add>, %158, %cst_114 [1] : vector<4x256xf32> to vector<4xf32>
    %160 = vector.shape_cast %159 : vector<4xf32> to vector<4x1xf32>
    %161 = arith.addf %157, %160 : vector<4x1xf32>
    %162 = arith.mulf %148, %148 : vector<4x256xf32>
    %cst_115 = arith.constant dense<0.000000e+00> : vector<4xf32>
    %163 = vector.multi_reduction <add>, %162, %cst_115 [1] : vector<4x256xf32> to vector<4xf32>
    %164 = vector.shape_cast %163 : vector<4xf32> to vector<4x1xf32>
    %165 = arith.addf %161, %164 : vector<4x1xf32>
    %166 = arith.mulf %152, %152 : vector<4x256xf32>
    %cst_116 = arith.constant dense<0.000000e+00> : vector<4xf32>
    %167 = vector.multi_reduction <add>, %166, %cst_116 [1] : vector<4x256xf32> to vector<4xf32>
    %168 = vector.shape_cast %167 : vector<4xf32> to vector<4x1xf32>
    %169 = arith.addf %165, %168 : vector<4x1xf32>
    %cst_117 = arith.constant 0.001953125 : f32
    %170 = vector.broadcast %cst_117 : f32 to vector<4x1xf32>
    %171 = arith.mulf %169, %170 : vector<4x1xf32>
    %c0_118 = arith.constant 0 : index
    %c0_119 = arith.constant 0 : index
    %172 = vector.load %arg8[%c0_118, %c0_119] : memref<4x1xf32, #tpu.memory_space<vmem>>, vector<4x1xf32>
    %cst_120 = arith.constant 9.99999974E-6 : f32
    %173 = vector.broadcast %cst_120 : f32 to vector<4x1xf32>
    %174 = arith.addf %171, %173 : vector<4x1xf32>
    %175 = math.rsqrt %174 : vector<4x1xf32>
    %176 = arith.mulf %172, %175 : vector<4x1xf32>
    %c0_121 = arith.constant 0 : index
    %c0_122 = arith.constant 0 : index
    %177 = vector.load %arg9[%c0_121, %c0_122] : memref<4x1xf32, #tpu.memory_space<vmem>>, vector<4x1xf32>
    %178 = vector.broadcast %177 : vector<4x1xf32> to vector<4x256xf32>
    %179 = vector.broadcast %1 : vector<1x256xf32> to vector<4x256xf32>
    %180 = arith.mulf %178, %179 : vector<4x256xf32>
    %181 = vector.broadcast %176 : vector<4x1xf32> to vector<4x256xf32>
    %182 = arith.mulf %140, %181 : vector<4x256xf32>
    %183 = arith.addf %182, %180 : vector<4x256xf32>
    %cst_123 = arith.constant 0.000000e+00 : f32
    %184 = vector.broadcast %cst_123 : f32 to vector<4x256xf32>
    %185 = arith.maximumf %183, %184 : vector<4x256xf32>
    %186 = vector.broadcast %176 : vector<4x1xf32> to vector<4x256xf32>
    %187 = arith.mulf %144, %186 : vector<4x256xf32>
    %188 = arith.addf %187, %180 : vector<4x256xf32>
    %cst_124 = arith.constant 0.000000e+00 : f32
    %189 = vector.broadcast %cst_124 : f32 to vector<4x256xf32>
    %190 = arith.maximumf %188, %189 : vector<4x256xf32>
    %191 = vector.broadcast %176 : vector<4x1xf32> to vector<4x256xf32>
    %192 = arith.mulf %148, %191 : vector<4x256xf32>
    %193 = arith.addf %192, %180 : vector<4x256xf32>
    %cst_125 = arith.constant 0.000000e+00 : f32
    %194 = vector.broadcast %cst_125 : f32 to vector<4x256xf32>
    %195 = arith.maximumf %193, %194 : vector<4x256xf32>
    %196 = vector.broadcast %176 : vector<4x1xf32> to vector<4x256xf32>
    %197 = arith.mulf %152, %196 : vector<4x256xf32>
    %198 = arith.addf %197, %180 : vector<4x256xf32>
    %cst_126 = arith.constant 0.000000e+00 : f32
    %199 = vector.broadcast %cst_126 : f32 to vector<4x256xf32>
    %200 = arith.maximumf %198, %199 : vector<4x256xf32>
    %cst_127 = arith.constant 0.000000e+00 : bf16
    %201 = vector.broadcast %cst_127 : bf16 to vector<16x512xbf16>
    %c0_128 = arith.constant 0 : index
    %c0_129 = arith.constant 0 : index
    %202 = vector.load %arg15[%c0_128, %c0_129] : memref<16x512xbf16, #tpu.memory_space<vmem>>, vector<16x512xbf16>
    tpu.vector_store %arg15[%c0_128, %c0_129], %201 {strides = array<i32>} : memref<16x512xbf16, #tpu.memory_space<vmem>>, vector<16x512xbf16>,
    %203 = arith.truncf %185 : vector<4x256xf32> to vector<4x256xbf16>
    %c0_130 = arith.constant 0 : index
    %c128_131 = arith.constant 128 : index
    %204 = vector.load %arg15[%c0_130, %c128_131] : memref<16x512xbf16, #tpu.memory_space<vmem>>, vector<4x256xbf16>
    tpu.vector_store %arg15[%c0_130, %c128_131], %203 {strides = array<i32>} : memref<16x512xbf16, #tpu.memory_space<vmem>>, vector<4x256xbf16>,
    %205 = arith.truncf %190 : vector<4x256xf32> to vector<4x256xbf16>
    %c4_132 = arith.constant 4 : index
    %c128_133 = arith.constant 128 : index
    %206 = vector.load %arg15[%c4_132, %c128_133] : memref<16x512xbf16, #tpu.memory_space<vmem>>, vector<4x256xbf16>
    tpu.vector_store %arg15[%c4_132, %c128_133], %205 {strides = array<i32>} : memref<16x512xbf16, #tpu.memory_space<vmem>>, vector<4x256xbf16>,
    %207 = arith.truncf %195 : vector<4x256xf32> to vector<4x256xbf16>
    %c8_134 = arith.constant 8 : index
    %c128_135 = arith.constant 128 : index
    %208 = vector.load %arg15[%c8_134, %c128_135] : memref<16x512xbf16, #tpu.memory_space<vmem>>, vector<4x256xbf16>
    tpu.vector_store %arg15[%c8_134, %c128_135], %207 {strides = array<i32>} : memref<16x512xbf16, #tpu.memory_space<vmem>>, vector<4x256xbf16>,
    %209 = arith.truncf %200 : vector<4x256xf32> to vector<4x256xbf16>
    %c12_136 = arith.constant 12 : index
    %c128_137 = arith.constant 128 : index
    %210 = vector.load %arg15[%c12_136, %c128_137] : memref<16x512xbf16, #tpu.memory_space<vmem>>, vector<4x256xbf16>
    tpu.vector_store %arg15[%c12_136, %c128_137], %209 {strides = array<i32>} : memref<16x512xbf16, #tpu.memory_space<vmem>>, vector<4x256xbf16>,
    %c0_138 = arith.constant 0 : index
    %c0_139 = arith.constant 0 : index
    %211 = vector.load %arg7[%c0_138, %c0_139] : memref<36x4xbf16, #tpu.memory_space<vmem>>, vector<36x4xbf16>
    %cst_140 = arith.constant 0.000000e+00 : f32
    %212 = vector.broadcast %cst_140 : f32 to vector<4x256xf32>
    %cst_141 = arith.constant 0.000000e+00 : f32
    %213 = vector.broadcast %cst_141 : f32 to vector<4x256xf32>
    %cst_142 = arith.constant 0.000000e+00 : f32
    %214 = vector.broadcast %cst_142 : f32 to vector<4x256xf32>
    %cst_143 = arith.constant 0.000000e+00 : f32
    %215 = vector.broadcast %cst_143 : f32 to vector<4x256xf32>
    %c0_144 = arith.constant 0 : index
    %c0_145 = arith.constant 0 : index
    %216 = vector.load %arg15[%c0_144, %c0_145] : memref<16x512xbf16, #tpu.memory_space<vmem>>, vector<4x512xbf16>
    %cst_146 = arith.constant dense<0.000000e+00> : vector<36x512xf32>
    %217 = tpu.matmul %211, %216, %cst_146 {dimension_numbers = #tpu.dot_dimension_numbers<[1], [0], [0], [1], [0, 0, 1, 1], [], []>} : vector<36x4xbf16>, vector<4x512xbf16>, vector<36x512xf32> -> vector<36x512xf32>
    %c0_147 = arith.constant 0 : index
    %c0_148 = arith.constant 0 : index
    %218 = vector.load %arg16[%c0_147, %c0_148] : memref<36x512xf32, #tpu.memory_space<vmem>>, vector<36x512xf32>
    tpu.vector_store %arg16[%c0_147, %c0_148], %217 {strides = array<i32>} : memref<36x512xf32, #tpu.memory_space<vmem>>, vector<36x512xf32>,
    %c0_149 = arith.constant 0 : index
    %c128_150 = arith.constant 128 : index
    %219 = vector.load %arg16[%c0_149, %c128_150] : memref<36x512xf32, #tpu.memory_space<vmem>>, vector<4x256xf32>
    %220 = arith.addf %215, %219 : vector<4x256xf32>
    %c4_151 = arith.constant 4 : index
    %c128_152 = arith.constant 128 : index
    %221 = vector.load %arg16[%c4_151, %c128_152] : memref<36x512xf32, #tpu.memory_space<vmem>>, vector<4x256xf32>
    %222 = arith.addf %214, %221 : vector<4x256xf32>
    %c8_153 = arith.constant 8 : index
    %c129_154 = arith.constant 129 : index
    %223 = vector.load %arg16[%c8_153, %c129_154] : memref<36x512xf32, #tpu.memory_space<vmem>>, vector<4x256xf32>
    %224 = arith.addf %220, %223 : vector<4x256xf32>
    %c12_155 = arith.constant 12 : index
    %c128_156 = arith.constant 128 : index
    %225 = vector.load %arg16[%c12_155, %c128_156] : memref<36x512xf32, #tpu.memory_space<vmem>>, vector<4x256xf32>
    %226 = arith.addf %213, %225 : vector<4x256xf32>
    %c16_157 = arith.constant 16 : index
    %c128_158 = arith.constant 128 : index
    %227 = vector.load %arg16[%c16_157, %c128_158] : memref<36x512xf32, #tpu.memory_space<vmem>>, vector<4x256xf32>
    %228 = arith.addf %212, %227 : vector<4x256xf32>
    %c20_159 = arith.constant 20 : index
    %c129_160 = arith.constant 129 : index
    %229 = vector.load %arg16[%c20_159, %c129_160] : memref<36x512xf32, #tpu.memory_space<vmem>>, vector<4x256xf32>
    %230 = arith.addf %226, %229 : vector<4x256xf32>
    %c24_161 = arith.constant 24 : index
    %c138_162 = arith.constant 138 : index
    %231 = vector.load %arg16[%c24_161, %c138_162] : memref<36x512xf32, #tpu.memory_space<vmem>>, vector<4x256xf32>
    %232 = arith.addf %224, %231 : vector<4x256xf32>
    %c28_163 = arith.constant 28 : index
    %c138_164 = arith.constant 138 : index
    %233 = vector.load %arg16[%c28_163, %c138_164] : memref<36x512xf32, #tpu.memory_space<vmem>>, vector<4x256xf32>
    %234 = arith.addf %222, %233 : vector<4x256xf32>
    %c32_165 = arith.constant 32 : index
    %c139_166 = arith.constant 139 : index
    %235 = vector.load %arg16[%c32_165, %c139_166] : memref<36x512xf32, #tpu.memory_space<vmem>>, vector<4x256xf32>
    %236 = arith.addf %232, %235 : vector<4x256xf32>
    %c4_167 = arith.constant 4 : index
    %c0_168 = arith.constant 0 : index
    %237 = vector.load %arg15[%c4_167, %c0_168] : memref<16x512xbf16, #tpu.memory_space<vmem>>, vector<4x512xbf16>
    %cst_169 = arith.constant dense<0.000000e+00> : vector<36x512xf32>
    %238 = tpu.matmul %211, %237, %cst_169 {dimension_numbers = #tpu.dot_dimension_numbers<[1], [0], [0], [1], [0, 0, 1, 1], [], []>} : vector<36x4xbf16>, vector<4x512xbf16>, vector<36x512xf32> -> vector<36x512xf32>
    %c0_170 = arith.constant 0 : index
    %c0_171 = arith.constant 0 : index
    %239 = vector.load %arg16[%c0_170, %c0_171] : memref<36x512xf32, #tpu.memory_space<vmem>>, vector<36x512xf32>
    tpu.vector_store %arg16[%c0_170, %c0_171], %238 {strides = array<i32>} : memref<36x512xf32, #tpu.memory_space<vmem>>, vector<36x512xf32>,
    %c0_172 = arith.constant 0 : index
    %c127_173 = arith.constant 127 : index
    %240 = vector.load %arg16[%c0_172, %c127_173] : memref<36x512xf32, #tpu.memory_space<vmem>>, vector<4x256xf32>
    %241 = arith.addf %234, %240 : vector<4x256xf32>
    %c4_174 = arith.constant 4 : index
    %c128_175 = arith.constant 128 : index
    %242 = vector.load %arg16[%c4_174, %c128_175] : memref<36x512xf32, #tpu.memory_space<vmem>>, vector<4x256xf32>
    %243 = arith.addf %236, %242 : vector<4x256xf32>
    %c8_176 = arith.constant 8 : index
    %c128_177 = arith.constant 128 : index
    %244 = vector.load %arg16[%c8_176, %c128_177] : memref<36x512xf32, #tpu.memory_space<vmem>>, vector<4x256xf32>
    %245 = arith.addf %241, %244 : vector<4x256xf32>
    %c12_178 = arith.constant 12 : index
    %c127_179 = arith.constant 127 : index
    %246 = vector.load %arg16[%c12_178, %c127_179] : memref<36x512xf32, #tpu.memory_space<vmem>>, vector<4x256xf32>
    %247 = arith.addf %228, %246 : vector<4x256xf32>
    %c16_180 = arith.constant 16 : index
    %c128_181 = arith.constant 128 : index
    %248 = vector.load %arg16[%c16_180, %c128_181] : memref<36x512xf32, #tpu.memory_space<vmem>>, vector<4x256xf32>
    %249 = arith.addf %230, %248 : vector<4x256xf32>
    %c20_182 = arith.constant 20 : index
    %c128_183 = arith.constant 128 : index
    %250 = vector.load %arg16[%c20_182, %c128_183] : memref<36x512xf32, #tpu.memory_space<vmem>>, vector<4x256xf32>
    %251 = arith.addf %247, %250 : vector<4x256xf32>
    %c24_184 = arith.constant 24 : index
    %c137_185 = arith.constant 137 : index
    %252 = vector.load %arg16[%c24_184, %c137_185] : memref<36x512xf32, #tpu.memory_space<vmem>>, vector<4x256xf32>
    %253 = arith.addf %245, %252 : vector<4x256xf32>
    %c28_186 = arith.constant 28 : index
    %c138_187 = arith.constant 138 : index
    %254 = vector.load %arg16[%c28_186, %c138_187] : memref<36x512xf32, #tpu.memory_space<vmem>>, vector<4x256xf32>
    %255 = arith.addf %243, %254 : vector<4x256xf32>
    %c32_188 = arith.constant 32 : index
    %c138_189 = arith.constant 138 : index
    %256 = vector.load %arg16[%c32_188, %c138_189] : memref<36x512xf32, #tpu.memory_space<vmem>>, vector<4x256xf32>
    %257 = arith.addf %253, %256 : vector<4x256xf32>
    %c8_190 = arith.constant 8 : index
    %c0_191 = arith.constant 0 : index
    %258 = vector.load %arg15[%c8_190, %c0_191] : memref<16x512xbf16, #tpu.memory_space<vmem>>, vector<4x512xbf16>
    %cst_192 = arith.constant dense<0.000000e+00> : vector<36x512xf32>
    %259 = tpu.matmul %211, %258, %cst_192 {dimension_numbers = #tpu.dot_dimension_numbers<[1], [0], [0], [1], [0, 0, 1, 1], [], []>} : vector<36x4xbf16>, vector<4x512xbf16>, vector<36x512xf32> -> vector<36x512xf32>
    %c0_193 = arith.constant 0 : index
    %c0_194 = arith.constant 0 : index
    %260 = vector.load %arg16[%c0_193, %c0_194] : memref<36x512xf32, #tpu.memory_space<vmem>>, vector<36x512xf32>
    tpu.vector_store %arg16[%c0_193, %c0_194], %259 {strides = array<i32>} : memref<36x512xf32, #tpu.memory_space<vmem>>, vector<36x512xf32>,
    %c0_195 = arith.constant 0 : index
    %c118_196 = arith.constant 118 : index
    %261 = vector.load %arg16[%c0_195, %c118_196] : memref<36x512xf32, #tpu.memory_space<vmem>>, vector<4x256xf32>
    %262 = arith.addf %249, %261 : vector<4x256xf32>
    %c4_197 = arith.constant 4 : index
    %c118_198 = arith.constant 118 : index
    %263 = vector.load %arg16[%c4_197, %c118_198] : memref<36x512xf32, #tpu.memory_space<vmem>>, vector<4x256xf32>
    %264 = arith.addf %251, %263 : vector<4x256xf32>
    %c8_199 = arith.constant 8 : index
    %c119_200 = arith.constant 119 : index
    %265 = vector.load %arg16[%c8_199, %c119_200] : memref<36x512xf32, #tpu.memory_space<vmem>>, vector<4x256xf32>
    %266 = arith.addf %262, %265 : vector<4x256xf32>
    %c12_201 = arith.constant 12 : index
    %c128_202 = arith.constant 128 : index
    %267 = vector.load %arg16[%c12_201, %c128_202] : memref<36x512xf32, #tpu.memory_space<vmem>>, vector<4x256xf32>
    %268 = arith.addf %255, %267 : vector<4x256xf32>
    %c16_203 = arith.constant 16 : index
    %c128_204 = arith.constant 128 : index
    %269 = vector.load %arg16[%c16_203, %c128_204] : memref<36x512xf32, #tpu.memory_space<vmem>>, vector<4x256xf32>
    %270 = arith.addf %257, %269 : vector<4x256xf32>
    %c20_205 = arith.constant 20 : index
    %c129_206 = arith.constant 129 : index
    %271 = vector.load %arg16[%c20_205, %c129_206] : memref<36x512xf32, #tpu.memory_space<vmem>>, vector<4x256xf32>
    %272 = arith.addf %268, %271 : vector<4x256xf32>
    %c24_207 = arith.constant 24 : index
    %c128_208 = arith.constant 128 : index
    %273 = vector.load %arg16[%c24_207, %c128_208] : memref<36x512xf32, #tpu.memory_space<vmem>>, vector<4x256xf32>
    %274 = arith.addf %266, %273 : vector<4x256xf32>
    %c28_209 = arith.constant 28 : index
    %c128_210 = arith.constant 128 : index
    %275 = vector.load %arg16[%c28_209, %c128_210] : memref<36x512xf32, #tpu.memory_space<vmem>>, vector<4x256xf32>
    %276 = arith.addf %264, %275 : vector<4x256xf32>
    %c32_211 = arith.constant 32 : index
    %c129_212 = arith.constant 129 : index
    %277 = vector.load %arg16[%c32_211, %c129_212] : memref<36x512xf32, #tpu.memory_space<vmem>>, vector<4x256xf32>
    %278 = arith.addf %274, %277 : vector<4x256xf32>
    %c12_213 = arith.constant 12 : index
    %c0_214 = arith.constant 0 : index
    %279 = vector.load %arg15[%c12_213, %c0_214] : memref<16x512xbf16, #tpu.memory_space<vmem>>, vector<4x512xbf16>
    %cst_215 = arith.constant dense<0.000000e+00> : vector<36x512xf32>
    %280 = tpu.matmul %211, %279, %cst_215 {dimension_numbers = #tpu.dot_dimension_numbers<[1], [0], [0], [1], [0, 0, 1, 1], [], []>} : vector<36x4xbf16>, vector<4x512xbf16>, vector<36x512xf32> -> vector<36x512xf32>
    %c0_216 = arith.constant 0 : index
    %c0_217 = arith.constant 0 : index
    %281 = vector.load %arg16[%c0_216, %c0_217] : memref<36x512xf32, #tpu.memory_space<vmem>>, vector<36x512xf32>
    tpu.vector_store %arg16[%c0_216, %c0_217], %280 {strides = array<i32>} : memref<36x512xf32, #tpu.memory_space<vmem>>, vector<36x512xf32>,
    %c0_218 = arith.constant 0 : index
    %c117_219 = arith.constant 117 : index
    %282 = vector.load %arg16[%c0_218, %c117_219] : memref<36x512xf32, #tpu.memory_space<vmem>>, vector<4x256xf32>
    %283 = arith.addf %276, %282 : vector<4x256xf32>
    %c4_220 = arith.constant 4 : index
    %c118_221 = arith.constant 118 : index
    %284 = vector.load %arg16[%c4_220, %c118_221] : memref<36x512xf32, #tpu.memory_space<vmem>>, vector<4x256xf32>
    %285 = arith.addf %278, %284 : vector<4x256xf32>
    %c8_222 = arith.constant 8 : index
    %c118_223 = arith.constant 118 : index
    %286 = vector.load %arg16[%c8_222, %c118_223] : memref<36x512xf32, #tpu.memory_space<vmem>>, vector<4x256xf32>
    %287 = arith.addf %283, %286 : vector<4x256xf32>
    %c12_224 = arith.constant 12 : index
    %c127_225 = arith.constant 127 : index
    %288 = vector.load %arg16[%c12_224, %c127_225] : memref<36x512xf32, #tpu.memory_space<vmem>>, vector<4x256xf32>
    %289 = arith.addf %270, %288 : vector<4x256xf32>
    %c16_226 = arith.constant 16 : index
    %c128_227 = arith.constant 128 : index
    %290 = vector.load %arg16[%c16_226, %c128_227] : memref<36x512xf32, #tpu.memory_space<vmem>>, vector<4x256xf32>
    %291 = arith.addf %272, %290 : vector<4x256xf32>
    %c20_228 = arith.constant 20 : index
    %c128_229 = arith.constant 128 : index
    %292 = vector.load %arg16[%c20_228, %c128_229] : memref<36x512xf32, #tpu.memory_space<vmem>>, vector<4x256xf32>
    %293 = arith.addf %289, %292 : vector<4x256xf32>
    %c24_230 = arith.constant 24 : index
    %c127_231 = arith.constant 127 : index
    %294 = vector.load %arg16[%c24_230, %c127_231] : memref<36x512xf32, #tpu.memory_space<vmem>>, vector<4x256xf32>
    %295 = arith.addf %287, %294 : vector<4x256xf32>
    %c28_232 = arith.constant 28 : index
    %c128_233 = arith.constant 128 : index
    %296 = vector.load %arg16[%c28_232, %c128_233] : memref<36x512xf32, #tpu.memory_space<vmem>>, vector<4x256xf32>
    %297 = arith.addf %285, %296 : vector<4x256xf32>
    %c32_234 = arith.constant 32 : index
    %c128_235 = arith.constant 128 : index
    %298 = vector.load %arg16[%c32_234, %c128_235] : memref<36x512xf32, #tpu.memory_space<vmem>>, vector<4x256xf32>
    %299 = arith.addf %295, %298 : vector<4x256xf32>
    %cst_236 = arith.constant 0.000000e+00 : f32
    %300 = vector.broadcast %cst_236 : f32 to vector<4x1xf32>
    %301 = vector.broadcast %1 : vector<1x256xf32> to vector<4x256xf32>
    %302 = arith.mulf %299, %301 : vector<4x256xf32>
    %cst_237 = arith.constant dense<0.000000e+00> : vector<4xf32>
    %303 = vector.multi_reduction <add>, %302, %cst_237 [1] : vector<4x256xf32> to vector<4xf32>
    %304 = vector.shape_cast %303 : vector<4xf32> to vector<4x1xf32>
    %305 = arith.addf %300, %304 : vector<4x1xf32>
    %306 = vector.broadcast %1 : vector<1x256xf32> to vector<4x256xf32>
    %307 = arith.mulf %297, %306 : vector<4x256xf32>
    %cst_238 = arith.constant dense<0.000000e+00> : vector<4xf32>
    %308 = vector.multi_reduction <add>, %307, %cst_238 [1] : vector<4x256xf32> to vector<4xf32>
    %309 = vector.shape_cast %308 : vector<4xf32> to vector<4x1xf32>
    %310 = arith.addf %305, %309 : vector<4x1xf32>
    %311 = vector.broadcast %1 : vector<1x256xf32> to vector<4x256xf32>
    %312 = arith.mulf %293, %311 : vector<4x256xf32>
    %cst_239 = arith.constant dense<0.000000e+00> : vector<4xf32>
    %313 = vector.multi_reduction <add>, %312, %cst_239 [1] : vector<4x256xf32> to vector<4xf32>
    %314 = vector.shape_cast %313 : vector<4xf32> to vector<4x1xf32>
    %315 = arith.addf %310, %314 : vector<4x1xf32>
    %316 = vector.broadcast %1 : vector<1x256xf32> to vector<4x256xf32>
    %317 = arith.mulf %291, %316 : vector<4x256xf32>
    %cst_240 = arith.constant dense<0.000000e+00> : vector<4xf32>
    %318 = vector.multi_reduction <add>, %317, %cst_240 [1] : vector<4x256xf32> to vector<4xf32>
    %319 = vector.shape_cast %318 : vector<4xf32> to vector<4x1xf32>
    %320 = arith.addf %315, %319 : vector<4x1xf32>
    %cst_241 = arith.constant 0.001953125 : f32
    %321 = vector.broadcast %cst_241 : f32 to vector<4x1xf32>
    %322 = arith.mulf %320, %321 : vector<4x1xf32>
    %323 = vector.broadcast %322 : vector<4x1xf32> to vector<4x256xf32>
    %324 = arith.subf %299, %323 : vector<4x256xf32>
    %325 = vector.broadcast %1 : vector<1x256xf32> to vector<4x256xf32>
    %326 = arith.mulf %324, %325 : vector<4x256xf32>
    %327 = vector.broadcast %322 : vector<4x1xf32> to vector<4x256xf32>
    %328 = arith.subf %297, %327 : vector<4x256xf32>
    %329 = vector.broadcast %1 : vector<1x256xf32> to vector<4x256xf32>
    %330 = arith.mulf %328, %329 : vector<4x256xf32>
    %331 = vector.broadcast %322 : vector<4x1xf32> to vector<4x256xf32>
    %332 = arith.subf %293, %331 : vector<4x256xf32>
    %333 = vector.broadcast %1 : vector<1x256xf32> to vector<4x256xf32>
    %334 = arith.mulf %332, %333 : vector<4x256xf32>
    %335 = vector.broadcast %322 : vector<4x1xf32> to vector<4x256xf32>
    %336 = arith.subf %291, %335 : vector<4x256xf32>
    %337 = vector.broadcast %1 : vector<1x256xf32> to vector<4x256xf32>
    %338 = arith.mulf %336, %337 : vector<4x256xf32>
    %cst_242 = arith.constant 0.000000e+00 : f32
    %339 = vector.broadcast %cst_242 : f32 to vector<4x1xf32>
    %340 = arith.mulf %326, %326 : vector<4x256xf32>
    %cst_243 = arith.constant dense<0.000000e+00> : vector<4xf32>
    %341 = vector.multi_reduction <add>, %340, %cst_243 [1] : vector<4x256xf32> to vector<4xf32>
    %342 = vector.shape_cast %341 : vector<4xf32> to vector<4x1xf32>
    %343 = arith.addf %339, %342 : vector<4x1xf32>
    %344 = arith.mulf %330, %330 : vector<4x256xf32>
    %cst_244 = arith.constant dense<0.000000e+00> : vector<4xf32>
    %345 = vector.multi_reduction <add>, %344, %cst_244 [1] : vector<4x256xf32> to vector<4xf32>
    %346 = vector.shape_cast %345 : vector<4xf32> to vector<4x1xf32>
    %347 = arith.addf %343, %346 : vector<4x1xf32>
    %348 = arith.mulf %334, %334 : vector<4x256xf32>
    %cst_245 = arith.constant dense<0.000000e+00> : vector<4xf32>
    %349 = vector.multi_reduction <add>, %348, %cst_245 [1] : vector<4x256xf32> to vector<4xf32>
    %350 = vector.shape_cast %349 : vector<4xf32> to vector<4x1xf32>
    %351 = arith.addf %347, %350 : vector<4x1xf32>
    %352 = arith.mulf %338, %338 : vector<4x256xf32>
    %cst_246 = arith.constant dense<0.000000e+00> : vector<4xf32>
    %353 = vector.multi_reduction <add>, %352, %cst_246 [1] : vector<4x256xf32> to vector<4xf32>
    %354 = vector.shape_cast %353 : vector<4xf32> to vector<4x1xf32>
    %355 = arith.addf %351, %354 : vector<4x1xf32>
    %cst_247 = arith.constant 0.001953125 : f32
    %356 = vector.broadcast %cst_247 : f32 to vector<4x1xf32>
    %357 = arith.mulf %355, %356 : vector<4x1xf32>
    %c0_248 = arith.constant 0 : index
    %c0_249 = arith.constant 0 : index
    %358 = vector.load %arg10[%c0_248, %c0_249] : memref<4x1xf32, #tpu.memory_space<vmem>>, vector<4x1xf32>
    %cst_250 = arith.constant 9.99999974E-6 : f32
    %359 = vector.broadcast %cst_250 : f32 to vector<4x1xf32>
    %360 = arith.addf %357, %359 : vector<4x1xf32>
    %361 = math.rsqrt %360 : vector<4x1xf32>
    %362 = arith.mulf %358, %361 : vector<4x1xf32>
    %c0_251 = arith.constant 0 : index
    %c0_252 = arith.constant 0 : index
    %363 = vector.load %arg11[%c0_251, %c0_252] : memref<4x1xf32, #tpu.memory_space<vmem>>, vector<4x1xf32>
    %364 = vector.broadcast %363 : vector<4x1xf32> to vector<4x256xf32>
    %365 = vector.broadcast %1 : vector<1x256xf32> to vector<4x256xf32>
    %366 = arith.mulf %364, %365 : vector<4x256xf32>
    %367 = vector.broadcast %362 : vector<4x1xf32> to vector<4x256xf32>
    %368 = arith.mulf %326, %367 : vector<4x256xf32>
    %369 = arith.addf %368, %366 : vector<4x256xf32>
    %cst_253 = arith.constant 0.000000e+00 : f32
    %370 = vector.broadcast %cst_253 : f32 to vector<4x256xf32>
    %371 = arith.maximumf %369, %370 : vector<4x256xf32>
    %372 = vector.broadcast %362 : vector<4x1xf32> to vector<4x256xf32>
    %373 = arith.mulf %330, %372 : vector<4x256xf32>
    %374 = arith.addf %373, %366 : vector<4x256xf32>
    %cst_254 = arith.constant 0.000000e+00 : f32
    %375 = vector.broadcast %cst_254 : f32 to vector<4x256xf32>
    %376 = arith.maximumf %374, %375 : vector<4x256xf32>
    %377 = vector.broadcast %362 : vector<4x1xf32> to vector<4x256xf32>
    %378 = arith.mulf %334, %377 : vector<4x256xf32>
    %379 = arith.addf %378, %366 : vector<4x256xf32>
    %cst_255 = arith.constant 0.000000e+00 : f32
    %380 = vector.broadcast %cst_255 : f32 to vector<4x256xf32>
    %381 = arith.maximumf %379, %380 : vector<4x256xf32>
    %382 = vector.broadcast %362 : vector<4x1xf32> to vector<4x256xf32>
    %383 = arith.mulf %338, %382 : vector<4x256xf32>
    %384 = arith.addf %383, %366 : vector<4x256xf32>
    %cst_256 = arith.constant 0.000000e+00 : f32
    %385 = vector.broadcast %cst_256 : f32 to vector<4x256xf32>
    %386 = arith.maximumf %384, %385 : vector<4x256xf32>
    %c0_257 = arith.constant 0 : index
    %c0_258 = arith.constant 0 : index
    %387 = vector.load %arg13[%c0_257, %c0_258] : memref<16x256xf32, #tpu.memory_space<vmem>>, vector<4x256xf32>
    tpu.vector_store %arg13[%c0_257, %c0_258], %371 {strides = array<i32>} : memref<16x256xf32, #tpu.memory_space<vmem>>, vector<4x256xf32>,
    %c4_259 = arith.constant 4 : index
    %c0_260 = arith.constant 0 : index
    %388 = vector.load %arg13[%c4_259, %c0_260] : memref<16x256xf32, #tpu.memory_space<vmem>>, vector<4x256xf32>
    tpu.vector_store %arg13[%c4_259, %c0_260], %376 {strides = array<i32>} : memref<16x256xf32, #tpu.memory_space<vmem>>, vector<4x256xf32>,
    %c8_261 = arith.constant 8 : index
    %c0_262 = arith.constant 0 : index
    %389 = vector.load %arg13[%c8_261, %c0_262] : memref<16x256xf32, #tpu.memory_space<vmem>>, vector<4x256xf32>
    tpu.vector_store %arg13[%c8_261, %c0_262], %381 {strides = array<i32>} : memref<16x256xf32, #tpu.memory_space<vmem>>, vector<4x256xf32>,
    %c12_263 = arith.constant 12 : index
    %c0_264 = arith.constant 0 : index
    %390 = vector.load %arg13[%c12_263, %c0_264] : memref<16x256xf32, #tpu.memory_space<vmem>>, vector<4x256xf32>
    tpu.vector_store %arg13[%c12_263, %c0_264], %386 {strides = array<i32>} : memref<16x256xf32, #tpu.memory_space<vmem>>, vector<4x256xf32>,
    return
  }
  func.func @transform_0(%arg0: i32) -> (i32, i32) {
    %c0_i32 = arith.constant 0 : i32
    %c0_i32_0 = arith.constant 0 : i32
    %c0_i32_1 = arith.constant 0 : i32
    return %c0_i32, %c0_i32_0 : i32, i32
  }
  func.func @transform_1(%arg0: i32) -> (i32, i32) {
    %c0_i32 = arith.constant 0 : i32
    %c0_i32_0 = arith.constant 0 : i32
    %c0_i32_1 = arith.constant 0 : i32
    return %c0_i32, %c0_i32_0 : i32, i32
  }
  func.func @transform_2(%arg0: i32) -> (i32, i32) {
    %c0_i32 = arith.constant 0 : i32
    %c0_i32_0 = arith.constant 0 : i32
    %c0_i32_1 = arith.constant 0 : i32
    return %c0_i32, %c0_i32_0 : i32, i32
  }
  func.func @transform_3(%arg0: i32) -> (i32, i32) {
    %c0_i32 = arith.constant 0 : i32
    %c0_i32_0 = arith.constant 0 : i32
    %c0_i32_1 = arith.constant 0 : i32
    return %c0_i32, %c0_i32_0 : i32, i32
  }
  func.func @transform_4(%arg0: i32) -> (i32, i32) {
    %c0_i32 = arith.constant 0 : i32
    %c0_i32_0 = arith.constant 0 : i32
    %c0_i32_1 = arith.constant 0 : i32
    return %c0_i32, %c0_i32_0 : i32, i32
  }
  func.func @transform_5(%arg0: i32) -> (i32, i32) {
    %c0_i32 = arith.constant 0 : i32
    %c0_i32_0 = arith.constant 0 : i32
    %c0_i32_1 = arith.constant 0 : i32
    return %c0_i32, %c0_i32_0 : i32, i32
  }
  func.func @transform_6(%arg0: i32) -> (i32, i32) {
    %c0_i32 = arith.constant 0 : i32
    %c0_i32_0 = arith.constant 0 : i32
    %c0_i32_1 = arith.constant 0 : i32
    return %c0_i32, %c0_i32_0 : i32, i32
  }
  func.func @transform_7(%arg0: i32) -> (i32, i32) {
    %c0_i32 = arith.constant 0 : i32
    %c0_i32_0 = arith.constant 0 : i32
    %c0_i32_1 = arith.constant 0 : i32
    return %c0_i32, %c0_i32_0 : i32, i32
  }
  func.func @transform_8(%arg0: i32) -> (i32, i32) {
    %c0_i32 = arith.constant 0 : i32
    %c0_i32_0 = arith.constant 0 : i32
    %c0_i32_1 = arith.constant 0 : i32
    return %c0_i32, %c0_i32_0 : i32, i32
  }
  func.func @transform_9(%arg0: i32) -> (i32, i32) {
    %c0_i32 = arith.constant 0 : i32
    %c0_i32_0 = arith.constant 0 : i32
    %c0_i32_1 = arith.constant 0 : i32
    return %c0_i32, %c0_i32_0 : i32, i32
  }
  func.func @transform_10(%arg0: i32) -> (i32, i32) {
    %c0_i32 = arith.constant 0 : i32
    %c0_i32_0 = arith.constant 0 : i32
    %c0_i32_1 = arith.constant 0 : i32
    return %c0_i32, %c0_i32_0 : i32, i32
  }
  func.func @transform_11(%arg0: i32) -> (i32, i32) {
    %c0_i32 = arith.constant 0 : i32
    %c0_i32_0 = arith.constant 0 : i32
    %c0_i32_1 = arith.constant 0 : i32
    return %c0_i32, %c0_i32_0 : i32, i32
  }
  func.func @transform_12(%arg0: i32) -> (i32, i32) {
    %c0_i32 = arith.constant 0 : i32
    %c0_i32_0 = arith.constant 0 : i32
    %c0_i32_1 = arith.constant 0 : i32
    return %c0_i32, %c0_i32_0 : i32, i32
  }
}

</mosaic_0001>

<llo_original>
// kernel: tile.8
$region0: #{tile.8}
  #allocation0 [shape = 's32[1]{0}', space=sflag, size = 0x4, scoped, tag = 'scoped memory for tile.8']
  %s0 = inlined_call_operand.vmem [shape: f32[4], index: 0, kind: input, shape index: {}]
  %s1 = inlined_call_operand.vmem [shape: f32[4,4], index: 1, kind: output, shape index: {}]
  // Predicated region
  $region2: #{tile.8} parent=0 // pred_check
    _
  $region3: #{tile.8} parent=0 // pred_check_branch
    %3 = sbr.rel (0) target = $region5
  $region4: #{tile.8} parent=0 // pred_region
    _
  $region5: #{tile.8} parent=0 // pred_fallthru
    _
  %v4 = vld [vmem:[%s0] ss:$0 sm:$0xff]
  %5 = vst [vmem:[%s1] sm:$0xf] %v4

// kernel: tile.0
$region0: #{tile.0}
  %s0 = inlined_call_operand.vmem [shape: f32[4,4], index: 0, kind: input, shape index: {}]
  %s1 = inlined_call_operand.vmem [shape: f32[16,1], index: 1, kind: output, shape index: {}]
  $region1: #{tile.0} parent=0
    #allocation0 [shape = 'u8[4096]{0}', space=vmem, size = 0x1000, scoped, tag = 'scoped mem for input reshape']
    %s3 = sshllo.u32 0, 4
    %v4 = vld [vmem:[%s0] sm:%s3]
    %5 = vst [vmem:[#allocation0] sm:%s3] %v4
    %v6 = vld [vmem:[#allocation0] sm:$0xf]
    %vm7 = vcmask 7168
    %8 = vst.msk [vmem:[%s1] ss:$4 sm:$0xf] %vm7, %v6
    %v9 = vld [vmem:[#allocation0] sm:$0xf]
    %10 = vrot.lane.b32.xlu0 %v9, 127
    %v11 = vpop.permute.xlu0 %10
    %vm12 = vcmask 7168
    %s13 = scalar_lea.vmem %s1, 1
    %14 = vst.msk [vmem:[%s13] ss:$4 sm:$0xf] %vm12, %v11
    %v15 = vld [vmem:[#allocation0] sm:$0xf]
    %16 = vrot.lane.b32.xlu0 %v15, 126
    %v17 = vpop.permute.xlu0 %16
    %vm18 = vcmask 7168
    %s19 = scalar_lea.vmem %s1, 2
    %20 = vst.msk [vmem:[%s19] ss:$4 sm:$0xf] %vm18, %v17
    %v21 = vld [vmem:[#allocation0] sm:$0xf]
    %22 = vrot.lane.b32.xlu0 %v21, 125
    %v23 = vpop.permute.xlu0 %22
    %vm24 = vcmask 7168
    %s25 = scalar_lea.vmem %s1, 3
    %26 = vst.msk [vmem:[%s25] ss:$4 sm:$0xf] %vm24, %v23

// kernel: deconv_block_forward.1
$region0: #{deconv_block_forward.1}
  #allocation0 [shape = 'u32[]', space=smem, size = 0x4, offset = 0x4, fixed_abs, tag = 'smem constant byte address 0x4 - core index']
  #allocation1 [shape = 'u32[144,128]{1,0:T(1,128)}', space=vmem, size = 0x12000, scoped, tag = 'internal scratch']
  #allocation2 [shape = 'bf16[16,512]{1,0:T(16,128)(2,1)}', space=vmem, size = 0x4000, scoped, tag = 'scratch operand']
  #allocation3 [shape = 'bf16[16,512]{1,0:T(16,128)(2,1)}', space=vmem, size = 0x4000, scoped, tag = 'scratch operand']
  #allocation4 [shape = 'f32[36,512]{1,0:T(8,128)}', space=vmem, size = 0x14000, scoped, tag = 'scratch operand']
  %s0 = inlined_call_operand.vmem [shape: bf16[8,512], index: 0, kind: input, shape index: {}]
  %s1 = inlined_call_operand.vmem [shape: bf16[16,512], index: 1, kind: input, shape index: {}]
  %s2 = inlined_call_operand.vmem [shape: bf16[16,8], index: 2, kind: input, shape index: {}]
  %s3 = inlined_call_operand.vmem [shape: f32[16,1], index: 3, kind: input, shape index: {}]
  %s4 = inlined_call_operand.vmem [shape: bf16[36,4], index: 4, kind: input, shape index: {}]
  %s5 = inlined_call_operand.vmem [shape: bf16[36,4], index: 5, kind: input, shape index: {}]
  %s6 = inlined_call_operand.vmem [shape: bf16[36,4], index: 6, kind: input, shape index: {}]
  %s7 = inlined_call_operand.vmem [shape: f32[4,1], index: 7, kind: input, shape index: {}]
  %s8 = inlined_call_operand.vmem [shape: f32[4,1], index: 8, kind: input, shape index: {}]
  %s9 = inlined_call_operand.vmem [shape: f32[4,1], index: 9, kind: input, shape index: {}]
  %s10 = inlined_call_operand.vmem [shape: f32[4,1], index: 10, kind: input, shape index: {}]
  %s11 = inlined_call_operand.vmem [shape: f32[1,512], index: 11, kind: input, shape index: {}]
  %s12 = inlined_call_operand.vmem [shape: f32[16,256], index: 12, kind: output, shape index: {}]
  %s13 = sld [smem:[#allocation0]]
  $region58: #{deconv_block_forward.1} parent=0
    _
  %s15 = ssub.s32 1, %s13
  %s16 = scalar_select 0, %s15, %s13
  // Predicated region
  $region2: #{deconv_block_forward.1} parent=0 // pred_check
    _
  $region3: #{deconv_block_forward.1} parent=0 // pred_check_branch
    %18 = sbr.rel (0) target = $region5
  $region4: #{deconv_block_forward.1} parent=0 // pred_region
    _
  $region5: #{deconv_block_forward.1} parent=0 // pred_fallthru
    _
  // Predicated region
  $region6: #{deconv_block_forward.1} parent=0 // pred_check
    _
  $region7: #{deconv_block_forward.1} parent=0 // pred_check_branch
    %20 = sbr.rel (0) target = $region9
  $region8: #{deconv_block_forward.1} parent=0 // pred_region
    _
  $region9: #{deconv_block_forward.1} parent=0 // pred_fallthru
    _
  // Predicated region
  $region10: #{deconv_block_forward.1} parent=0 // pred_check
    _
  $region11: #{deconv_block_forward.1} parent=0 // pred_check_branch
    %22 = sbr.rel (0) target = $region13
  $region12: #{deconv_block_forward.1} parent=0 // pred_region
    _
  $region13: #{deconv_block_forward.1} parent=0 // pred_fallthru
    _
  // Predicated region
  $region14: #{deconv_block_forward.1} parent=0 // pred_check
    _
  $region15: #{deconv_block_forward.1} parent=0 // pred_check_branch
    %24 = sbr.rel (0) target = $region17
  $region16: #{deconv_block_forward.1} parent=0 // pred_region
    _
  $region17: #{deconv_block_forward.1} parent=0 // pred_fallthru
    _
  // Predicated region
  $region18: #{deconv_block_forward.1} parent=0 // pred_check
    _
  $region19: #{deconv_block_forward.1} parent=0 // pred_check_branch
    %26 = sbr.rel (0) target = $region21
  $region20: #{deconv_block_forward.1} parent=0 // pred_region
    _
  $region21: #{deconv_block_forward.1} parent=0 // pred_fallthru
    _
  // Predicated region
  $region22: #{deconv_block_forward.1} parent=0 // pred_check
    _
  $region23: #{deconv_block_forward.1} parent=0 // pred_check_branch
    %28 = sbr.rel (0) target = $region25
  $region24: #{deconv_block_forward.1} parent=0 // pred_region
    _
  $region25: #{deconv_block_forward.1} parent=0 // pred_fallthru
    _
  // Predicated region
  $region26: #{deconv_block_forward.1} parent=0 // pred_check
    _
  $region27: #{deconv_block_forward.1} parent=0 // pred_check_branch
    %30 = sbr.rel (0) target = $region29
  $region28: #{deconv_block_forward.1} parent=0 // pred_region
    _
  $region29: #{deconv_block_forward.1} parent=0 // pred_fallthru
    _
  // Predicated region
  $region30: #{deconv_block_forward.1} parent=0 // pred_check
    _
  $region31: #{deconv_block_forward.1} parent=0 // pred_check_branch
    %32 = sbr.rel (0) target = $region33
  $region32: #{deconv_block_forward.1} parent=0 // pred_region
    _
  $region33: #{deconv_block_forward.1} parent=0 // pred_fallthru
    _
  // Predicated region
  $region34: #{deconv_block_forward.1} parent=0 // pred_check
    _
  $region35: #{deconv_block_forward.1} parent=0 // pred_check_branch
    %34 = sbr.rel (0) target = $region37
  $region36: #{deconv_block_forward.1} parent=0 // pred_region
    _
  $region37: #{deconv_block_forward.1} parent=0 // pred_fallthru
    _
  // Predicated region
  $region38: #{deconv_block_forward.1} parent=0 // pred_check
    _
  $region39: #{deconv_block_forward.1} parent=0 // pred_check_branch
    %36 = sbr.rel (0) target = $region41
  $region40: #{deconv_block_forward.1} parent=0 // pred_region
    _
  $region41: #{deconv_block_forward.1} parent=0 // pred_fallthru
    _
  // Predicated region
  $region42: #{deconv_block_forward.1} parent=0 // pred_check
    _
  $region43: #{deconv_block_forward.1} parent=0 // pred_check_branch
    %38 = sbr.rel (0) target = $region45
  $region44: #{deconv_block_forward.1} parent=0 // pred_region
    _
  $region45: #{deconv_block_forward.1} parent=0 // pred_fallthru
    _
  // Predicated region
  $region46: #{deconv_block_forward.1} parent=0 // pred_check
    _
  $region47: #{deconv_block_forward.1} parent=0 // pred_check_branch
    %40 = sbr.rel (0) target = $region49
  $region48: #{deconv_block_forward.1} parent=0 // pred_region
    _
  $region49: #{deconv_block_forward.1} parent=0 // pred_fallthru
    _
  %v42 = vld [vmem:[%s11] sm:$0xf]
  %v43 = vld [vmem:[%s11 + $0x1] sm:$0x3]
  %v44 = vld [vmem:[%s2] sm:$0xf]
  %v45 = vld [vmem:[%s2 + $0x4] sm:$0xf]
  %v46 = vld [vmem:[%s0] sm:$0xff]
  %v47 = vld [vmem:[%s0 + $0x8] sm:$0xff]
  %v48 = vld [vmem:[%s3] sm:$0xff]
  %v49 = vld [vmem:[%s3 + $0x8] sm:$0xff]
  %51 = vset.pattern.permute.xlu0 0
  %52 = vperm.xlu0 %51, %v48
  %v53 = vpop.permute.xlu0 %52
  %56 = vset.pattern.permute.xlu0 0
  %57 = vperm.xlu0 %56, %v49
  %v58 = vpop.permute.xlu0 %57
  %v61 = vlaneseq
  %v62 = vshrl.u32 %v61, 7
  %v63 = vsub.s32 0, %v62
  %v64 = vrot.slane %v42, %v63
  %v65 = vlaneseq
  %v66 = vshrl.u32 %v65, 7
  %v67 = vsub.s32 1, %v66
  %v68 = vrot.slane %v42, %v67
  %v69 = vlaneseq
  %v70 = vshrl.u32 %v69, 7
  %v71 = vsub.s32 2, %v70
  %v72 = vrot.slane %v42, %v71
  %v73 = vlaneseq
  %v74 = vshrl.u32 %v73, 7
  %v75 = vsub.s32 3, %v74
  %v76 = vrot.slane %v42, %v75
  %v81 = vmul.f32 %v53, %v64
  %v82 = vmul.f32 %v53, %v68
  %v83 = vmul.f32 %v53, %v72
  %v84 = vmul.f32 %v53, %v76
  %v85 = vmul.f32 %v58, %v64
  %v86 = vmul.f32 %v58, %v68
  %v87 = vmul.f32 %v58, %v72
  %v88 = vmul.f32 %v58, %v76
  %v91 = vunpack.c.l.b16 %v44
  %v92 = vunpack.c.l.b16 %v45
  %v93 = vpack.c.b16 %v92, %v91
  %v96 = vunpack.c.l.b16 %v46
  %v97 = vunpack.c.h.b16 %v46
  %v98 = vunpack.c.l.b16 %v47
  %v99 = vunpack.c.h.b16 %v47
  %v100 = vpack.c.b16 %v96, %v96
  %v101 = vpack.c.b16 %v97, %v97
  %v102 = vpack.c.b16 %v98, %v98
  %v103 = vpack.c.b16 %v99, %v99
  %vm104 = vcmask 64512
  %v106 = vsel %vm104, %v93, 0
  %vm108 = vcmask 1043456
  %v110 = vsel %vm108, %v100, 0
  %v113 = vsel %vm108, %v101, 0
  %v116 = vsel %vm108, %v102, 0
  %v119 = vsel %vm108, %v103, 0
  %121 = vmatprep.subr.bf16.mxu0 %v113
  %122 = vmatpush1.bf16.msra.mxu0 %v110
  %123 = vmatprep.subr.bf16.mxu0 0
  %124 = vmatpush1.bf16.msra.mxu0 0
  %125 = vmatprep.subr.bf16.mxu0 0
  %126 = vmatpush1.bf16.msra.mxu0 0
  %127 = vmatprep.subr.bf16.mxu0 0
  %128 = vmatpush1.bf16.msra.mxu0 0
  %129 = vmatprep.subr.bf16.mxu0 0
  %130 = vmatpush1.bf16.msra.mxu0 0
  %131 = vmatprep.subr.bf16.mxu0 0
  %132 = vmatpush1.bf16.msra.mxu0 0
  %133 = vmatprep.subr.bf16.mxu0 0
  %134 = vmatpush1.bf16.msra.mxu0 0
  %135 = vmatprep.subr.bf16.mxu0 0
  %136 = vmatpush1.bf16.msra.mxu0 0
  %137 = vmatprep.subr.bf16.mxu0 0
  %138 = vmatpush1.bf16.msra.mxu0 0
  %139 = vmatprep.subr.bf16.mxu0 0
  %140 = vmatpush1.bf16.msra.mxu0 0
  %141 = vmatprep.subr.bf16.mxu0 0
  %142 = vmatpush1.bf16.msra.mxu0 0
  %143 = vmatprep.subr.bf16.mxu0 0
  %144 = vmatpush1.bf16.msra.mxu0 0
  %145 = vmatprep.subr.bf16.mxu0 0
  %146 = vmatpush1.bf16.msra.mxu0 0
  %147 = vmatprep.subr.bf16.mxu0 0
  %148 = vmatpush1.bf16.msra.mxu0 0
  %149 = vmatprep.subr.bf16.mxu0 0
  %150 = vmatpush1.bf16.msra.mxu0 0
  %151 = vmatprep.subr.bf16.mxu0 0
  %152 = vmatpush1.bf16.msra.mxu0 0
  %153 = vmatprep.mubr.bf16.mxu0 0
  %154 = vmatmul.mubr.bf16.gmra.mrb[0].mxu0 %v106
  %v155 = vpop.f32.mrb[0].mxu0
  %v156 = vadd.f32 %v81, %v155
  %v157 = vpop.f32.mrb[0].mxu0
  %v158 = vadd.f32 %v82, %v157
  %v159 = vpop.f32.mrb[0].mxu0
  %v160 = vadd.f32 %v85, %v159
  %v161 = vpop.f32.mrb[0].mxu0
  %v162 = vadd.f32 %v86, %v161
  %163 = vdwg.mxu0
  %164 = vmatprep.subr.bf16.mxu0 %v119
  %165 = vmatpush1.bf16.msra.mxu0 %v116
  %166 = vmatprep.subr.bf16.mxu0 0
  %167 = vmatpush1.bf16.msra.mxu0 0
  %168 = vmatprep.subr.bf16.mxu0 0
  %169 = vmatpush1.bf16.msra.mxu0 0
  %170 = vmatprep.subr.bf16.mxu0 0
  %171 = vmatpush1.bf16.msra.mxu0 0
  %172 = vmatprep.subr.bf16.mxu0 0
  %173 = vmatpush1.bf16.msra.mxu0 0
  %174 = vmatprep.subr.bf16.mxu0 0
  %175 = vmatpush1.bf16.msra.mxu0 0
  %176 = vmatprep.subr.bf16.mxu0 0
  %177 = vmatpush1.bf16.msra.mxu0 0
  %178 = vmatprep.subr.bf16.mxu0 0
  %179 = vmatpush1.bf16.msra.mxu0 0
  %180 = vmatprep.subr.bf16.mxu0 0
  %181 = vmatpush1.bf16.msra.mxu0 0
  %182 = vmatprep.subr.bf16.mxu0 0
  %183 = vmatpush1.bf16.msra.mxu0 0
  %184 = vmatprep.subr.bf16.mxu0 0
  %185 = vmatpush1.bf16.msra.mxu0 0
  %186 = vmatprep.subr.bf16.mxu0 0
  %187 = vmatpush1.bf16.msra.mxu0 0
  %188 = vmatprep.subr.bf16.mxu0 0
  %189 = vmatpush1.bf16.msra.mxu0 0
  %190 = vmatprep.subr.bf16.mxu0 0
  %191 = vmatpush1.bf16.msra.mxu0 0
  %192 = vmatprep.subr.bf16.mxu0 0
  %193 = vmatpush1.bf16.msra.mxu0 0
  %194 = vmatprep.subr.bf16.mxu0 0
  %195 = vmatpush1.bf16.msra.mxu0 0
  %196 = vmatprep.mubr.bf16.mxu0 0
  %197 = vmatmul.mubr.bf16.gmra.mrb[0].mxu0 %v106
  %v198 = vpop.f32.mrb[0].mxu0
  %v199 = vadd.f32 %v83, %v198
  %v200 = vpop.f32.mrb[0].mxu0
  %v201 = vadd.f32 %v84, %v200
  %v202 = vpop.f32.mrb[0].mxu0
  %v203 = vadd.f32 %v87, %v202
  %v204 = vpop.f32.mrb[0].mxu0
  %v205 = vadd.f32 %v88, %v204
  %206 = vdwg.mxu0
  %v207 = vpack.c.bf16 %v160, %v156
  %v208 = vpack.c.bf16 %v162, %v158
  %v209 = vpack.c.bf16 %v203, %v199
  %v210 = vpack.c.bf16 %v205, %v201
  %211 = vst [vmem:[#allocation2] sm:$0xff] %v207
  %212 = vst [vmem:[#allocation2 + $0x8] sm:$0xff] %v208
  %213 = vst [vmem:[#allocation2 + $0x10] sm:$0xff] %v209
  %214 = vst [vmem:[#allocation2 + $0x18] sm:$0xff] %v210
  %v215 = vld [vmem:[%s4] sm:$0xf]
  %v216 = vld [vmem:[%s4 + $0x4] sm:$0xf]
  %v217 = vld [vmem:[%s4 + $0x8] sm:$0xf]
  %v218 = vld [vmem:[%s4 + $0xc] sm:$0xf]
  %v219 = vld [vmem:[%s4 + $0x10] sm:$0x3]
  %v220 = vld [vmem:[%s5] sm:$0xf]
  %v221 = vld [vmem:[%s5 + $0x4] sm:$0xf]
  %v222 = vld [vmem:[%s5 + $0x8] sm:$0xf]
  %v223 = vld [vmem:[%s5 + $0xc] sm:$0xf]
  %v224 = vld [vmem:[%s5 + $0x10] sm:$0x3]
  %v225 = vld [vmem:[#allocation2] sm:$0x3]
  %v226 = vld [vmem:[#allocation2 + $0x8] sm:$0x3]
  %v227 = vld [vmem:[#allocation2 + $0x10] sm:$0x3]
  %v228 = vld [vmem:[#allocation2 + $0x18] sm:$0x3]
  %v229 = vld [vmem:[%s1] sm:$0x33]
  %v230 = vld [vmem:[%s1 + $0x8] sm:$0x33]
  %v236 = vunpack.c.l.b16 %v220
  %v237 = vunpack.c.l.b16 %v221
  %v238 = vunpack.c.l.b16 %v222
  %v239 = vunpack.c.l.b16 %v223
  %v240 = vunpack.c.l.b16 %v224
  %v241 = vpack.c.b16 %v237, %v236
  %v242 = vpack.c.b16 %v239, %v238
  %v243 = vpack.c.b16 %v240, %v240
  %v246 = vunpack.c.l.b16 %v229
  %v247 = vunpack.c.h.b16 %v229
  %v248 = vunpack.c.l.b16 %v230
  %v249 = vunpack.c.h.b16 %v230
  %v250 = vpack.c.b16 %v246, %v246
  %v251 = vpack.c.b16 %v247, %v247
  %v252 = vpack.c.b16 %v248, %v248
  %v253 = vpack.c.b16 %v249, %v249
  %vm254 = vcmask 31744
  %v256 = vsel %vm254, %v241, 0
  %v259 = vsel %vm254, %v242, 0
  %v262 = vsel %vm254, %v243, 0
  %vm264 = vcmask 1041408
  %v266 = vsel %vm264, %v250, 0
  %v269 = vsel %vm264, %v251, 0
  %v272 = vsel %vm264, %v252, 0
  %v275 = vsel %vm264, %v253, 0
  %277 = vmatprep.subr.bf16.mxu0 %v269
  %278 = vmatpush1.bf16.msra.mxu0 %v266
  %279 = vmatprep.subr.bf16.mxu0 0
  %280 = vmatpush1.bf16.msra.mxu0 0
  %281 = vmatprep.subr.bf16.mxu0 0
  %282 = vmatpush1.bf16.msra.mxu0 0
  %283 = vmatprep.subr.bf16.mxu0 0
  %284 = vmatpush1.bf16.msra.mxu0 0
  %285 = vmatprep.subr.bf16.mxu0 0
  %286 = vmatpush1.bf16.msra.mxu0 0
  %287 = vmatprep.subr.bf16.mxu0 0
  %288 = vmatpush1.bf16.msra.mxu0 0
  %289 = vmatprep.subr.bf16.mxu0 0
  %290 = vmatpush1.bf16.msra.mxu0 0
  %291 = vmatprep.subr.bf16.mxu0 0
  %292 = vmatpush1.bf16.msra.mxu0 0
  %293 = vmatprep.subr.bf16.mxu0 0
  %294 = vmatpush1.bf16.msra.mxu0 0
  %295 = vmatprep.subr.bf16.mxu0 0
  %296 = vmatpush1.bf16.msra.mxu0 0
  %297 = vmatprep.subr.bf16.mxu0 0
  %298 = vmatpush1.bf16.msra.mxu0 0
  %299 = vmatprep.subr.bf16.mxu0 0
  %300 = vmatpush1.bf16.msra.mxu0 0
  %301 = vmatprep.subr.bf16.mxu0 0
  %302 = vmatpush1.bf16.msra.mxu0 0
  %303 = vmatprep.subr.bf16.mxu0 0
  %304 = vmatpush1.bf16.msra.mxu0 0
  %305 = vmatprep.subr.bf16.mxu0 0
  %306 = vmatpush1.bf16.msra.mxu0 0
  %307 = vmatprep.subr.bf16.mxu0 0
  %308 = vmatpush1.bf16.msra.mxu0 0
  %309 = vmatprep.mubr.bf16.mxu0 0
  %310 = vmatmul.mubr.bf16.gmra.mrb[0].mxu0 %v256
  %v311 = vpop.f32.mrb[0].mxu0
  %v312 = vadd.f32 0.0, %v311
  %v313 = vpop.f32.mrb[0].mxu0
  %v314 = vadd.f32 0.0, %v313
  %v315 = vpop.f32.mrb[0].mxu0
  %v316 = vadd.f32 0.0, %v315
  %v317 = vpop.f32.mrb[0].mxu0
  %v318 = vadd.f32 0.0, %v317
  %319 = vmatprep.mubr.bf16.mxu0 0
  %320 = vmatmul.mubr.bf16.gmra.mrb[0].mxu0 %v259
  %v321 = vpop.f32.mrb[0].mxu0
  %v322 = vadd.f32 0.0, %v321
  %v323 = vpop.f32.mrb[0].mxu0
  %v324 = vadd.f32 0.0, %v323
  %v325 = vpop.f32.mrb[0].mxu0
  %v326 = vadd.f32 0.0, %v325
  %v327 = vpop.f32.mrb[0].mxu0
  %v328 = vadd.f32 0.0, %v327
  %329 = vmatprep.mubr.bf16.mxu0 0
  %330 = vmatmul.mubr.bf16.gmra.mrb[0].mxu0 %v262
  %v331 = vpop.f32.mrb[0].mxu0
  %v332 = vadd.f32 0.0, %v331
  %v333 = vpop.f32.mrb[0].mxu0
  %v334 = vadd.f32 0.0, %v333
  %v335 = vpop.f32.mrb[0].mxu0
  %v336 = vpop.f32.mrb[0].mxu0
  %337 = vdwg.mxu0
  %338 = vmatprep.subr.bf16.mxu0 %v275
  %339 = vmatpush1.bf16.msra.mxu0 %v272
  %340 = vmatprep.subr.bf16.mxu0 0
  %341 = vmatpush1.bf16.msra.mxu0 0
  %342 = vmatprep.subr.bf16.mxu0 0
  %343 = vmatpush1.bf16.msra.mxu0 0
  %344 = vmatprep.subr.bf16.mxu0 0
  %345 = vmatpush1.bf16.msra.mxu0 0
  %346 = vmatprep.subr.bf16.mxu0 0
  %347 = vmatpush1.bf16.msra.mxu0 0
  %348 = vmatprep.subr.bf16.mxu0 0
  %349 = vmatpush1.bf16.msra.mxu0 0
  %350 = vmatprep.subr.bf16.mxu0 0
  %351 = vmatpush1.bf16.msra.mxu0 0
  %352 = vmatprep.subr.bf16.mxu0 0
  %353 = vmatpush1.bf16.msra.mxu0 0
  %354 = vmatprep.subr.bf16.mxu0 0
  %355 = vmatpush1.bf16.msra.mxu0 0
  %356 = vmatprep.subr.bf16.mxu0 0
  %357 = vmatpush1.bf16.msra.mxu0 0
  %358 = vmatprep.subr.bf16.mxu0 0
  %359 = vmatpush1.bf16.msra.mxu0 0
  %360 = vmatprep.subr.bf16.mxu0 0
  %361 = vmatpush1.bf16.msra.mxu0 0
  %362 = vmatprep.subr.bf16.mxu0 0
  %363 = vmatpush1.bf16.msra.mxu0 0
  %364 = vmatprep.subr.bf16.mxu0 0
  %365 = vmatpush1.bf16.msra.mxu0 0
  %366 = vmatprep.subr.bf16.mxu0 0
  %367 = vmatpush1.bf16.msra.mxu0 0
  %368 = vmatprep.subr.bf16.mxu0 0
  %369 = vmatpush1.bf16.msra.mxu0 0
  %370 = vmatprep.mubr.bf16.mxu0 0
  %371 = vmatmul.mubr.bf16.gmra.mrb[0].mxu0 %v256
  %v372 = vpop.f32.mrb[0].mxu0
  %v373 = vadd.f32 0.0, %v372
  %v374 = vpop.f32.mrb[0].mxu0
  %v375 = vadd.f32 0.0, %v374
  %v376 = vpop.f32.mrb[0].mxu0
  %v377 = vadd.f32 0.0, %v376
  %v378 = vpop.f32.mrb[0].mxu0
  %v379 = vadd.f32 0.0, %v378
  %380 = vmatprep.mubr.bf16.mxu0 0
  %381 = vmatmul.mubr.bf16.gmra.mrb[0].mxu0 %v259
  %v382 = vpop.f32.mrb[0].mxu0
  %v383 = vadd.f32 0.0, %v382
  %v384 = vpop.f32.mrb[0].mxu0
  %v385 = vadd.f32 0.0, %v384
  %v386 = vpop.f32.mrb[0].mxu0
  %v387 = vadd.f32 0.0, %v386
  %v388 = vpop.f32.mrb[0].mxu0
  %v389 = vadd.f32 0.0, %v388
  %390 = vmatprep.mubr.bf16.mxu0 0
  %391 = vmatmul.mubr.bf16.gmra.mrb[0].mxu0 %v262
  %v392 = vpop.f32.mrb[0].mxu0
  %v393 = vadd.f32 0.0, %v392
  %v394 = vpop.f32.mrb[0].mxu0
  %v395 = vadd.f32 0.0, %v394
  %v396 = vpop.f32.mrb[0].mxu0
  %v397 = vpop.f32.mrb[0].mxu0
  %398 = vdwg.mxu0
  %v404 = vunpack.c.l.b16 %v215
  %v405 = vunpack.c.l.b16 %v216
  %v406 = vunpack.c.l.b16 %v217
  %v407 = vunpack.c.l.b16 %v218
  %v408 = vunpack.c.l.b16 %v219
  %v409 = vpack.c.b16 %v405, %v404
  %v410 = vpack.c.b16 %v407, %v406
  %v411 = vpack.c.b16 %v408, %v408
  %v413 = vsel %vm254, %v409, 0
  %v416 = vsel %vm254, %v410, 0
  %v419 = vsel %vm254, %v411, 0
  %v422 = vsel %vm264, %v225, 0
  %v425 = vsel %vm264, %v226, 0
  %v428 = vsel %vm264, %v227, 0
  %v431 = vsel %vm264, %v228, 0
  %433 = vmatprep.subr.bf16.mxu0 %v425
  %434 = vmatpush1.bf16.msra.mxu0 %v422
  %435 = vmatprep.subr.bf16.mxu0 0
  %436 = vmatpush1.bf16.msra.mxu0 0
  %437 = vmatprep.subr.bf16.mxu0 0
  %438 = vmatpush1.bf16.msra.mxu0 0
  %439 = vmatprep.subr.bf16.mxu0 0
  %440 = vmatpush1.bf16.msra.mxu0 0
  %441 = vmatprep.subr.bf16.mxu0 0
  %442 = vmatpush1.bf16.msra.mxu0 0
  %443 = vmatprep.subr.bf16.mxu0 0
  %444 = vmatpush1.bf16.msra.mxu0 0
  %445 = vmatprep.subr.bf16.mxu0 0
  %446 = vmatpush1.bf16.msra.mxu0 0
  %447 = vmatprep.subr.bf16.mxu0 0
  %448 = vmatpush1.bf16.msra.mxu0 0
  %449 = vmatprep.subr.bf16.mxu0 0
  %450 = vmatpush1.bf16.msra.mxu0 0
  %451 = vmatprep.subr.bf16.mxu0 0
  %452 = vmatpush1.bf16.msra.mxu0 0
  %453 = vmatprep.subr.bf16.mxu0 0
  %454 = vmatpush1.bf16.msra.mxu0 0
  %455 = vmatprep.subr.bf16.mxu0 0
  %456 = vmatpush1.bf16.msra.mxu0 0
  %457 = vmatprep.subr.bf16.mxu0 0
  %458 = vmatpush1.bf16.msra.mxu0 0
  %459 = vmatprep.subr.bf16.mxu0 0
  %460 = vmatpush1.bf16.msra.mxu0 0
  %461 = vmatprep.subr.bf16.mxu0 0
  %462 = vmatpush1.bf16.msra.mxu0 0
  %463 = vmatprep.subr.bf16.mxu0 0
  %464 = vmatpush1.bf16.msra.mxu0 0
  %465 = vmatprep.mubr.bf16.mxu0 0
  %466 = vmatmul.mubr.bf16.gmra.mrb[0].mxu0 %v413
  %v467 = vpop.f32.mrb[0].mxu0
  %v468 = vadd.f32 %v312, %v467
  %v469 = vpop.f32.mrb[0].mxu0
  %v470 = vadd.f32 %v314, %v469
  %v471 = vpop.f32.mrb[0].mxu0
  %v472 = vadd.f32 %v316, %v471
  %v473 = vpop.f32.mrb[0].mxu0
  %v474 = vadd.f32 %v318, %v473
  %475 = vmatprep.mubr.bf16.mxu0 0
  %476 = vmatmul.mubr.bf16.gmra.mrb[0].mxu0 %v416
  %v477 = vpop.f32.mrb[0].mxu0
  %v478 = vadd.f32 %v322, %v477
  %v479 = vpop.f32.mrb[0].mxu0
  %v480 = vadd.f32 %v324, %v479
  %v481 = vpop.f32.mrb[0].mxu0
  %v482 = vadd.f32 %v326, %v481
  %v483 = vpop.f32.mrb[0].mxu0
  %v484 = vadd.f32 %v328, %v483
  %485 = vmatprep.mubr.bf16.mxu0 0
  %486 = vmatmul.mubr.bf16.gmra.mrb[0].mxu0 %v419
  %v487 = vpop.f32.mrb[0].mxu0
  %v488 = vadd.f32 %v332, %v487
  %v489 = vpop.f32.mrb[0].mxu0
  %v490 = vadd.f32 %v334, %v489
  %v491 = vpop.f32.mrb[0].mxu0
  %v492 = vpop.f32.mrb[0].mxu0
  %493 = vdwg.mxu0
  %494 = vmatprep.subr.bf16.mxu0 %v431
  %495 = vmatpush1.bf16.msra.mxu0 %v428
  %496 = vmatprep.subr.bf16.mxu0 0
  %497 = vmatpush1.bf16.msra.mxu0 0
  %498 = vmatprep.subr.bf16.mxu0 0
  %499 = vmatpush1.bf16.msra.mxu0 0
  %500 = vmatprep.subr.bf16.mxu0 0
  %501 = vmatpush1.bf16.msra.mxu0 0
  %502 = vmatprep.subr.bf16.mxu0 0
  %503 = vmatpush1.bf16.msra.mxu0 0
  %504 = vmatprep.subr.bf16.mxu0 0
  %505 = vmatpush1.bf16.msra.mxu0 0
  %506 = vmatprep.subr.bf16.mxu0 0
  %507 = vmatpush1.bf16.msra.mxu0 0
  %508 = vmatprep.subr.bf16.mxu0 0
  %509 = vmatpush1.bf16.msra.mxu0 0
  %510 = vmatprep.subr.bf16.mxu0 0
  %511 = vmatpush1.bf16.msra.mxu0 0
  %512 = vmatprep.subr.bf16.mxu0 0
  %513 = vmatpush1.bf16.msra.mxu0 0
  %514 = vmatprep.subr.bf16.mxu0 0
  %515 = vmatpush1.bf16.msra.mxu0 0
  %516 = vmatprep.subr.bf16.mxu0 0
  %517 = vmatpush1.bf16.msra.mxu0 0
  %518 = vmatprep.subr.bf16.mxu0 0
  %519 = vmatpush1.bf16.msra.mxu0 0
  %520 = vmatprep.subr.bf16.mxu0 0
  %521 = vmatpush1.bf16.msra.mxu0 0
  %522 = vmatprep.subr.bf16.mxu0 0
  %523 = vmatpush1.bf16.msra.mxu0 0
  %524 = vmatprep.subr.bf16.mxu0 0
  %525 = vmatpush1.bf16.msra.mxu0 0
  %526 = vmatprep.mubr.bf16.mxu0 0
  %527 = vmatmul.mubr.bf16.gmra.mrb[0].mxu0 %v413
  %v528 = vpop.f32.mrb[0].mxu0
  %v529 = vadd.f32 %v373, %v528
  %v530 = vpop.f32.mrb[0].mxu0
  %v531 = vadd.f32 %v375, %v530
  %v532 = vpop.f32.mrb[0].mxu0
  %v533 = vadd.f32 %v377, %v532
  %v534 = vpop.f32.mrb[0].mxu0
  %v535 = vadd.f32 %v379, %v534
  %536 = vmatprep.mubr.bf16.mxu0 0
  %537 = vmatmul.mubr.bf16.gmra.mrb[0].mxu0 %v416
  %v538 = vpop.f32.mrb[0].mxu0
  %v539 = vadd.f32 %v383, %v538
  %v540 = vpop.f32.mrb[0].mxu0
  %v541 = vadd.f32 %v385, %v540
  %v542 = vpop.f32.mrb[0].mxu0
  %v543 = vadd.f32 %v387, %v542
  %v544 = vpop.f32.mrb[0].mxu0
  %v545 = vadd.f32 %v389, %v544
  %546 = vmatprep.mubr.bf16.mxu0 0
  %547 = vmatmul.mubr.bf16.gmra.mrb[0].mxu0 %v419
  %v548 = vpop.f32.mrb[0].mxu0
  %v549 = vadd.f32 %v393, %v548
  %v550 = vpop.f32.mrb[0].mxu0
  %v551 = vadd.f32 %v395, %v550
  %v552 = vpop.f32.mrb[0].mxu0
  %v553 = vpop.f32.mrb[0].mxu0
  %554 = vdwg.mxu0
  %555 = vst [vmem:[#allocation4] sm:$0xff] %v468
  %556 = vst [vmem:[#allocation4 + $0x8] sm:$0xff] %v470
  %557 = vst [vmem:[#allocation4 + $0x10] sm:$0xff] %v529
  %558 = vst [vmem:[#allocation4 + $0x18] sm:$0xff] %v531
  %559 = vst [vmem:[#allocation4 + $0x20] sm:$0xff] %v472
  %560 = vst [vmem:[#allocation4 + $0x28] sm:$0xff] %v474
  %561 = vst [vmem:[#allocation4 + $0x30] sm:$0xff] %v533
  %562 = vst [vmem:[#allocation4 + $0x38] sm:$0xff] %v535
  %563 = vst [vmem:[#allocation4 + $0x40] sm:$0xff] %v478
  %564 = vst [vmem:[#allocation4 + $0x48] sm:$0xff] %v480
  %565 = vst [vmem:[#allocation4 + $0x50] sm:$0xff] %v539
  %566 = vst [vmem:[#allocation4 + $0x58] sm:$0xff] %v541
  %567 = vst [vmem:[#allocation4 + $0x60] sm:$0xff] %v482
  %568 = vst [vmem:[#allocation4 + $0x68] sm:$0xff] %v484
  %569 = vst [vmem:[#allocation4 + $0x70] sm:$0xff] %v543
  %570 = vst [vmem:[#allocation4 + $0x78] sm:$0xff] %v545
  %571 = vst [vmem:[#allocation4 + $0x80] sm:$0xf] %v488
  %572 = vst [vmem:[#allocation4 + $0x88] sm:$0xf] %v490
  %573 = vst [vmem:[#allocation4 + $0x90] sm:$0xf] %v549
  %574 = vst [vmem:[#allocation4 + $0x98] sm:$0xf] %v551
  %v575 = vld [vmem:[#allocation4 + $0x8] sm:$0xf]
  %v576 = vld [vmem:[#allocation4 + $0x10] sm:$0xf]
  %v577 = vadd.f32 %v575, 0.0
  %v578 = vadd.f32 %v576, 0.0
  %v579 = vld [vmem:[#allocation4 + $0x8] sm:$0xf0]
  %v580 = vld [vmem:[#allocation4 + $0x10] sm:$0xf0]
  %v581 = vadd.f32 %v579, 0.0
  %v582 = vadd.f32 %v580, 0.0
  %v583 = vld [vmem:[#allocation4 + $0x28] sm:$0xf]
  %v584 = vld [vmem:[#allocation4 + $0x30] sm:$0xf]
  %v585 = vld [vmem:[#allocation4 + $0x38] sm:$0xf]
  %589 = vrot.lane.b32.xlu0 %v583, 127
  %v590 = vpop.permute.xlu0 %589
  %591 = vrot.lane.b32.xlu0 %v584, 127
  %v592 = vpop.permute.xlu0 %591
  %593 = vrot.lane.b32.xlu0 %v585, 127
  %v594 = vpop.permute.xlu0 %593
  %vm595 = vcmask 1039360
  %v596 = vsel %vm595, %v590, %v592
  %v597 = vsel %vm595, %v592, %v594
  %v600 = vadd.f32 %v577, %v596
  %v601 = vadd.f32 %v578, %v597
  %v602 = vld [vmem:[#allocation4 + $0x28] sm:$0xf0]
  %v603 = vld [vmem:[#allocation4 + $0x30] sm:$0xf0]
  %v604 = vadd.f32 %v602, 0.0
  %v605 = vadd.f32 %v603, 0.0
  %v606 = vld [vmem:[#allocation4 + $0x48] sm:$0xf]
  %v607 = vld [vmem:[#allocation4 + $0x50] sm:$0xf]
  %v608 = vadd.f32 %v606, 0.0
  %v609 = vadd.f32 %v607, 0.0
  %v610 = vld [vmem:[#allocation4 + $0x48] sm:$0xf0]
  %v611 = vld [vmem:[#allocation4 + $0x50] sm:$0xf0]
  %v612 = vld [vmem:[#allocation4 + $0x58] sm:$0xf0]
  %616 = vrot.lane.b32.xlu0 %v610, 127
  %v617 = vpop.permute.xlu0 %616
  %618 = vrot.lane.b32.xlu0 %v611, 127
  %v619 = vpop.permute.xlu0 %618
  %620 = vrot.lane.b32.xlu0 %v612, 127
  %v621 = vpop.permute.xlu0 %620
  %v622 = vsel %vm595, %v617, %v619
  %v623 = vsel %vm595, %v619, %v621
  %v626 = vadd.f32 %v604, %v622
  %v627 = vadd.f32 %v605, %v623
  %v628 = vld [vmem:[#allocation4 + $0x68] sm:$0xf]
  %v629 = vld [vmem:[#allocation4 + $0x70] sm:$0xf]
  %v630 = vld [vmem:[#allocation4 + $0x78] sm:$0xf]
  %634 = vrot.lane.b32.xlu0 %v628, 118
  %v635 = vpop.permute.xlu0 %634
  %636 = vrot.lane.b32.xlu0 %v629, 118
  %v637 = vpop.permute.xlu0 %636
  %638 = vrot.lane.b32.xlu0 %v630, 118
  %v639 = vpop.permute.xlu0 %638
  %vm640 = vcmask 965632
  %v641 = vsel %vm640, %v635, %v637
  %v642 = vsel %vm640, %v637, %v639
  %v645 = vadd.f32 %v600, %v641
  %v646 = vadd.f32 %v601, %v642
  %v647 = vld [vmem:[#allocation4 + $0x68] sm:$0xf0]
  %v648 = vld [vmem:[#allocation4 + $0x70] sm:$0xf0]
  %v649 = vld [vmem:[#allocation4 + $0x78] sm:$0xf0]
  %653 = vrot.lane.b32.xlu0 %v647, 118
  %v654 = vpop.permute.xlu0 %653
  %655 = vrot.lane.b32.xlu0 %v648, 118
  %v656 = vpop.permute.xlu0 %655
  %657 = vrot.lane.b32.xlu0 %v649, 118
  %v658 = vpop.permute.xlu0 %657
  %v659 = vsel %vm640, %v654, %v656
  %v660 = vsel %vm640, %v656, %v658
  %v663 = vadd.f32 %v581, %v659
  %v664 = vadd.f32 %v582, %v660
  %v665 = vld [vmem:[#allocation4 + $0x88] sm:$0xf]
  %v666 = vld [vmem:[#allocation4 + $0x90] sm:$0xf]
  %v667 = vld [vmem:[#allocation4 + $0x98] sm:$0xf]
  %671 = vrot.lane.b32.xlu0 %v665, 117
  %v672 = vpop.permute.xlu0 %671
  %673 = vrot.lane.b32.xlu0 %v666, 117
  %v674 = vpop.permute.xlu0 %673
  %675 = vrot.lane.b32.xlu0 %v667, 117
  %v676 = vpop.permute.xlu0 %675
  %vm677 = vcmask 957440
  %v678 = vsel %vm677, %v672, %v674
  %v679 = vsel %vm677, %v674, %v676
  %v682 = vadd.f32 %v645, %v678
  %v683 = vadd.f32 %v646, %v679
  %v684 = vld [vmem:[#allocation2] sm:$0xc]
  %v685 = vld [vmem:[#allocation2 + $0x8] sm:$0xc]
  %v686 = vld [vmem:[#allocation2 + $0x10] sm:$0xc]
  %v687 = vld [vmem:[#allocation2 + $0x18] sm:$0xc]
  %v688 = vld [vmem:[%s1] sm:$0xcc]
  %v689 = vld [vmem:[%s1 + $0x8] sm:$0xcc]
  %v692 = vunpack.c.l.b16 %v688
  %v693 = vunpack.c.h.b16 %v688
  %v694 = vunpack.c.l.b16 %v689
  %v695 = vunpack.c.h.b16 %v689
  %v696 = vpack.c.b16 %v692, %v692
  %v697 = vpack.c.b16 %v693, %v693
  %v698 = vpack.c.b16 %v694, %v694
  %v699 = vpack.c.b16 %v695, %v695
  %v700 = vrot.slane %v696, 2
  %v701 = vrot.slane %v697, 2
  %v702 = vrot.slane %v698, 2
  %v703 = vrot.slane %v699, 2
  %v705 = vsel %vm264, %v700, 0
  %v708 = vsel %vm264, %v701, 0
  %v711 = vsel %vm264, %v702, 0
  %v714 = vsel %vm264, %v703, 0
  %716 = vmatprep.subr.bf16.mxu0 %v708
  %717 = vmatpush1.bf16.msra.mxu0 %v705
  %718 = vmatprep.subr.bf16.mxu0 0
  %719 = vmatpush1.bf16.msra.mxu0 0
  %720 = vmatprep.subr.bf16.mxu0 0
  %721 = vmatpush1.bf16.msra.mxu0 0
  %722 = vmatprep.subr.bf16.mxu0 0
  %723 = vmatpush1.bf16.msra.mxu0 0
  %724 = vmatprep.subr.bf16.mxu0 0
  %725 = vmatpush1.bf16.msra.mxu0 0
  %726 = vmatprep.subr.bf16.mxu0 0
  %727 = vmatpush1.bf16.msra.mxu0 0
  %728 = vmatprep.subr.bf16.mxu0 0
  %729 = vmatpush1.bf16.msra.mxu0 0
  %730 = vmatprep.subr.bf16.mxu0 0
  %731 = vmatpush1.bf16.msra.mxu0 0
  %732 = vmatprep.subr.bf16.mxu0 0
  %733 = vmatpush1.bf16.msra.mxu0 0
  %734 = vmatprep.subr.bf16.mxu0 0
  %735 = vmatpush1.bf16.msra.mxu0 0
  %736 = vmatprep.subr.bf16.mxu0 0
  %737 = vmatpush1.bf16.msra.mxu0 0
  %738 = vmatprep.subr.bf16.mxu0 0
  %739 = vmatpush1.bf16.msra.mxu0 0
  %740 = vmatprep.subr.bf16.mxu0 0
  %741 = vmatpush1.bf16.msra.mxu0 0
  %742 = vmatprep.subr.bf16.mxu0 0
  %743 = vmatpush1.bf16.msra.mxu0 0
  %744 = vmatprep.subr.bf16.mxu0 0
  %745 = vmatpush1.bf16.msra.mxu0 0
  %746 = vmatprep.subr.bf16.mxu0 0
  %747 = vmatpush1.bf16.msra.mxu0 0
  %748 = vmatprep.mubr.bf16.mxu0 0
  %749 = vmatmul.mubr.bf16.gmra.mrb[0].mxu0 %v256
  %v750 = vpop.f32.mrb[0].mxu0
  %v751 = vadd.f32 0.0, %v750
  %v752 = vpop.f32.mrb[0].mxu0
  %v753 = vadd.f32 0.0, %v752
  %v754 = vpop.f32.mrb[0].mxu0
  %v755 = vadd.f32 0.0, %v754
  %v756 = vpop.f32.mrb[0].mxu0
  %v757 = vadd.f32 0.0, %v756
  %758 = vmatprep.mubr.bf16.mxu0 0
  %759 = vmatmul.mubr.bf16.gmra.mrb[0].mxu0 %v259
  %v760 = vpop.f32.mrb[0].mxu0
  %v761 = vadd.f32 0.0, %v760
  %v762 = vpop.f32.mrb[0].mxu0
  %v763 = vadd.f32 0.0, %v762
  %v764 = vpop.f32.mrb[0].mxu0
  %v765 = vadd.f32 0.0, %v764
  %v766 = vpop.f32.mrb[0].mxu0
  %v767 = vadd.f32 0.0, %v766
  %768 = vmatprep.mubr.bf16.mxu0 0
  %769 = vmatmul.mubr.bf16.gmra.mrb[0].mxu0 %v262
  %v770 = vpop.f32.mrb[0].mxu0
  %v771 = vadd.f32 0.0, %v770
  %v772 = vpop.f32.mrb[0].mxu0
  %v773 = vadd.f32 0.0, %v772
  %v774 = vpop.f32.mrb[0].mxu0
  %v775 = vpop.f32.mrb[0].mxu0
  %776 = vdwg.mxu0
  %777 = vmatprep.subr.bf16.mxu0 %v714
  %778 = vmatpush1.bf16.msra.mxu0 %v711
  %779 = vmatprep.subr.bf16.mxu0 0
  %780 = vmatpush1.bf16.msra.mxu0 0
  %781 = vmatprep.subr.bf16.mxu0 0
  %782 = vmatpush1.bf16.msra.mxu0 0
  %783 = vmatprep.subr.bf16.mxu0 0
  %784 = vmatpush1.bf16.msra.mxu0 0
  %785 = vmatprep.subr.bf16.mxu0 0
  %786 = vmatpush1.bf16.msra.mxu0 0
  %787 = vmatprep.subr.bf16.mxu0 0
  %788 = vmatpush1.bf16.msra.mxu0 0
  %789 = vmatprep.subr.bf16.mxu0 0
  %790 = vmatpush1.bf16.msra.mxu0 0
  %791 = vmatprep.subr.bf16.mxu0 0
  %792 = vmatpush1.bf16.msra.mxu0 0
  %793 = vmatprep.subr.bf16.mxu0 0
  %794 = vmatpush1.bf16.msra.mxu0 0
  %795 = vmatprep.subr.bf16.mxu0 0
  %796 = vmatpush1.bf16.msra.mxu0 0
  %797 = vmatprep.subr.bf16.mxu0 0
  %798 = vmatpush1.bf16.msra.mxu0 0
  %799 = vmatprep.subr.bf16.mxu0 0
  %800 = vmatpush1.bf16.msra.mxu0 0
  %801 = vmatprep.subr.bf16.mxu0 0
  %802 = vmatpush1.bf16.msra.mxu0 0
  %803 = vmatprep.subr.bf16.mxu0 0
  %804 = vmatpush1.bf16.msra.mxu0 0
  %805 = vmatprep.subr.bf16.mxu0 0
  %806 = vmatpush1.bf16.msra.mxu0 0
  %807 = vmatprep.subr.bf16.mxu0 0
  %808 = vmatpush1.bf16.msra.mxu0 0
  %809 = vmatprep.mubr.bf16.mxu0 0
  %810 = vmatmul.mubr.bf16.gmra.mrb[0].mxu0 %v256
  %v811 = vpop.f32.mrb[0].mxu0
  %v812 = vadd.f32 0.0, %v811
  %v813 = vpop.f32.mrb[0].mxu0
  %v814 = vadd.f32 0.0, %v813
  %v815 = vpop.f32.mrb[0].mxu0
  %v816 = vadd.f32 0.0, %v815
  %v817 = vpop.f32.mrb[0].mxu0
  %v818 = vadd.f32 0.0, %v817
  %819 = vmatprep.mubr.bf16.mxu0 0
  %820 = vmatmul.mubr.bf16.gmra.mrb[0].mxu0 %v259
  %v821 = vpop.f32.mrb[0].mxu0
  %v822 = vadd.f32 0.0, %v821
  %v823 = vpop.f32.mrb[0].mxu0
  %v824 = vadd.f32 0.0, %v823
  %v825 = vpop.f32.mrb[0].mxu0
  %v826 = vadd.f32 0.0, %v825
  %v827 = vpop.f32.mrb[0].mxu0
  %v828 = vadd.f32 0.0, %v827
  %829 = vmatprep.mubr.bf16.mxu0 0
  %830 = vmatmul.mubr.bf16.gmra.mrb[0].mxu0 %v262
  %v831 = vpop.f32.mrb[0].mxu0
  %v832 = vadd.f32 0.0, %v831
  %v833 = vpop.f32.mrb[0].mxu0
  %v834 = vadd.f32 0.0, %v833
  %v835 = vpop.f32.mrb[0].mxu0
  %v836 = vpop.f32.mrb[0].mxu0
  %837 = vdwg.mxu0
  %v842 = vrot.slane %v684, 2
  %v843 = vrot.slane %v685, 2
  %v844 = vrot.slane %v686, 2
  %v845 = vrot.slane %v687, 2
  %v847 = vsel %vm264, %v842, 0
  %v850 = vsel %vm264, %v843, 0
  %v853 = vsel %vm264, %v844, 0
  %v856 = vsel %vm264, %v845, 0
  %858 = vmatprep.subr.bf16.mxu0 %v850
  %859 = vmatpush1.bf16.msra.mxu0 %v847
  %860 = vmatprep.subr.bf16.mxu0 0
  %861 = vmatpush1.bf16.msra.mxu0 0
  %862 = vmatprep.subr.bf16.mxu0 0
  %863 = vmatpush1.bf16.msra.mxu0 0
  %864 = vmatprep.subr.bf16.mxu0 0
  %865 = vmatpush1.bf16.msra.mxu0 0
  %866 = vmatprep.subr.bf16.mxu0 0
  %867 = vmatpush1.bf16.msra.mxu0 0
  %868 = vmatprep.subr.bf16.mxu0 0
  %869 = vmatpush1.bf16.msra.mxu0 0
  %870 = vmatprep.subr.bf16.mxu0 0
  %871 = vmatpush1.bf16.msra.mxu0 0
  %872 = vmatprep.subr.bf16.mxu0 0
  %873 = vmatpush1.bf16.msra.mxu0 0
  %874 = vmatprep.subr.bf16.mxu0 0
  %875 = vmatpush1.bf16.msra.mxu0 0
  %876 = vmatprep.subr.bf16.mxu0 0
  %877 = vmatpush1.bf16.msra.mxu0 0
  %878 = vmatprep.subr.bf16.mxu0 0
  %879 = vmatpush1.bf16.msra.mxu0 0
  %880 = vmatprep.subr.bf16.mxu0 0
  %881 = vmatpush1.bf16.msra.mxu0 0
  %882 = vmatprep.subr.bf16.mxu0 0
  %883 = vmatpush1.bf16.msra.mxu0 0
  %884 = vmatprep.subr.bf16.mxu0 0
  %885 = vmatpush1.bf16.msra.mxu0 0
  %886 = vmatprep.subr.bf16.mxu0 0
  %887 = vmatpush1.bf16.msra.mxu0 0
  %888 = vmatprep.subr.bf16.mxu0 0
  %889 = vmatpush1.bf16.msra.mxu0 0
  %890 = vmatprep.mubr.bf16.mxu0 0
  %891 = vmatmul.mubr.bf16.gmra.mrb[0].mxu0 %v413
  %v892 = vpop.f32.mrb[0].mxu0
  %v893 = vadd.f32 %v751, %v892
  %v894 = vpop.f32.mrb[0].mxu0
  %v895 = vadd.f32 %v753, %v894
  %v896 = vpop.f32.mrb[0].mxu0
  %v897 = vadd.f32 %v755, %v896
  %v898 = vpop.f32.mrb[0].mxu0
  %v899 = vadd.f32 %v757, %v898
  %900 = vmatprep.mubr.bf16.mxu0 0
  %901 = vmatmul.mubr.bf16.gmra.mrb[0].mxu0 %v416
  %v902 = vpop.f32.mrb[0].mxu0
  %v903 = vadd.f32 %v761, %v902
  %v904 = vpop.f32.mrb[0].mxu0
  %v905 = vadd.f32 %v763, %v904
  %v906 = vpop.f32.mrb[0].mxu0
  %v907 = vadd.f32 %v765, %v906
  %v908 = vpop.f32.mrb[0].mxu0
  %v909 = vadd.f32 %v767, %v908
  %910 = vmatprep.mubr.bf16.mxu0 0
  %911 = vmatmul.mubr.bf16.gmra.mrb[0].mxu0 %v419
  %v912 = vpop.f32.mrb[0].mxu0
  %v913 = vadd.f32 %v771, %v912
  %v914 = vpop.f32.mrb[0].mxu0
  %v915 = vadd.f32 %v773, %v914
  %v916 = vpop.f32.mrb[0].mxu0
  %v917 = vpop.f32.mrb[0].mxu0
  %918 = vdwg.mxu0
  %919 = vmatprep.subr.bf16.mxu0 %v856
  %920 = vmatpush1.bf16.msra.mxu0 %v853
  %921 = vmatprep.subr.bf16.mxu0 0
  %922 = vmatpush1.bf16.msra.mxu0 0
  %923 = vmatprep.subr.bf16.mxu0 0
  %924 = vmatpush1.bf16.msra.mxu0 0
  %925 = vmatprep.subr.bf16.mxu0 0
  %926 = vmatpush1.bf16.msra.mxu0 0
  %927 = vmatprep.subr.bf16.mxu0 0
  %928 = vmatpush1.bf16.msra.mxu0 0
  %929 = vmatprep.subr.bf16.mxu0 0
  %930 = vmatpush1.bf16.msra.mxu0 0
  %931 = vmatprep.subr.bf16.mxu0 0
  %932 = vmatpush1.bf16.msra.mxu0 0
  %933 = vmatprep.subr.bf16.mxu0 0
  %934 = vmatpush1.bf16.msra.mxu0 0
  %935 = vmatprep.subr.bf16.mxu0 0
  %936 = vmatpush1.bf16.msra.mxu0 0
  %937 = vmatprep.subr.bf16.mxu0 0
  %938 = vmatpush1.bf16.msra.mxu0 0
  %939 = vmatprep.subr.bf16.mxu0 0
  %940 = vmatpush1.bf16.msra.mxu0 0
  %941 = vmatprep.subr.bf16.mxu0 0
  %942 = vmatpush1.bf16.msra.mxu0 0
  %943 = vmatprep.subr.bf16.mxu0 0
  %944 = vmatpush1.bf16.msra.mxu0 0
  %945 = vmatprep.subr.bf16.mxu0 0
  %946 = vmatpush1.bf16.msra.mxu0 0
  %947 = vmatprep.subr.bf16.mxu0 0
  %948 = vmatpush1.bf16.msra.mxu0 0
  %949 = vmatprep.subr.bf16.mxu0 0
  %950 = vmatpush1.bf16.msra.mxu0 0
  %951 = vmatprep.mubr.bf16.mxu0 0
  %952 = vmatmul.mubr.bf16.gmra.mrb[0].mxu0 %v413
  %v953 = vpop.f32.mrb[0].mxu0
  %v954 = vadd.f32 %v812, %v953
  %v955 = vpop.f32.mrb[0].mxu0
  %v956 = vadd.f32 %v814, %v955
  %v957 = vpop.f32.mrb[0].mxu0
  %v958 = vadd.f32 %v816, %v957
  %v959 = vpop.f32.mrb[0].mxu0
  %v960 = vadd.f32 %v818, %v959
  %961 = vmatprep.mubr.bf16.mxu0 0
  %962 = vmatmul.mubr.bf16.gmra.mrb[0].mxu0 %v416
  %v963 = vpop.f32.mrb[0].mxu0
  %v964 = vadd.f32 %v822, %v963
  %v965 = vpop.f32.mrb[0].mxu0
  %v966 = vadd.f32 %v824, %v965
  %v967 = vpop.f32.mrb[0].mxu0
  %v968 = vadd.f32 %v826, %v967
  %v969 = vpop.f32.mrb[0].mxu0
  %v970 = vadd.f32 %v828, %v969
  %971 = vmatprep.mubr.bf16.mxu0 0
  %972 = vmatmul.mubr.bf16.gmra.mrb[0].mxu0 %v419
  %v973 = vpop.f32.mrb[0].mxu0
  %v974 = vadd.f32 %v832, %v973
  %v975 = vpop.f32.mrb[0].mxu0
  %v976 = vadd.f32 %v834, %v975
  %v977 = vpop.f32.mrb[0].mxu0
  %v978 = vpop.f32.mrb[0].mxu0
  %979 = vdwg.mxu0
  %980 = vst [vmem:[#allocation4] sm:$0xff] %v893
  %981 = vst [vmem:[#allocation4 + $0x8] sm:$0xff] %v895
  %982 = vst [vmem:[#allocation4 + $0x10] sm:$0xff] %v954
  %983 = vst [vmem:[#allocation4 + $0x18] sm:$0xff] %v956
  %984 = vst [vmem:[#allocation4 + $0x20] sm:$0xff] %v897
  %985 = vst [vmem:[#allocation4 + $0x28] sm:$0xff] %v899
  %986 = vst [vmem:[#allocation4 + $0x30] sm:$0xff] %v958
  %987 = vst [vmem:[#allocation4 + $0x38] sm:$0xff] %v960
  %988 = vst [vmem:[#allocation4 + $0x40] sm:$0xff] %v903
  %989 = vst [vmem:[#allocation4 + $0x48] sm:$0xff] %v905
  %990 = vst [vmem:[#allocation4 + $0x50] sm:$0xff] %v964
  %991 = vst [vmem:[#allocation4 + $0x58] sm:$0xff] %v966
  %992 = vst [vmem:[#allocation4 + $0x60] sm:$0xff] %v907
  %993 = vst [vmem:[#allocation4 + $0x68] sm:$0xff] %v909
  %994 = vst [vmem:[#allocation4 + $0x70] sm:$0xff] %v968
  %995 = vst [vmem:[#allocation4 + $0x78] sm:$0xff] %v970
  %996 = vst [vmem:[#allocation4 + $0x80] sm:$0xf] %v913
  %997 = vst [vmem:[#allocation4 + $0x88] sm:$0xf] %v915
  %998 = vst [vmem:[#allocation4 + $0x90] sm:$0xf] %v974
  %999 = vst [vmem:[#allocation4 + $0x98] sm:$0xf] %v976
  %v1000 = vld [vmem:[#allocation4] sm:$0xf]
  %v1001 = vld [vmem:[#allocation4 + $0x8] sm:$0xf]
  %v1002 = vld [vmem:[#allocation4 + $0x10] sm:$0xf]
  %v1006 = vrot.slane %v1000, 4
  %v1007 = vrot.slane %v1001, 4
  %v1008 = vrot.slane %v1002, 4
  %1009 = vrot.lane.b32.xlu0 %v1006, 1
  %v1010 = vpop.permute.xlu0 %1009
  %1011 = vrot.lane.b32.xlu0 %v1007, 1
  %v1012 = vpop.permute.xlu0 %1011
  %1013 = vrot.lane.b32.xlu0 %v1008, 1
  %v1014 = vpop.permute.xlu0 %1013
  %vm1015 = vcmask 7168
  %v1016 = vsel %vm1015, %v1010, %v1012
  %v1017 = vsel %vm1015, %v1012, %v1014
  %v1020 = vadd.f32 %v663, %v1016
  %v1021 = vadd.f32 %v664, %v1017
  %v1022 = vld [vmem:[#allocation4 + $0x8] sm:$0xf0]
  %v1023 = vld [vmem:[#allocation4 + $0x10] sm:$0xf0]
  %v1026 = vrot.slane %v1022, 4
  %v1027 = vrot.slane %v1023, 4
  %v1030 = vadd.f32 %v682, %v1026
  %v1031 = vadd.f32 %v683, %v1027
  %v1032 = vld [vmem:[#allocation4 + $0x28] sm:$0xf]
  %v1033 = vld [vmem:[#allocation4 + $0x30] sm:$0xf]
  %v1036 = vrot.slane %v1032, 4
  %v1037 = vrot.slane %v1033, 4
  %v1040 = vadd.f32 %v1020, %v1036
  %v1041 = vadd.f32 %v1021, %v1037
  %v1042 = vld [vmem:[#allocation4 + $0x20] sm:$0xf0]
  %v1043 = vld [vmem:[#allocation4 + $0x28] sm:$0xf0]
  %v1044 = vld [vmem:[#allocation4 + $0x30] sm:$0xf0]
  %v1048 = vrot.slane %v1042, 4
  %v1049 = vrot.slane %v1043, 4
  %v1050 = vrot.slane %v1044, 4
  %1051 = vrot.lane.b32.xlu0 %v1048, 1
  %v1052 = vpop.permute.xlu0 %1051
  %1053 = vrot.lane.b32.xlu0 %v1049, 1
  %v1054 = vpop.permute.xlu0 %1053
  %1055 = vrot.lane.b32.xlu0 %v1050, 1
  %v1056 = vpop.permute.xlu0 %1055
  %v1057 = vsel %vm1015, %v1052, %v1054
  %v1058 = vsel %vm1015, %v1054, %v1056
  %v1061 = vadd.f32 %v608, %v1057
  %v1062 = vadd.f32 %v609, %v1058
  %v1063 = vld [vmem:[#allocation4 + $0x48] sm:$0xf]
  %v1064 = vld [vmem:[#allocation4 + $0x50] sm:$0xf]
  %v1067 = vrot.slane %v1063, 4
  %v1068 = vrot.slane %v1064, 4
  %v1071 = vadd.f32 %v626, %v1067
  %v1072 = vadd.f32 %v627, %v1068
  %v1073 = vld [vmem:[#allocation4 + $0x48] sm:$0xf0]
  %v1074 = vld [vmem:[#allocation4 + $0x50] sm:$0xf0]
  %v1077 = vrot.slane %v1073, 4
  %v1078 = vrot.slane %v1074, 4
  %v1081 = vadd.f32 %v1061, %v1077
  %v1082 = vadd.f32 %v1062, %v1078
  %v1083 = vld [vmem:[#allocation4 + $0x68] sm:$0xf]
  %v1084 = vld [vmem:[#allocation4 + $0x70] sm:$0xf]
  %v1085 = vld [vmem:[#allocation4 + $0x78] sm:$0xf]
  %v1089 = vrot.slane %v1083, 4
  %v1090 = vrot.slane %v1084, 4
  %v1091 = vrot.slane %v1085, 4
  %1092 = vrot.lane.b32.xlu0 %v1089, 119
  %v1093 = vpop.permute.xlu0 %1092
  %1094 = vrot.lane.b32.xlu0 %v1090, 119
  %v1095 = vpop.permute.xlu0 %1094
  %1096 = vrot.lane.b32.xlu0 %v1091, 119
  %v1097 = vpop.permute.xlu0 %1096
  %vm1098 = vcmask 973824
  %v1099 = vsel %vm1098, %v1093, %v1095
  %v1100 = vsel %vm1098, %v1095, %v1097
  %v1103 = vadd.f32 %v1040, %v1099
  %v1104 = vadd.f32 %v1041, %v1100
  %v1105 = vld [vmem:[#allocation4 + $0x68] sm:$0xf0]
  %v1106 = vld [vmem:[#allocation4 + $0x70] sm:$0xf0]
  %v1107 = vld [vmem:[#allocation4 + $0x78] sm:$0xf0]
  %v1111 = vrot.slane %v1105, 4
  %v1112 = vrot.slane %v1106, 4
  %v1113 = vrot.slane %v1107, 4
  %1114 = vrot.lane.b32.xlu0 %v1111, 118
  %v1115 = vpop.permute.xlu0 %1114
  %1116 = vrot.lane.b32.xlu0 %v1112, 118
  %v1117 = vpop.permute.xlu0 %1116
  %1118 = vrot.lane.b32.xlu0 %v1113, 118
  %v1119 = vpop.permute.xlu0 %1118
  %v1120 = vsel %vm640, %v1115, %v1117
  %v1121 = vsel %vm640, %v1117, %v1119
  %v1124 = vadd.f32 %v1030, %v1120
  %v1125 = vadd.f32 %v1031, %v1121
  %v1126 = vld [vmem:[#allocation4 + $0x88] sm:$0xf]
  %v1127 = vld [vmem:[#allocation4 + $0x90] sm:$0xf]
  %v1128 = vld [vmem:[#allocation4 + $0x98] sm:$0xf]
  %v1132 = vrot.slane %v1126, 4
  %v1133 = vrot.slane %v1127, 4
  %v1134 = vrot.slane %v1128, 4
  %1135 = vrot.lane.b32.xlu0 %v1132, 118
  %v1136 = vpop.permute.xlu0 %1135
  %1137 = vrot.lane.b32.xlu0 %v1133, 118
  %v1138 = vpop.permute.xlu0 %1137
  %1139 = vrot.lane.b32.xlu0 %v1134, 118
  %v1140 = vpop.permute.xlu0 %1139
  %v1141 = vsel %vm640, %v1136, %v1138
  %v1142 = vsel %vm640, %v1138, %v1140
  %v1145 = vadd.f32 %v1103, %v1141
  %v1146 = vadd.f32 %v1104, %v1142
  %v1147 = vld [vmem:[#allocation2] sm:$0x30]
  %v1148 = vld [vmem:[#allocation2 + $0x8] sm:$0x30]
  %v1149 = vld [vmem:[#allocation2 + $0x10] sm:$0x30]
  %v1150 = vld [vmem:[#allocation2 + $0x18] sm:$0x30]
  %v1151 = vld [vmem:[%s1 + $0x10] sm:$0x33]
  %v1152 = vld [vmem:[%s1 + $0x18] sm:$0x33]
  %v1155 = vunpack.c.l.b16 %v1151
  %v1156 = vunpack.c.h.b16 %v1151
  %v1157 = vunpack.c.l.b16 %v1152
  %v1158 = vunpack.c.h.b16 %v1152
  %v1159 = vpack.c.b16 %v1155, %v1155
  %v1160 = vpack.c.b16 %v1156, %v1156
  %v1161 = vpack.c.b16 %v1157, %v1157
  %v1162 = vpack.c.b16 %v1158, %v1158
  %v1164 = vsel %vm264, %v1159, 0
  %v1167 = vsel %vm264, %v1160, 0
  %v1170 = vsel %vm264, %v1161, 0
  %v1173 = vsel %vm264, %v1162, 0
  %1175 = vmatprep.subr.bf16.mxu0 %v1167
  %1176 = vmatpush1.bf16.msra.mxu0 %v1164
  %1177 = vmatprep.subr.bf16.mxu0 0
  %1178 = vmatpush1.bf16.msra.mxu0 0
  %1179 = vmatprep.subr.bf16.mxu0 0
  %1180 = vmatpush1.bf16.msra.mxu0 0
  %1181 = vmatprep.subr.bf16.mxu0 0
  %1182 = vmatpush1.bf16.msra.mxu0 0
  %1183 = vmatprep.subr.bf16.mxu0 0
  %1184 = vmatpush1.bf16.msra.mxu0 0
  %1185 = vmatprep.subr.bf16.mxu0 0
  %1186 = vmatpush1.bf16.msra.mxu0 0
  %1187 = vmatprep.subr.bf16.mxu0 0
  %1188 = vmatpush1.bf16.msra.mxu0 0
  %1189 = vmatprep.subr.bf16.mxu0 0
  %1190 = vmatpush1.bf16.msra.mxu0 0
  %1191 = vmatprep.subr.bf16.mxu0 0
  %1192 = vmatpush1.bf16.msra.mxu0 0
  %1193 = vmatprep.subr.bf16.mxu0 0
  %1194 = vmatpush1.bf16.msra.mxu0 0
  %1195 = vmatprep.subr.bf16.mxu0 0
  %1196 = vmatpush1.bf16.msra.mxu0 0
  %1197 = vmatprep.subr.bf16.mxu0 0
  %1198 = vmatpush1.bf16.msra.mxu0 0
  %1199 = vmatprep.subr.bf16.mxu0 0
  %1200 = vmatpush1.bf16.msra.mxu0 0
  %1201 = vmatprep.subr.bf16.mxu0 0
  %1202 = vmatpush1.bf16.msra.mxu0 0
  %1203 = vmatprep.subr.bf16.mxu0 0
  %1204 = vmatpush1.bf16.msra.mxu0 0
  %1205 = vmatprep.subr.bf16.mxu0 0
  %1206 = vmatpush1.bf16.msra.mxu0 0
  %1207 = vmatprep.mubr.bf16.mxu0 0
  %1208 = vmatmul.mubr.bf16.gmra.mrb[0].mxu0 %v256
  %v1209 = vpop.f32.mrb[0].mxu0
  %v1210 = vadd.f32 0.0, %v1209
  %v1211 = vpop.f32.mrb[0].mxu0
  %v1212 = vadd.f32 0.0, %v1211
  %v1213 = vpop.f32.mrb[0].mxu0
  %v1214 = vadd.f32 0.0, %v1213
  %v1215 = vpop.f32.mrb[0].mxu0
  %v1216 = vadd.f32 0.0, %v1215
  %1217 = vmatprep.mubr.bf16.mxu0 0
  %1218 = vmatmul.mubr.bf16.gmra.mrb[0].mxu0 %v259
  %v1219 = vpop.f32.mrb[0].mxu0
  %v1220 = vadd.f32 0.0, %v1219
  %v1221 = vpop.f32.mrb[0].mxu0
  %v1222 = vadd.f32 0.0, %v1221
  %v1223 = vpop.f32.mrb[0].mxu0
  %v1224 = vadd.f32 0.0, %v1223
  %v1225 = vpop.f32.mrb[0].mxu0
  %v1226 = vadd.f32 0.0, %v1225
  %1227 = vmatprep.mubr.bf16.mxu0 0
  %1228 = vmatmul.mubr.bf16.gmra.mrb[0].mxu0 %v262
  %v1229 = vpop.f32.mrb[0].mxu0
  %v1230 = vadd.f32 0.0, %v1229
  %v1231 = vpop.f32.mrb[0].mxu0
  %v1232 = vadd.f32 0.0, %v1231
  %v1233 = vpop.f32.mrb[0].mxu0
  %v1234 = vpop.f32.mrb[0].mxu0
  %1235 = vdwg.mxu0
  %1236 = vmatprep.subr.bf16.mxu0 %v1173
  %1237 = vmatpush1.bf16.msra.mxu0 %v1170
  %1238 = vmatprep.subr.bf16.mxu0 0
  %1239 = vmatpush1.bf16.msra.mxu0 0
  %1240 = vmatprep.subr.bf16.mxu0 0
  %1241 = vmatpush1.bf16.msra.mxu0 0
  %1242 = vmatprep.subr.bf16.mxu0 0
  %1243 = vmatpush1.bf16.msra.mxu0 0
  %1244 = vmatprep.subr.bf16.mxu0 0
  %1245 = vmatpush1.bf16.msra.mxu0 0
  %1246 = vmatprep.subr.bf16.mxu0 0
  %1247 = vmatpush1.bf16.msra.mxu0 0
  %1248 = vmatprep.subr.bf16.mxu0 0
  %1249 = vmatpush1.bf16.msra.mxu0 0
  %1250 = vmatprep.subr.bf16.mxu0 0
  %1251 = vmatpush1.bf16.msra.mxu0 0
  %1252 = vmatprep.subr.bf16.mxu0 0
  %1253 = vmatpush1.bf16.msra.mxu0 0
  %1254 = vmatprep.subr.bf16.mxu0 0
  %1255 = vmatpush1.bf16.msra.mxu0 0
  %1256 = vmatprep.subr.bf16.mxu0 0
  %1257 = vmatpush1.bf16.msra.mxu0 0
  %1258 = vmatprep.subr.bf16.mxu0 0
  %1259 = vmatpush1.bf16.msra.mxu0 0
  %1260 = vmatprep.subr.bf16.mxu0 0
  %1261 = vmatpush1.bf16.msra.mxu0 0
  %1262 = vmatprep.subr.bf16.mxu0 0
  %1263 = vmatpush1.bf16.msra.mxu0 0
  %1264 = vmatprep.subr.bf16.mxu0 0
  %1265 = vmatpush1.bf16.msra.mxu0 0
  %1266 = vmatprep.subr.bf16.mxu0 0
  %1267 = vmatpush1.bf16.msra.mxu0 0
  %1268 = vmatprep.mubr.bf16.mxu0 0
  %1269 = vmatmul.mubr.bf16.gmra.mrb[0].mxu0 %v256
  %v1270 = vpop.f32.mrb[0].mxu0
  %v1271 = vadd.f32 0.0, %v1270
  %v1272 = vpop.f32.mrb[0].mxu0
  %v1273 = vadd.f32 0.0, %v1272
  %v1274 = vpop.f32.mrb[0].mxu0
  %v1275 = vadd.f32 0.0, %v1274
  %v1276 = vpop.f32.mrb[0].mxu0
  %v1277 = vadd.f32 0.0, %v1276
  %1278 = vmatprep.mubr.bf16.mxu0 0
  %1279 = vmatmul.mubr.bf16.gmra.mrb[0].mxu0 %v259
  %v1280 = vpop.f32.mrb[0].mxu0
  %v1281 = vadd.f32 0.0, %v1280
  %v1282 = vpop.f32.mrb[0].mxu0
  %v1283 = vadd.f32 0.0, %v1282
  %v1284 = vpop.f32.mrb[0].mxu0
  %v1285 = vadd.f32 0.0, %v1284
  %v1286 = vpop.f32.mrb[0].mxu0
  %v1287 = vadd.f32 0.0, %v1286
  %1288 = vmatprep.mubr.bf16.mxu0 0
  %1289 = vmatmul.mubr.bf16.gmra.mrb[0].mxu0 %v262
  %v1290 = vpop.f32.mrb[0].mxu0
  %v1291 = vadd.f32 0.0, %v1290
  %v1292 = vpop.f32.mrb[0].mxu0
  %v1293 = vadd.f32 0.0, %v1292
  %v1294 = vpop.f32.mrb[0].mxu0
  %v1295 = vpop.f32.mrb[0].mxu0
  %1296 = vdwg.mxu0
  %v1301 = vrot.slane %v1147, 4
  %v1302 = vrot.slane %v1148, 4
  %v1303 = vrot.slane %v1149, 4
  %v1304 = vrot.slane %v1150, 4
  %v1306 = vsel %vm264, %v1301, 0
  %v1309 = vsel %vm264, %v1302, 0
  %v1312 = vsel %vm264, %v1303, 0
  %v1315 = vsel %vm264, %v1304, 0
  %1317 = vmatprep.subr.bf16.mxu0 %v1309
  %1318 = vmatpush1.bf16.msra.mxu0 %v1306
  %1319 = vmatprep.subr.bf16.mxu0 0
  %1320 = vmatpush1.bf16.msra.mxu0 0
  %1321 = vmatprep.subr.bf16.mxu0 0
  %1322 = vmatpush1.bf16.msra.mxu0 0
  %1323 = vmatprep.subr.bf16.mxu0 0
  %1324 = vmatpush1.bf16.msra.mxu0 0
  %1325 = vmatprep.subr.bf16.mxu0 0
  %1326 = vmatpush1.bf16.msra.mxu0 0
  %1327 = vmatprep.subr.bf16.mxu0 0
  %1328 = vmatpush1.bf16.msra.mxu0 0
  %1329 = vmatprep.subr.bf16.mxu0 0
  %1330 = vmatpush1.bf16.msra.mxu0 0
  %1331 = vmatprep.subr.bf16.mxu0 0
  %1332 = vmatpush1.bf16.msra.mxu0 0
  %1333 = vmatprep.subr.bf16.mxu0 0
  %1334 = vmatpush1.bf16.msra.mxu0 0
  %1335 = vmatprep.subr.bf16.mxu0 0
  %1336 = vmatpush1.bf16.msra.mxu0 0
  %1337 = vmatprep.subr.bf16.mxu0 0
  %1338 = vmatpush1.bf16.msra.mxu0 0
  %1339 = vmatprep.subr.bf16.mxu0 0
  %1340 = vmatpush1.bf16.msra.mxu0 0
  %1341 = vmatprep.subr.bf16.mxu0 0
  %1342 = vmatpush1.bf16.msra.mxu0 0
  %1343 = vmatprep.subr.bf16.mxu0 0
  %1344 = vmatpush1.bf16.msra.mxu0 0
  %1345 = vmatprep.subr.bf16.mxu0 0
  %1346 = vmatpush1.bf16.msra.mxu0 0
  %1347 = vmatprep.subr.bf16.mxu0 0
  %1348 = vmatpush1.bf16.msra.mxu0 0
  %1349 = vmatprep.mubr.bf16.mxu0 0
  %1350 = vmatmul.mubr.bf16.gmra.mrb[0].mxu0 %v413
  %v1351 = vpop.f32.mrb[0].mxu0
  %v1352 = vadd.f32 %v1210, %v1351
  %v1353 = vpop.f32.mrb[0].mxu0
  %v1354 = vadd.f32 %v1212, %v1353
  %v1355 = vpop.f32.mrb[0].mxu0
  %v1356 = vadd.f32 %v1214, %v1355
  %v1357 = vpop.f32.mrb[0].mxu0
  %v1358 = vadd.f32 %v1216, %v1357
  %1359 = vmatprep.mubr.bf16.mxu0 0
  %1360 = vmatmul.mubr.bf16.gmra.mrb[0].mxu0 %v416
  %v1361 = vpop.f32.mrb[0].mxu0
  %v1362 = vadd.f32 %v1220, %v1361
  %v1363 = vpop.f32.mrb[0].mxu0
  %v1364 = vadd.f32 %v1222, %v1363
  %v1365 = vpop.f32.mrb[0].mxu0
  %v1366 = vadd.f32 %v1224, %v1365
  %v1367 = vpop.f32.mrb[0].mxu0
  %v1368 = vadd.f32 %v1226, %v1367
  %1369 = vmatprep.mubr.bf16.mxu0 0
  %1370 = vmatmul.mubr.bf16.gmra.mrb[0].mxu0 %v419
  %v1371 = vpop.f32.mrb[0].mxu0
  %v1372 = vadd.f32 %v1230, %v1371
  %v1373 = vpop.f32.mrb[0].mxu0
  %v1374 = vadd.f32 %v1232, %v1373
  %v1375 = vpop.f32.mrb[0].mxu0
  %v1376 = vpop.f32.mrb[0].mxu0
  %1377 = vdwg.mxu0
  %1378 = vmatprep.subr.bf16.mxu0 %v1315
  %1379 = vmatpush1.bf16.msra.mxu0 %v1312
  %1380 = vmatprep.subr.bf16.mxu0 0
  %1381 = vmatpush1.bf16.msra.mxu0 0
  %1382 = vmatprep.subr.bf16.mxu0 0
  %1383 = vmatpush1.bf16.msra.mxu0 0
  %1384 = vmatprep.subr.bf16.mxu0 0
  %1385 = vmatpush1.bf16.msra.mxu0 0
  %1386 = vmatprep.subr.bf16.mxu0 0
  %1387 = vmatpush1.bf16.msra.mxu0 0
  %1388 = vmatprep.subr.bf16.mxu0 0
  %1389 = vmatpush1.bf16.msra.mxu0 0
  %1390 = vmatprep.subr.bf16.mxu0 0
  %1391 = vmatpush1.bf16.msra.mxu0 0
  %1392 = vmatprep.subr.bf16.mxu0 0
  %1393 = vmatpush1.bf16.msra.mxu0 0
  %1394 = vmatprep.subr.bf16.mxu0 0
  %1395 = vmatpush1.bf16.msra.mxu0 0
  %1396 = vmatprep.subr.bf16.mxu0 0
  %1397 = vmatpush1.bf16.msra.mxu0 0
  %1398 = vmatprep.subr.bf16.mxu0 0
  %1399 = vmatpush1.bf16.msra.mxu0 0
  %1400 = vmatprep.subr.bf16.mxu0 0
  %1401 = vmatpush1.bf16.msra.mxu0 0
  %1402 = vmatprep.subr.bf16.mxu0 0
  %1403 = vmatpush1.bf16.msra.mxu0 0
  %1404 = vmatprep.subr.bf16.mxu0 0
  %1405 = vmatpush1.bf16.msra.mxu0 0
  %1406 = vmatprep.subr.bf16.mxu0 0
  %1407 = vmatpush1.bf16.msra.mxu0 0
  %1408 = vmatprep.subr.bf16.mxu0 0
  %1409 = vmatpush1.bf16.msra.mxu0 0
  %1410 = vmatprep.mubr.bf16.mxu0 0
  %1411 = vmatmul.mubr.bf16.gmra.mrb[0].mxu0 %v413
  %v1412 = vpop.f32.mrb[0].mxu0
  %v1413 = vadd.f32 %v1271, %v1412
  %v1414 = vpop.f32.mrb[0].mxu0
  %v1415 = vadd.f32 %v1273, %v1414
  %v1416 = vpop.f32.mrb[0].mxu0
  %v1417 = vadd.f32 %v1275, %v1416
  %v1418 = vpop.f32.mrb[0].mxu0
  %v1419 = vadd.f32 %v1277, %v1418
  %1420 = vmatprep.mubr.bf16.mxu0 0
  %1421 = vmatmul.mubr.bf16.gmra.mrb[0].mxu0 %v416
  %v1422 = vpop.f32.mrb[0].mxu0
  %v1423 = vadd.f32 %v1281, %v1422
  %v1424 = vpop.f32.mrb[0].mxu0
  %v1425 = vadd.f32 %v1283, %v1424
  %v1426 = vpop.f32.mrb[0].mxu0
  %v1427 = vadd.f32 %v1285, %v1426
  %v1428 = vpop.f32.mrb[0].mxu0
  %v1429 = vadd.f32 %v1287, %v1428
  %1430 = vmatprep.mubr.bf16.mxu0 0
  %1431 = vmatmul.mubr.bf16.gmra.mrb[0].mxu0 %v419
  %v1432 = vpop.f32.mrb[0].mxu0
  %v1433 = vadd.f32 %v1291, %v1432
  %v1434 = vpop.f32.mrb[0].mxu0
  %v1435 = vadd.f32 %v1293, %v1434
  %v1436 = vpop.f32.mrb[0].mxu0
  %v1437 = vpop.f32.mrb[0].mxu0
  %1438 = vdwg.mxu0
  %1439 = vst [vmem:[#allocation4] sm:$0xff] %v1352
  %1440 = vst [vmem:[#allocation4 + $0x8] sm:$0xff] %v1354
  %1441 = vst [vmem:[#allocation4 + $0x10] sm:$0xff] %v1413
  %1442 = vst [vmem:[#allocation4 + $0x18] sm:$0xff] %v1415
  %1443 = vst [vmem:[#allocation4 + $0x20] sm:$0xff] %v1356
  %1444 = vst [vmem:[#allocation4 + $0x28] sm:$0xff] %v1358
  %1445 = vst [vmem:[#allocation4 + $0x30] sm:$0xff] %v1417
  %1446 = vst [vmem:[#allocation4 + $0x38] sm:$0xff] %v1419
  %1447 = vst [vmem:[#allocation4 + $0x40] sm:$0xff] %v1362
  %1448 = vst [vmem:[#allocation4 + $0x48] sm:$0xff] %v1364
  %1449 = vst [vmem:[#allocation4 + $0x50] sm:$0xff] %v1423
  %1450 = vst [vmem:[#allocation4 + $0x58] sm:$0xff] %v1425
  %1451 = vst [vmem:[#allocation4 + $0x60] sm:$0xff] %v1366
  %1452 = vst [vmem:[#allocation4 + $0x68] sm:$0xff] %v1368
  %1453 = vst [vmem:[#allocation4 + $0x70] sm:$0xff] %v1427
  %1454 = vst [vmem:[#allocation4 + $0x78] sm:$0xff] %v1429
  %1455 = vst [vmem:[#allocation4 + $0x80] sm:$0xf] %v1372
  %1456 = vst [vmem:[#allocation4 + $0x88] sm:$0xf] %v1374
  %1457 = vst [vmem:[#allocation4 + $0x90] sm:$0xf] %v1433
  %1458 = vst [vmem:[#allocation4 + $0x98] sm:$0xf] %v1435
  %v1459 = vld [vmem:[#allocation4] sm:$0xf]
  %v1460 = vld [vmem:[#allocation4 + $0x8] sm:$0xf]
  %v1461 = vld [vmem:[#allocation4 + $0x10] sm:$0xf]
  %v1465 = vrot.slane %v1459, 4
  %v1466 = vrot.slane %v1460, 4
  %v1467 = vrot.slane %v1461, 4
  %1468 = vrot.lane.b32.xlu0 %v1465, 10
  %v1469 = vpop.permute.xlu0 %1468
  %1470 = vrot.lane.b32.xlu0 %v1466, 10
  %v1471 = vpop.permute.xlu0 %1470
  %1472 = vrot.lane.b32.xlu0 %v1467, 10
  %v1473 = vpop.permute.xlu0 %1472
  %vm1474 = vcmask 80896
  %v1475 = vsel %vm1474, %v1469, %v1471
  %v1476 = vsel %vm1474, %v1471, %v1473
  %v1479 = vadd.f32 %v1071, %v1475
  %v1480 = vadd.f32 %v1072, %v1476
  %v1481 = vld [vmem:[#allocation4] sm:$0xf0]
  %v1482 = vld [vmem:[#allocation4 + $0x8] sm:$0xf0]
  %v1483 = vld [vmem:[#allocation4 + $0x10] sm:$0xf0]
  %v1487 = vrot.slane %v1481, 4
  %v1488 = vrot.slane %v1482, 4
  %v1489 = vrot.slane %v1483, 4
  %1490 = vrot.lane.b32.xlu0 %v1487, 10
  %v1491 = vpop.permute.xlu0 %1490
  %1492 = vrot.lane.b32.xlu0 %v1488, 10
  %v1493 = vpop.permute.xlu0 %1492
  %1494 = vrot.lane.b32.xlu0 %v1489, 10
  %v1495 = vpop.permute.xlu0 %1494
  %v1496 = vsel %vm1474, %v1491, %v1493
  %v1497 = vsel %vm1474, %v1493, %v1495
  %v1500 = vadd.f32 %v1081, %v1496
  %v1501 = vadd.f32 %v1082, %v1497
  %v1502 = vld [vmem:[#allocation4 + $0x20] sm:$0xf]
  %v1503 = vld [vmem:[#allocation4 + $0x28] sm:$0xf]
  %v1504 = vld [vmem:[#allocation4 + $0x30] sm:$0xf]
  %v1508 = vrot.slane %v1502, 4
  %v1509 = vrot.slane %v1503, 4
  %v1510 = vrot.slane %v1504, 4
  %1511 = vrot.lane.b32.xlu0 %v1508, 9
  %v1512 = vpop.permute.xlu0 %1511
  %1513 = vrot.lane.b32.xlu0 %v1509, 9
  %v1514 = vpop.permute.xlu0 %1513
  %1515 = vrot.lane.b32.xlu0 %v1510, 9
  %v1516 = vpop.permute.xlu0 %1515
  %vm1517 = vcmask 72704
  %v1518 = vsel %vm1517, %v1512, %v1514
  %v1519 = vsel %vm1517, %v1514, %v1516
  %v1522 = vadd.f32 %v1479, %v1518
  %v1523 = vadd.f32 %v1480, %v1519
  %v1524 = vld [vmem:[#allocation4 + $0x28] sm:$0xf0]
  %v1525 = vld [vmem:[#allocation4 + $0x30] sm:$0xf0]
  %v1528 = vrot.slane %v1524, 4
  %v1529 = vrot.slane %v1525, 4
  %v1532 = vadd.f32 %v1124, %v1528
  %v1533 = vadd.f32 %v1125, %v1529
  %v1534 = vld [vmem:[#allocation4 + $0x48] sm:$0xf]
  %v1535 = vld [vmem:[#allocation4 + $0x50] sm:$0xf]
  %v1538 = vrot.slane %v1534, 4
  %v1539 = vrot.slane %v1535, 4
  %v1542 = vadd.f32 %v1145, %v1538
  %v1543 = vadd.f32 %v1146, %v1539
  %v1544 = vld [vmem:[#allocation4 + $0x48] sm:$0xf0]
  %v1545 = vld [vmem:[#allocation4 + $0x50] sm:$0xf0]
  %v1546 = vld [vmem:[#allocation4 + $0x58] sm:$0xf0]
  %v1550 = vrot.slane %v1544, 4
  %v1551 = vrot.slane %v1545, 4
  %v1552 = vrot.slane %v1546, 4
  %1553 = vrot.lane.b32.xlu0 %v1550, 127
  %v1554 = vpop.permute.xlu0 %1553
  %1555 = vrot.lane.b32.xlu0 %v1551, 127
  %v1556 = vpop.permute.xlu0 %1555
  %1557 = vrot.lane.b32.xlu0 %v1552, 127
  %v1558 = vpop.permute.xlu0 %1557
  %v1559 = vsel %vm595, %v1554, %v1556
  %v1560 = vsel %vm595, %v1556, %v1558
  %v1563 = vadd.f32 %v1532, %v1559
  %v1564 = vadd.f32 %v1533, %v1560
  %v1565 = vld [vmem:[#allocation4 + $0x68] sm:$0xf]
  %v1566 = vld [vmem:[#allocation4 + $0x70] sm:$0xf]
  %v1569 = vrot.slane %v1565, 4
  %v1570 = vrot.slane %v1566, 4
  %v1573 = vadd.f32 %v1522, %v1569
  %v1574 = vadd.f32 %v1523, %v1570
  %v1575 = vld [vmem:[#allocation4 + $0x68] sm:$0xf0]
  %v1576 = vld [vmem:[#allocation4 + $0x70] sm:$0xf0]
  %v1579 = vrot.slane %v1575, 4
  %v1580 = vrot.slane %v1576, 4
  %v1583 = vadd.f32 %v1500, %v1579
  %v1584 = vadd.f32 %v1501, %v1580
  %v1585 = vld [vmem:[#allocation4 + $0x88] sm:$0xf]
  %v1586 = vld [vmem:[#allocation4 + $0x90] sm:$0xf]
  %v1587 = vld [vmem:[#allocation4 + $0x98] sm:$0xf]
  %v1591 = vrot.slane %v1585, 4
  %v1592 = vrot.slane %v1586, 4
  %v1593 = vrot.slane %v1587, 4
  %1594 = vrot.lane.b32.xlu0 %v1591, 127
  %v1595 = vpop.permute.xlu0 %1594
  %1596 = vrot.lane.b32.xlu0 %v1592, 127
  %v1597 = vpop.permute.xlu0 %1596
  %1598 = vrot.lane.b32.xlu0 %v1593, 127
  %v1599 = vpop.permute.xlu0 %1598
  %v1600 = vsel %vm595, %v1595, %v1597
  %v1601 = vsel %vm595, %v1597, %v1599
  %v1604 = vadd.f32 %v1573, %v1600
  %v1605 = vadd.f32 %v1574, %v1601
  %v1606 = vld [vmem:[#allocation2] sm:$0xc0]
  %v1607 = vld [vmem:[#allocation2 + $0x8] sm:$0xc0]
  %v1608 = vld [vmem:[#allocation2 + $0x10] sm:$0xc0]
  %v1609 = vld [vmem:[#allocation2 + $0x18] sm:$0xc0]
  %v1610 = vld [vmem:[%s1 + $0x10] sm:$0xcc]
  %v1611 = vld [vmem:[%s1 + $0x18] sm:$0xcc]
  %v1614 = vunpack.c.l.b16 %v1610
  %v1615 = vunpack.c.h.b16 %v1610
  %v1616 = vunpack.c.l.b16 %v1611
  %v1617 = vunpack.c.h.b16 %v1611
  %v1618 = vpack.c.b16 %v1614, %v1614
  %v1619 = vpack.c.b16 %v1615, %v1615
  %v1620 = vpack.c.b16 %v1616, %v1616
  %v1621 = vpack.c.b16 %v1617, %v1617
  %v1622 = vrot.slane %v1618, 2
  %v1623 = vrot.slane %v1619, 2
  %v1624 = vrot.slane %v1620, 2
  %v1625 = vrot.slane %v1621, 2
  %v1627 = vsel %vm264, %v1622, 0
  %v1630 = vsel %vm264, %v1623, 0
  %v1633 = vsel %vm264, %v1624, 0
  %v1636 = vsel %vm264, %v1625, 0
  %1638 = vmatprep.subr.bf16.mxu0 %v1630
  %1639 = vmatpush1.bf16.msra.mxu0 %v1627
  %1640 = vmatprep.subr.bf16.mxu0 0
  %1641 = vmatpush1.bf16.msra.mxu0 0
  %1642 = vmatprep.subr.bf16.mxu0 0
  %1643 = vmatpush1.bf16.msra.mxu0 0
  %1644 = vmatprep.subr.bf16.mxu0 0
  %1645 = vmatpush1.bf16.msra.mxu0 0
  %1646 = vmatprep.subr.bf16.mxu0 0
  %1647 = vmatpush1.bf16.msra.mxu0 0
  %1648 = vmatprep.subr.bf16.mxu0 0
  %1649 = vmatpush1.bf16.msra.mxu0 0
  %1650 = vmatprep.subr.bf16.mxu0 0
  %1651 = vmatpush1.bf16.msra.mxu0 0
  %1652 = vmatprep.subr.bf16.mxu0 0
  %1653 = vmatpush1.bf16.msra.mxu0 0
  %1654 = vmatprep.subr.bf16.mxu0 0
  %1655 = vmatpush1.bf16.msra.mxu0 0
  %1656 = vmatprep.subr.bf16.mxu0 0
  %1657 = vmatpush1.bf16.msra.mxu0 0
  %1658 = vmatprep.subr.bf16.mxu0 0
  %1659 = vmatpush1.bf16.msra.mxu0 0
  %1660 = vmatprep.subr.bf16.mxu0 0
  %1661 = vmatpush1.bf16.msra.mxu0 0
  %1662 = vmatprep.subr.bf16.mxu0 0
  %1663 = vmatpush1.bf16.msra.mxu0 0
  %1664 = vmatprep.subr.bf16.mxu0 0
  %1665 = vmatpush1.bf16.msra.mxu0 0
  %1666 = vmatprep.subr.bf16.mxu0 0
  %1667 = vmatpush1.bf16.msra.mxu0 0
  %1668 = vmatprep.subr.bf16.mxu0 0
  %1669 = vmatpush1.bf16.msra.mxu0 0
  %1670 = vmatprep.mubr.bf16.mxu0 0
  %1671 = vmatmul.mubr.bf16.gmra.mrb[0].mxu0 %v256
  %v1672 = vpop.f32.mrb[0].mxu0
  %v1673 = vadd.f32 0.0, %v1672
  %v1674 = vpop.f32.mrb[0].mxu0
  %v1675 = vadd.f32 0.0, %v1674
  %v1676 = vpop.f32.mrb[0].mxu0
  %v1677 = vadd.f32 0.0, %v1676
  %v1678 = vpop.f32.mrb[0].mxu0
  %v1679 = vadd.f32 0.0, %v1678
  %1680 = vmatprep.mubr.bf16.mxu0 0
  %1681 = vmatmul.mubr.bf16.gmra.mrb[0].mxu0 %v259
  %v1682 = vpop.f32.mrb[0].mxu0
  %v1683 = vadd.f32 0.0, %v1682
  %v1684 = vpop.f32.mrb[0].mxu0
  %v1685 = vadd.f32 0.0, %v1684
  %v1686 = vpop.f32.mrb[0].mxu0
  %v1687 = vadd.f32 0.0, %v1686
  %v1688 = vpop.f32.mrb[0].mxu0
  %v1689 = vadd.f32 0.0, %v1688
  %1690 = vmatprep.mubr.bf16.mxu0 0
  %1691 = vmatmul.mubr.bf16.gmra.mrb[0].mxu0 %v262
  %v1692 = vpop.f32.mrb[0].mxu0
  %v1693 = vadd.f32 0.0, %v1692
  %v1694 = vpop.f32.mrb[0].mxu0
  %v1695 = vadd.f32 0.0, %v1694
  %v1696 = vpop.f32.mrb[0].mxu0
  %v1697 = vpop.f32.mrb[0].mxu0
  %1698 = vdwg.mxu0
  %1699 = vmatprep.subr.bf16.mxu0 %v1636
  %1700 = vmatpush1.bf16.msra.mxu0 %v1633
  %1701 = vmatprep.subr.bf16.mxu0 0
  %1702 = vmatpush1.bf16.msra.mxu0 0
  %1703 = vmatprep.subr.bf16.mxu0 0
  %1704 = vmatpush1.bf16.msra.mxu0 0
  %1705 = vmatprep.subr.bf16.mxu0 0
  %1706 = vmatpush1.bf16.msra.mxu0 0
  %1707 = vmatprep.subr.bf16.mxu0 0
  %1708 = vmatpush1.bf16.msra.mxu0 0
  %1709 = vmatprep.subr.bf16.mxu0 0
  %1710 = vmatpush1.bf16.msra.mxu0 0
  %1711 = vmatprep.subr.bf16.mxu0 0
  %1712 = vmatpush1.bf16.msra.mxu0 0
  %1713 = vmatprep.subr.bf16.mxu0 0
  %1714 = vmatpush1.bf16.msra.mxu0 0
  %1715 = vmatprep.subr.bf16.mxu0 0
  %1716 = vmatpush1.bf16.msra.mxu0 0
  %1717 = vmatprep.subr.bf16.mxu0 0
  %1718 = vmatpush1.bf16.msra.mxu0 0
  %1719 = vmatprep.subr.bf16.mxu0 0
  %1720 = vmatpush1.bf16.msra.mxu0 0
  %1721 = vmatprep.subr.bf16.mxu0 0
  %1722 = vmatpush1.bf16.msra.mxu0 0
  %1723 = vmatprep.subr.bf16.mxu0 0
  %1724 = vmatpush1.bf16.msra.mxu0 0
  %1725 = vmatprep.subr.bf16.mxu0 0
  %1726 = vmatpush1.bf16.msra.mxu0 0
  %1727 = vmatprep.subr.bf16.mxu0 0
  %1728 = vmatpush1.bf16.msra.mxu0 0
  %1729 = vmatprep.subr.bf16.mxu0 0
  %1730 = vmatpush1.bf16.msra.mxu0 0
  %1731 = vmatprep.mubr.bf16.mxu0 0
  %1732 = vmatmul.mubr.bf16.gmra.mrb[0].mxu0 %v256
  %v1733 = vpop.f32.mrb[0].mxu0
  %v1734 = vadd.f32 0.0, %v1733
  %v1735 = vpop.f32.mrb[0].mxu0
  %v1736 = vadd.f32 0.0, %v1735
  %v1737 = vpop.f32.mrb[0].mxu0
  %v1738 = vadd.f32 0.0, %v1737
  %v1739 = vpop.f32.mrb[0].mxu0
  %v1740 = vadd.f32 0.0, %v1739
  %1741 = vmatprep.mubr.bf16.mxu0 0
  %1742 = vmatmul.mubr.bf16.gmra.mrb[0].mxu0 %v259
  %v1743 = vpop.f32.mrb[0].mxu0
  %v1744 = vadd.f32 0.0, %v1743
  %v1745 = vpop.f32.mrb[0].mxu0
  %v1746 = vadd.f32 0.0, %v1745
  %v1747 = vpop.f32.mrb[0].mxu0
  %v1748 = vadd.f32 0.0, %v1747
  %v1749 = vpop.f32.mrb[0].mxu0
  %v1750 = vadd.f32 0.0, %v1749
  %1751 = vmatprep.mubr.bf16.mxu0 0
  %1752 = vmatmul.mubr.bf16.gmra.mrb[0].mxu0 %v262
  %v1753 = vpop.f32.mrb[0].mxu0
  %v1754 = vadd.f32 0.0, %v1753
  %v1755 = vpop.f32.mrb[0].mxu0
  %v1756 = vadd.f32 0.0, %v1755
  %v1757 = vpop.f32.mrb[0].mxu0
  %v1758 = vpop.f32.mrb[0].mxu0
  %1759 = vdwg.mxu0
  %v1764 = vrot.slane %v1606, 6
  %v1765 = vrot.slane %v1607, 6
  %v1766 = vrot.slane %v1608, 6
  %v1767 = vrot.slane %v1609, 6
  %v1769 = vsel %vm264, %v1764, 0
  %v1772 = vsel %vm264, %v1765, 0
  %v1775 = vsel %vm264, %v1766, 0
  %v1778 = vsel %vm264, %v1767, 0
  %1780 = vmatprep.subr.bf16.mxu0 %v1772
  %1781 = vmatpush1.bf16.msra.mxu0 %v1769
  %1782 = vmatprep.subr.bf16.mxu0 0
  %1783 = vmatpush1.bf16.msra.mxu0 0
  %1784 = vmatprep.subr.bf16.mxu0 0
  %1785 = vmatpush1.bf16.msra.mxu0 0
  %1786 = vmatprep.subr.bf16.mxu0 0
  %1787 = vmatpush1.bf16.msra.mxu0 0
  %1788 = vmatprep.subr.bf16.mxu0 0
  %1789 = vmatpush1.bf16.msra.mxu0 0
  %1790 = vmatprep.subr.bf16.mxu0 0
  %1791 = vmatpush1.bf16.msra.mxu0 0
  %1792 = vmatprep.subr.bf16.mxu0 0
  %1793 = vmatpush1.bf16.msra.mxu0 0
  %1794 = vmatprep.subr.bf16.mxu0 0
  %1795 = vmatpush1.bf16.msra.mxu0 0
  %1796 = vmatprep.subr.bf16.mxu0 0
  %1797 = vmatpush1.bf16.msra.mxu0 0
  %1798 = vmatprep.subr.bf16.mxu0 0
  %1799 = vmatpush1.bf16.msra.mxu0 0
  %1800 = vmatprep.subr.bf16.mxu0 0
  %1801 = vmatpush1.bf16.msra.mxu0 0
  %1802 = vmatprep.subr.bf16.mxu0 0
  %1803 = vmatpush1.bf16.msra.mxu0 0
  %1804 = vmatprep.subr.bf16.mxu0 0
  %1805 = vmatpush1.bf16.msra.mxu0 0
  %1806 = vmatprep.subr.bf16.mxu0 0
  %1807 = vmatpush1.bf16.msra.mxu0 0
  %1808 = vmatprep.subr.bf16.mxu0 0
  %1809 = vmatpush1.bf16.msra.mxu0 0
  %1810 = vmatprep.subr.bf16.mxu0 0
  %1811 = vmatpush1.bf16.msra.mxu0 0
  %1812 = vmatprep.mubr.bf16.mxu0 0
  %1813 = vmatmul.mubr.bf16.gmra.mrb[0].mxu0 %v413
  %v1814 = vpop.f32.mrb[0].mxu0
  %v1815 = vadd.f32 %v1673, %v1814
  %v1816 = vpop.f32.mrb[0].mxu0
  %v1817 = vadd.f32 %v1675, %v1816
  %v1818 = vpop.f32.mrb[0].mxu0
  %v1819 = vadd.f32 %v1677, %v1818
  %v1820 = vpop.f32.mrb[0].mxu0
  %v1821 = vadd.f32 %v1679, %v1820
  %1822 = vmatprep.mubr.bf16.mxu0 0
  %1823 = vmatmul.mubr.bf16.gmra.mrb[0].mxu0 %v416
  %v1824 = vpop.f32.mrb[0].mxu0
  %v1825 = vadd.f32 %v1683, %v1824
  %v1826 = vpop.f32.mrb[0].mxu0
  %v1827 = vadd.f32 %v1685, %v1826
  %v1828 = vpop.f32.mrb[0].mxu0
  %v1829 = vadd.f32 %v1687, %v1828
  %v1830 = vpop.f32.mrb[0].mxu0
  %v1831 = vadd.f32 %v1689, %v1830
  %1832 = vmatprep.mubr.bf16.mxu0 0
  %1833 = vmatmul.mubr.bf16.gmra.mrb[0].mxu0 %v419
  %v1834 = vpop.f32.mrb[0].mxu0
  %v1835 = vadd.f32 %v1693, %v1834
  %v1836 = vpop.f32.mrb[0].mxu0
  %v1837 = vadd.f32 %v1695, %v1836
  %v1838 = vpop.f32.mrb[0].mxu0
  %v1839 = vpop.f32.mrb[0].mxu0
  %1840 = vdwg.mxu0
  %1841 = vmatprep.subr.bf16.mxu0 %v1778
  %1842 = vmatpush1.bf16.msra.mxu0 %v1775
  %1843 = vmatprep.subr.bf16.mxu0 0
  %1844 = vmatpush1.bf16.msra.mxu0 0
  %1845 = vmatprep.subr.bf16.mxu0 0
  %1846 = vmatpush1.bf16.msra.mxu0 0
  %1847 = vmatprep.subr.bf16.mxu0 0
  %1848 = vmatpush1.bf16.msra.mxu0 0
  %1849 = vmatprep.subr.bf16.mxu0 0
  %1850 = vmatpush1.bf16.msra.mxu0 0
  %1851 = vmatprep.subr.bf16.mxu0 0
  %1852 = vmatpush1.bf16.msra.mxu0 0
  %1853 = vmatprep.subr.bf16.mxu0 0
  %1854 = vmatpush1.bf16.msra.mxu0 0
  %1855 = vmatprep.subr.bf16.mxu0 0
  %1856 = vmatpush1.bf16.msra.mxu0 0
  %1857 = vmatprep.subr.bf16.mxu0 0
  %1858 = vmatpush1.bf16.msra.mxu0 0
  %1859 = vmatprep.subr.bf16.mxu0 0
  %1860 = vmatpush1.bf16.msra.mxu0 0
  %1861 = vmatprep.subr.bf16.mxu0 0
  %1862 = vmatpush1.bf16.msra.mxu0 0
  %1863 = vmatprep.subr.bf16.mxu0 0
  %1864 = vmatpush1.bf16.msra.mxu0 0
  %1865 = vmatprep.subr.bf16.mxu0 0
  %1866 = vmatpush1.bf16.msra.mxu0 0
  %1867 = vmatprep.subr.bf16.mxu0 0
  %1868 = vmatpush1.bf16.msra.mxu0 0
  %1869 = vmatprep.subr.bf16.mxu0 0
  %1870 = vmatpush1.bf16.msra.mxu0 0
  %1871 = vmatprep.subr.bf16.mxu0 0
  %1872 = vmatpush1.bf16.msra.mxu0 0
  %1873 = vmatprep.mubr.bf16.mxu0 0
  %1874 = vmatmul.mubr.bf16.gmra.mrb[0].mxu0 %v413
  %v1875 = vpop.f32.mrb[0].mxu0
  %v1876 = vadd.f32 %v1734, %v1875
  %v1877 = vpop.f32.mrb[0].mxu0
  %v1878 = vadd.f32 %v1736, %v1877
  %v1879 = vpop.f32.mrb[0].mxu0
  %v1880 = vadd.f32 %v1738, %v1879
  %v1881 = vpop.f32.mrb[0].mxu0
  %v1882 = vadd.f32 %v1740, %v1881
  %1883 = vmatprep.mubr.bf16.mxu0 0
  %1884 = vmatmul.mubr.bf16.gmra.mrb[0].mxu0 %v416
  %v1885 = vpop.f32.mrb[0].mxu0
  %v1886 = vadd.f32 %v1744, %v1885
  %v1887 = vpop.f32.mrb[0].mxu0
  %v1888 = vadd.f32 %v1746, %v1887
  %v1889 = vpop.f32.mrb[0].mxu0
  %v1890 = vadd.f32 %v1748, %v1889
  %v1891 = vpop.f32.mrb[0].mxu0
  %v1892 = vadd.f32 %v1750, %v1891
  %1893 = vmatprep.mubr.bf16.mxu0 0
  %1894 = vmatmul.mubr.bf16.gmra.mrb[0].mxu0 %v419
  %v1895 = vpop.f32.mrb[0].mxu0
  %v1896 = vadd.f32 %v1754, %v1895
  %v1897 = vpop.f32.mrb[0].mxu0
  %v1898 = vadd.f32 %v1756, %v1897
  %v1899 = vpop.f32.mrb[0].mxu0
  %v1900 = vpop.f32.mrb[0].mxu0
  %1901 = vdwg.mxu0
  %1902 = vst [vmem:[#allocation4] sm:$0xff] %v1815
  %1903 = vst [vmem:[#allocation4 + $0x8] sm:$0xff] %v1817
  %1904 = vst [vmem:[#allocation4 + $0x10] sm:$0xff] %v1876
  %1905 = vst [vmem:[#allocation4 + $0x18] sm:$0xff] %v1878
  %1906 = vst [vmem:[#allocation4 + $0x20] sm:$0xff] %v1819
  %1907 = vst [vmem:[#allocation4 + $0x28] sm:$0xff] %v1821
  %1908 = vst [vmem:[#allocation4 + $0x30] sm:$0xff] %v1880
  %1909 = vst [vmem:[#allocation4 + $0x38] sm:$0xff] %v1882
  %1910 = vst [vmem:[#allocation4 + $0x40] sm:$0xff] %v1825
  %1911 = vst [vmem:[#allocation4 + $0x48] sm:$0xff] %v1827
  %1912 = vst [vmem:[#allocation4 + $0x50] sm:$0xff] %v1886
  %1913 = vst [vmem:[#allocation4 + $0x58] sm:$0xff] %v1888
  %1914 = vst [vmem:[#allocation4 + $0x60] sm:$0xff] %v1829
  %1915 = vst [vmem:[#allocation4 + $0x68] sm:$0xff] %v1831
  %1916 = vst [vmem:[#allocation4 + $0x70] sm:$0xff] %v1890
  %1917 = vst [vmem:[#allocation4 + $0x78] sm:$0xff] %v1892
  %1918 = vst [vmem:[#allocation4 + $0x80] sm:$0xf] %v1835
  %1919 = vst [vmem:[#allocation4 + $0x88] sm:$0xf] %v1837
  %1920 = vst [vmem:[#allocation4 + $0x90] sm:$0xf] %v1896
  %1921 = vst [vmem:[#allocation4 + $0x98] sm:$0xf] %v1898
  %v1922 = vld [vmem:[#allocation4] sm:$0xf]
  %v1923 = vld [vmem:[#allocation4 + $0x8] sm:$0xf]
  %v1924 = vld [vmem:[#allocation4 + $0x10] sm:$0xf]
  %1928 = vrot.lane.b32.xlu0 %v1922, 11
  %v1929 = vpop.permute.xlu0 %1928
  %1930 = vrot.lane.b32.xlu0 %v1923, 11
  %v1931 = vpop.permute.xlu0 %1930
  %1932 = vrot.lane.b32.xlu0 %v1924, 11
  %v1933 = vpop.permute.xlu0 %1932
  %vm1934 = vcmask 89088
  %v1935 = vsel %vm1934, %v1929, %v1931
  %v1936 = vsel %vm1934, %v1931, %v1933
  %v1939 = vadd.f32 %v1583, %v1935
  %v1940 = vadd.f32 %v1584, %v1936
  %v1941 = vld [vmem:[#allocation4] sm:$0xf0]
  %v1942 = vld [vmem:[#allocation4 + $0x8] sm:$0xf0]
  %v1943 = vld [vmem:[#allocation4 + $0x10] sm:$0xf0]
  %1947 = vrot.lane.b32.xlu0 %v1941, 10
  %v1948 = vpop.permute.xlu0 %1947
  %1949 = vrot.lane.b32.xlu0 %v1942, 10
  %v1950 = vpop.permute.xlu0 %1949
  %1951 = vrot.lane.b32.xlu0 %v1943, 10
  %v1952 = vpop.permute.xlu0 %1951
  %v1953 = vsel %vm1474, %v1948, %v1950
  %v1954 = vsel %vm1474, %v1950, %v1952
  %v1957 = vadd.f32 %v1604, %v1953
  %v1958 = vadd.f32 %v1605, %v1954
  %v1959 = vld [vmem:[#allocation4 + $0x20] sm:$0xf]
  %v1960 = vld [vmem:[#allocation4 + $0x28] sm:$0xf]
  %v1961 = vld [vmem:[#allocation4 + $0x30] sm:$0xf]
  %1965 = vrot.lane.b32.xlu0 %v1959, 10
  %v1966 = vpop.permute.xlu0 %1965
  %1967 = vrot.lane.b32.xlu0 %v1960, 10
  %v1968 = vpop.permute.xlu0 %1967
  %1969 = vrot.lane.b32.xlu0 %v1961, 10
  %v1970 = vpop.permute.xlu0 %1969
  %v1971 = vsel %vm1474, %v1966, %v1968
  %v1972 = vsel %vm1474, %v1968, %v1970
  %v1975 = vadd.f32 %v1939, %v1971
  %v1976 = vadd.f32 %v1940, %v1972
  %v1977 = vld [vmem:[#allocation4 + $0x20] sm:$0xf0]
  %v1978 = vld [vmem:[#allocation4 + $0x28] sm:$0xf0]
  %v1979 = vld [vmem:[#allocation4 + $0x30] sm:$0xf0]
  %1983 = vrot.lane.b32.xlu0 %v1977, 1
  %v1984 = vpop.permute.xlu0 %1983
  %1985 = vrot.lane.b32.xlu0 %v1978, 1
  %v1986 = vpop.permute.xlu0 %1985
  %1987 = vrot.lane.b32.xlu0 %v1979, 1
  %v1988 = vpop.permute.xlu0 %1987
  %v1989 = vsel %vm1015, %v1984, %v1986
  %v1990 = vsel %vm1015, %v1986, %v1988
  %v1993 = vadd.f32 %v1542, %v1989
  %v1994 = vadd.f32 %v1543, %v1990
  %v1995 = vld [vmem:[#allocation4 + $0x48] sm:$0xf]
  %v1996 = vld [vmem:[#allocation4 + $0x50] sm:$0xf]
  %v1997 = vadd.f32 %v1563, %v1995
  %v1998 = vadd.f32 %v1564, %v1996
  %v1999 = vld [vmem:[#allocation4 + $0x48] sm:$0xf0]
  %v2000 = vld [vmem:[#allocation4 + $0x50] sm:$0xf0]
  %v2001 = vadd.f32 %v1993, %v1999
  %v2002 = vadd.f32 %v1994, %v2000
  %v2003 = vld [vmem:[#allocation4 + $0x60] sm:$0xf]
  %v2004 = vld [vmem:[#allocation4 + $0x68] sm:$0xf]
  %v2005 = vld [vmem:[#allocation4 + $0x70] sm:$0xf]
  %2009 = vrot.lane.b32.xlu0 %v2003, 1
  %v2010 = vpop.permute.xlu0 %2009
  %2011 = vrot.lane.b32.xlu0 %v2004, 1
  %v2012 = vpop.permute.xlu0 %2011
  %2013 = vrot.lane.b32.xlu0 %v2005, 1
  %v2014 = vpop.permute.xlu0 %2013
  %v2015 = vsel %vm1015, %v2010, %v2012
  %v2016 = vsel %vm1015, %v2012, %v2014
  %v2019 = vadd.f32 %v1975, %v2015
  %v2020 = vadd.f32 %v1976, %v2016
  %v2021 = vld [vmem:[#allocation4 + $0x68] sm:$0xf0]
  %v2022 = vld [vmem:[#allocation4 + $0x70] sm:$0xf0]
  %v2023 = vadd.f32 %v1957, %v2021
  %v2024 = vadd.f32 %v1958, %v2022
  %v2025 = vld [vmem:[#allocation4 + $0x88] sm:$0xf]
  %v2026 = vld [vmem:[#allocation4 + $0x90] sm:$0xf]
  %v2027 = vadd.f32 %v2019, %v2025
  %v2028 = vadd.f32 %v2020, %v2026
  %v2030 = vlaneseq
  %v2031 = vshrl.u32 %v2030, 7
  %v2032 = vsub.s32 0, %v2031
  %v2033 = vrot.slane %v43, %v2032
  %v2034 = vlaneseq
  %v2035 = vshrl.u32 %v2034, 7
  %v2036 = vsub.s32 1, %v2035
  %v2037 = vrot.slane %v43, %v2036
  %v2040 = vmul.f32 %v2027, %v2033
  %v2041 = vmul.f32 %v2028, %v2037
  %v2042 = vsel %vm108, %v2040, 0.0
  %v2043 = vsel %vm108, %v2041, 0.0
  %v2044 = vadd.f32 %v2042, %v2043
  %2045 = vadd.xlane.f32.xlu0 %v2044
  %v2046 = vpop.xlane.xlu0 %2045
  %v2047 = vadd.f32 %v2046, 0.0
  %v2048 = vmul.f32 %v2023, %v2033
  %v2049 = vmul.f32 %v2024, %v2037
  %vm2050 = vcmask 1047556
  %v2051 = vsel %vm2050, %v2048, 0.0
  %v2052 = vsel %vm2050, %v2049, 0.0
  %v2053 = vadd.f32 %v2051, %v2052
  %2054 = vadd.xlane.f32.xlu0 %v2053
  %v2055 = vpop.xlane.xlu0 %2054
  %v2057 = vrot.slane %v2055, 4
  %v2059 = vadd.f32 %v2047, %v2057
  %v2060 = vmul.f32 %v2001, %v2033
  %v2061 = vmul.f32 %v2002, %v2037
  %v2062 = vsel %vm2050, %v2060, 0.0
  %v2063 = vsel %vm2050, %v2061, 0.0
  %v2064 = vadd.f32 %v2062, %v2063
  %2065 = vadd.xlane.f32.xlu0 %v2064
  %v2066 = vpop.xlane.xlu0 %2065
  %v2068 = vrot.slane %v2066, 4
  %v2070 = vadd.f32 %v2059, %v2068
  %v2071 = vmul.f32 %v1997, %v2033
  %v2072 = vmul.f32 %v1998, %v2037
  %v2073 = vsel %vm108, %v2071, 0.0
  %v2074 = vsel %vm108, %v2072, 0.0
  %v2075 = vadd.f32 %v2073, %v2074
  %2076 = vadd.xlane.f32.xlu0 %v2075
  %v2077 = vpop.xlane.xlu0 %2076
  %v2078 = vadd.f32 %v2070, %v2077
  %v2079 = vmul.f32 %v2078, 0.001953125
  %2081 = vset.pattern.permute.xlu0 0
  %2082 = vperm.xlu0 %2081, %v2079
  %v2083 = vpop.permute.xlu0 %2082
  %v2085 = vsub.f32 %v2027, %v2083
  %v2086 = vsub.f32 %v2028, %v2083
  %v2087 = vmul.f32 %v2085, %v2033
  %v2088 = vmul.f32 %v2086, %v2037
  %v2089 = vrot.slane %v2083, 4
  %v2091 = vsub.f32 %v2023, %v2089
  %v2092 = vsub.f32 %v2024, %v2089
  %v2093 = vmul.f32 %v2091, %v2033
  %v2094 = vmul.f32 %v2092, %v2037
  %v2095 = vsub.f32 %v2001, %v2089
  %v2096 = vsub.f32 %v2002, %v2089
  %v2097 = vmul.f32 %v2095, %v2033
  %v2098 = vmul.f32 %v2096, %v2037
  %v2099 = vsub.f32 %v1997, %v2083
  %v2100 = vsub.f32 %v1998, %v2083
  %v2101 = vmul.f32 %v2099, %v2033
  %v2102 = vmul.f32 %v2100, %v2037
  %v2103 = vmul.f32 %v2087, %v2087
  %v2104 = vmul.f32 %v2088, %v2088
  %v2105 = vsel %vm108, %v2103, 0.0
  %v2106 = vsel %vm108, %v2104, 0.0
  %v2107 = vadd.f32 %v2105, %v2106
  %2108 = vadd.xlane.f32.xlu0 %v2107
  %v2109 = vpop.xlane.xlu0 %2108
  %v2110 = vadd.f32 %v2109, 0.0
  %v2111 = vmul.f32 %v2093, %v2093
  %v2112 = vmul.f32 %v2094, %v2094
  %v2113 = vsel %vm2050, %v2111, 0.0
  %v2114 = vsel %vm2050, %v2112, 0.0
  %v2115 = vadd.f32 %v2113, %v2114
  %2116 = vadd.xlane.f32.xlu0 %v2115
  %v2117 = vpop.xlane.xlu0 %2116
  %v2119 = vrot.slane %v2117, 4
  %v2121 = vadd.f32 %v2110, %v2119
  %v2122 = vmul.f32 %v2097, %v2097
  %v2123 = vmul.f32 %v2098, %v2098
  %v2124 = vsel %vm2050, %v2122, 0.0
  %v2125 = vsel %vm2050, %v2123, 0.0
  %v2126 = vadd.f32 %v2124, %v2125
  %2127 = vadd.xlane.f32.xlu0 %v2126
  %v2128 = vpop.xlane.xlu0 %2127
  %v2130 = vrot.slane %v2128, 4
  %v2132 = vadd.f32 %v2121, %v2130
  %v2133 = vmul.f32 %v2101, %v2101
  %v2134 = vmul.f32 %v2102, %v2102
  %v2135 = vsel %vm108, %v2133, 0.0
  %v2136 = vsel %vm108, %v2134, 0.0
  %v2137 = vadd.f32 %v2135, %v2136
  %2138 = vadd.xlane.f32.xlu0 %v2137
  %v2139 = vpop.xlane.xlu0 %2138
  %v2140 = vadd.f32 %v2132, %v2139
  %v2141 = vmul.f32 %v2140, 0.001953125
  %v2142 = vld [vmem:[%s7] sm:$0xf]
  %v2143 = vadd.f32 %v2141, 1e-05
  %v2144 = vrsqrt.pop %v2143
  %v2145 = vmul.f32 %v2142, %v2144
  %v2146 = vld [vmem:[%s8] sm:$0xf]
  %2148 = vset.pattern.permute.xlu0 0
  %2149 = vperm.xlu0 %2148, %v2146
  %v2150 = vpop.permute.xlu0 %2149
  %v2152 = vmul.f32 %v2150, %v2033
  %v2153 = vmul.f32 %v2150, %v2037
  %2155 = vset.pattern.permute.xlu0 0
  %2156 = vperm.xlu0 %2155, %v2145
  %v2157 = vpop.permute.xlu0 %2156
  %v2159 = vmul.f32 %v2087, %v2157
  %v2160 = vmul.f32 %v2088, %v2157
  %v2161 = vadd.f32 %v2159, %v2152
  %v2162 = vadd.f32 %v2160, %v2153
  %v2163 = vmax.f32 %v2161, 0.0
  %v2164 = vmax.f32 %v2162, 0.0
  %v2165 = vrot.slane %v2157, 4
  %v2167 = vmul.f32 %v2093, %v2165
  %v2168 = vmul.f32 %v2094, %v2165
  %v2171 = vrot.slane %v2152, 4
  %v2172 = vrot.slane %v2153, 4
  %v2175 = vadd.f32 %v2167, %v2171
  %v2176 = vadd.f32 %v2168, %v2172
  %v2177 = vmax.f32 %v2175, 0.0
  %v2178 = vmax.f32 %v2176, 0.0
  %v2179 = vmul.f32 %v2097, %v2165
  %v2180 = vmul.f32 %v2098, %v2165
  %v2181 = vadd.f32 %v2179, %v2171
  %v2182 = vadd.f32 %v2180, %v2172
  %v2183 = vmax.f32 %v2181, 0.0
  %v2184 = vmax.f32 %v2182, 0.0
  %v2185 = vmul.f32 %v2101, %v2157
  %v2186 = vmul.f32 %v2102, %v2157
  %v2187 = vadd.f32 %v2185, %v2152
  %v2188 = vadd.f32 %v2186, %v2153
  %v2189 = vmax.f32 %v2187, 0.0
  %v2190 = vmax.f32 %v2188, 0.0
  %2191 = vst [vmem:[#allocation3] sm:$0xff] 0
  %2192 = vst [vmem:[#allocation3 + $0x8] sm:$0xff] 0
  %2193 = vst [vmem:[#allocation3 + $0x10] sm:$0xff] 0
  %2194 = vst [vmem:[#allocation3 + $0x18] sm:$0xff] 0
  %v2195 = vpack.c.bf16 %v2163, %v2163
  %v2196 = vpack.c.bf16 %v2164, %v2164
  %2197 = vst [vmem:[#allocation3 + $0x8] sm:$0x3] %v2195
  %2198 = vst [vmem:[#allocation3 + $0x10] sm:$0x3] %v2196
  %v2199 = vpack.c.bf16 %v2177, %v2177
  %v2200 = vpack.c.bf16 %v2178, %v2178
  %2201 = vst [vmem:[#allocation3 + $0x8] sm:$0xc] %v2199
  %2202 = vst [vmem:[#allocation3 + $0x10] sm:$0xc] %v2200
  %v2203 = vpack.c.bf16 %v2183, %v2183
  %v2204 = vpack.c.bf16 %v2184, %v2184
  %v2207 = vrot.slane %v2203, 6
  %v2208 = vrot.slane %v2204, 6
  %2211 = vst [vmem:[#allocation3 + $0x8] sm:$0x30] %v2207
  %2212 = vst [vmem:[#allocation3 + $0x10] sm:$0x30] %v2208
  %v2213 = vpack.c.bf16 %v2189, %v2189
  %v2214 = vpack.c.bf16 %v2190, %v2190
  %v2217 = vrot.slane %v2213, 2
  %v2218 = vrot.slane %v2214, 2
  %2221 = vst [vmem:[#allocation3 + $0x8] sm:$0xc0] %v2217
  %2222 = vst [vmem:[#allocation3 + $0x10] sm:$0xc0] %v2218
  %v2223 = vld [vmem:[%s6] sm:$0xf]
  %v2224 = vld [vmem:[%s6 + $0x4] sm:$0xf]
  %v2225 = vld [vmem:[%s6 + $0x8] sm:$0xf]
  %v2226 = vld [vmem:[%s6 + $0xc] sm:$0xf]
  %v2227 = vld [vmem:[%s6 + $0x10] sm:$0x3]
  %v2228 = vld [vmem:[#allocation3] sm:$0x3]
  %v2229 = vld [vmem:[#allocation3 + $0x8] sm:$0x3]
  %v2230 = vld [vmem:[#allocation3 + $0x10] sm:$0x3]
  %v2231 = vld [vmem:[#allocation3 + $0x18] sm:$0x3]
  %v2237 = vunpack.c.l.b16 %v2223
  %v2238 = vunpack.c.l.b16 %v2224
  %v2239 = vunpack.c.l.b16 %v2225
  %v2240 = vunpack.c.l.b16 %v2226
  %v2241 = vunpack.c.l.b16 %v2227
  %v2242 = vpack.c.b16 %v2238, %v2237
  %v2243 = vpack.c.b16 %v2240, %v2239
  %v2244 = vpack.c.b16 %v2241, %v2241
  %v2246 = vsel %vm254, %v2242, 0
  %v2249 = vsel %vm254, %v2243, 0
  %v2252 = vsel %vm254, %v2244, 0
  %v2255 = vsel %vm264, %v2228, 0
  %v2258 = vsel %vm264, %v2229, 0
  %v2261 = vsel %vm264, %v2230, 0
  %v2264 = vsel %vm264, %v2231, 0
  %2266 = vmatprep.subr.bf16.mxu0 %v2258
  %2267 = vmatpush1.bf16.msra.mxu0 %v2255
  %2268 = vmatprep.subr.bf16.mxu0 0
  %2269 = vmatpush1.bf16.msra.mxu0 0
  %2270 = vmatprep.subr.bf16.mxu0 0
  %2271 = vmatpush1.bf16.msra.mxu0 0
  %2272 = vmatprep.subr.bf16.mxu0 0
  %2273 = vmatpush1.bf16.msra.mxu0 0
  %2274 = vmatprep.subr.bf16.mxu0 0
  %2275 = vmatpush1.bf16.msra.mxu0 0
  %2276 = vmatprep.subr.bf16.mxu0 0
  %2277 = vmatpush1.bf16.msra.mxu0 0
  %2278 = vmatprep.subr.bf16.mxu0 0
  %2279 = vmatpush1.bf16.msra.mxu0 0
  %2280 = vmatprep.subr.bf16.mxu0 0
  %2281 = vmatpush1.bf16.msra.mxu0 0
  %2282 = vmatprep.subr.bf16.mxu0 0
  %2283 = vmatpush1.bf16.msra.mxu0 0
  %2284 = vmatprep.subr.bf16.mxu0 0
  %2285 = vmatpush1.bf16.msra.mxu0 0
  %2286 = vmatprep.subr.bf16.mxu0 0
  %2287 = vmatpush1.bf16.msra.mxu0 0
  %2288 = vmatprep.subr.bf16.mxu0 0
  %2289 = vmatpush1.bf16.msra.mxu0 0
  %2290 = vmatprep.subr.bf16.mxu0 0
  %2291 = vmatpush1.bf16.msra.mxu0 0
  %2292 = vmatprep.subr.bf16.mxu0 0
  %2293 = vmatpush1.bf16.msra.mxu0 0
  %2294 = vmatprep.subr.bf16.mxu0 0
  %2295 = vmatpush1.bf16.msra.mxu0 0
  %2296 = vmatprep.subr.bf16.mxu0 0
  %2297 = vmatpush1.bf16.msra.mxu0 0
  %2298 = vmatprep.mubr.bf16.mxu0 0
  %2299 = vmatmul.mubr.bf16.gmra.mrb[0].mxu0 %v2246
  %v2300 = vpop.f32.mrb[0].mxu0
  %v2301 = vadd.f32 0.0, %v2300
  %v2302 = vpop.f32.mrb[0].mxu0
  %v2303 = vadd.f32 0.0, %v2302
  %v2304 = vpop.f32.mrb[0].mxu0
  %v2305 = vadd.f32 0.0, %v2304
  %v2306 = vpop.f32.mrb[0].mxu0
  %v2307 = vadd.f32 0.0, %v2306
  %2308 = vmatprep.mubr.bf16.mxu0 0
  %2309 = vmatmul.mubr.bf16.gmra.mrb[0].mxu0 %v2249
  %v2310 = vpop.f32.mrb[0].mxu0
  %v2311 = vadd.f32 0.0, %v2310
  %v2312 = vpop.f32.mrb[0].mxu0
  %v2313 = vadd.f32 0.0, %v2312
  %v2314 = vpop.f32.mrb[0].mxu0
  %v2315 = vadd.f32 0.0, %v2314
  %v2316 = vpop.f32.mrb[0].mxu0
  %v2317 = vadd.f32 0.0, %v2316
  %2318 = vmatprep.mubr.bf16.mxu0 0
  %2319 = vmatmul.mubr.bf16.gmra.mrb[0].mxu0 %v2252
  %v2320 = vpop.f32.mrb[0].mxu0
  %v2321 = vadd.f32 0.0, %v2320
  %v2322 = vpop.f32.mrb[0].mxu0
  %v2323 = vadd.f32 0.0, %v2322
  %v2324 = vpop.f32.mrb[0].mxu0
  %v2325 = vpop.f32.mrb[0].mxu0
  %2326 = vdwg.mxu0
  %2327 = vmatprep.subr.bf16.mxu0 %v2264
  %2328 = vmatpush1.bf16.msra.mxu0 %v2261
  %2329 = vmatprep.subr.bf16.mxu0 0
  %2330 = vmatpush1.bf16.msra.mxu0 0
  %2331 = vmatprep.subr.bf16.mxu0 0
  %2332 = vmatpush1.bf16.msra.mxu0 0
  %2333 = vmatprep.subr.bf16.mxu0 0
  %2334 = vmatpush1.bf16.msra.mxu0 0
  %2335 = vmatprep.subr.bf16.mxu0 0
  %2336 = vmatpush1.bf16.msra.mxu0 0
  %2337 = vmatprep.subr.bf16.mxu0 0
  %2338 = vmatpush1.bf16.msra.mxu0 0
  %2339 = vmatprep.subr.bf16.mxu0 0
  %2340 = vmatpush1.bf16.msra.mxu0 0
  %2341 = vmatprep.subr.bf16.mxu0 0
  %2342 = vmatpush1.bf16.msra.mxu0 0
  %2343 = vmatprep.subr.bf16.mxu0 0
  %2344 = vmatpush1.bf16.msra.mxu0 0
  %2345 = vmatprep.subr.bf16.mxu0 0
  %2346 = vmatpush1.bf16.msra.mxu0 0
  %2347 = vmatprep.subr.bf16.mxu0 0
  %2348 = vmatpush1.bf16.msra.mxu0 0
  %2349 = vmatprep.subr.bf16.mxu0 0
  %2350 = vmatpush1.bf16.msra.mxu0 0
  %2351 = vmatprep.subr.bf16.mxu0 0
  %2352 = vmatpush1.bf16.msra.mxu0 0
  %2353 = vmatprep.subr.bf16.mxu0 0
  %2354 = vmatpush1.bf16.msra.mxu0 0
  %2355 = vmatprep.subr.bf16.mxu0 0
  %2356 = vmatpush1.bf16.msra.mxu0 0
  %2357 = vmatprep.subr.bf16.mxu0 0
  %2358 = vmatpush1.bf16.msra.mxu0 0
  %2359 = vmatprep.mubr.bf16.mxu0 0
  %2360 = vmatmul.mubr.bf16.gmra.mrb[0].mxu0 %v2246
  %v2361 = vpop.f32.mrb[0].mxu0
  %v2362 = vadd.f32 0.0, %v2361
  %v2363 = vpop.f32.mrb[0].mxu0
  %v2364 = vadd.f32 0.0, %v2363
  %v2365 = vpop.f32.mrb[0].mxu0
  %v2366 = vadd.f32 0.0, %v2365
  %v2367 = vpop.f32.mrb[0].mxu0
  %v2368 = vadd.f32 0.0, %v2367
  %2369 = vmatprep.mubr.bf16.mxu0 0
  %2370 = vmatmul.mubr.bf16.gmra.mrb[0].mxu0 %v2249
  %v2371 = vpop.f32.mrb[0].mxu0
  %v2372 = vadd.f32 0.0, %v2371
  %v2373 = vpop.f32.mrb[0].mxu0
  %v2374 = vadd.f32 0.0, %v2373
  %v2375 = vpop.f32.mrb[0].mxu0
  %v2376 = vadd.f32 0.0, %v2375
  %v2377 = vpop.f32.mrb[0].mxu0
  %v2378 = vadd.f32 0.0, %v2377
  %2379 = vmatprep.mubr.bf16.mxu0 0
  %2380 = vmatmul.mubr.bf16.gmra.mrb[0].mxu0 %v2252
  %v2381 = vpop.f32.mrb[0].mxu0
  %v2382 = vadd.f32 0.0, %v2381
  %v2383 = vpop.f32.mrb[0].mxu0
  %v2384 = vadd.f32 0.0, %v2383
  %v2385 = vpop.f32.mrb[0].mxu0
  %v2386 = vpop.f32.mrb[0].mxu0
  %2387 = vdwg.mxu0
  %2388 = vst [vmem:[#allocation4] sm:$0xff] %v2301
  %2389 = vst [vmem:[#allocation4 + $0x8] sm:$0xff] %v2303
  %2390 = vst [vmem:[#allocation4 + $0x10] sm:$0xff] %v2362
  %2391 = vst [vmem:[#allocation4 + $0x18] sm:$0xff] %v2364
  %2392 = vst [vmem:[#allocation4 + $0x20] sm:$0xff] %v2305
  %2393 = vst [vmem:[#allocation4 + $0x28] sm:$0xff] %v2307
  %2394 = vst [vmem:[#allocation4 + $0x30] sm:$0xff] %v2366
  %2395 = vst [vmem:[#allocation4 + $0x38] sm:$0xff] %v2368
  %2396 = vst [vmem:[#allocation4 + $0x40] sm:$0xff] %v2311
  %2397 = vst [vmem:[#allocation4 + $0x48] sm:$0xff] %v2313
  %2398 = vst [vmem:[#allocation4 + $0x50] sm:$0xff] %v2372
  %2399 = vst [vmem:[#allocation4 + $0x58] sm:$0xff] %v2374
  %2400 = vst [vmem:[#allocation4 + $0x60] sm:$0xff] %v2315
  %2401 = vst [vmem:[#allocation4 + $0x68] sm:$0xff] %v2317
  %2402 = vst [vmem:[#allocation4 + $0x70] sm:$0xff] %v2376
  %2403 = vst [vmem:[#allocation4 + $0x78] sm:$0xff] %v2378
  %2404 = vst [vmem:[#allocation4 + $0x80] sm:$0xf] %v2321
  %2405 = vst [vmem:[#allocation4 + $0x88] sm:$0xf] %v2323
  %2406 = vst [vmem:[#allocation4 + $0x90] sm:$0xf] %v2382
  %2407 = vst [vmem:[#allocation4 + $0x98] sm:$0xf] %v2384
  %v2408 = vld [vmem:[#allocation4 + $0x8] sm:$0xf]
  %v2409 = vld [vmem:[#allocation4 + $0x10] sm:$0xf]
  %v2410 = vadd.f32 %v2408, 0.0
  %v2411 = vadd.f32 %v2409, 0.0
  %v2412 = vld [vmem:[#allocation4 + $0x8] sm:$0xf0]
  %v2413 = vld [vmem:[#allocation4 + $0x10] sm:$0xf0]
  %v2414 = vadd.f32 %v2412, 0.0
  %v2415 = vadd.f32 %v2413, 0.0
  %v2416 = vld [vmem:[#allocation4 + $0x28] sm:$0xf]
  %v2417 = vld [vmem:[#allocation4 + $0x30] sm:$0xf]
  %v2418 = vld [vmem:[#allocation4 + $0x38] sm:$0xf]
  %2422 = vrot.lane.b32.xlu0 %v2416, 127
  %v2423 = vpop.permute.xlu0 %2422
  %2424 = vrot.lane.b32.xlu0 %v2417, 127
  %v2425 = vpop.permute.xlu0 %2424
  %2426 = vrot.lane.b32.xlu0 %v2418, 127
  %v2427 = vpop.permute.xlu0 %2426
  %v2428 = vsel %vm595, %v2423, %v2425
  %v2429 = vsel %vm595, %v2425, %v2427
  %v2432 = vadd.f32 %v2410, %v2428
  %v2433 = vadd.f32 %v2411, %v2429
  %v2434 = vld [vmem:[#allocation4 + $0x28] sm:$0xf0]
  %v2435 = vld [vmem:[#allocation4 + $0x30] sm:$0xf0]
  %v2436 = vadd.f32 %v2434, 0.0
  %v2437 = vadd.f32 %v2435, 0.0
  %v2438 = vld [vmem:[#allocation4 + $0x48] sm:$0xf]
  %v2439 = vld [vmem:[#allocation4 + $0x50] sm:$0xf]
  %v2440 = vadd.f32 %v2438, 0.0
  %v2441 = vadd.f32 %v2439, 0.0
  %v2442 = vld [vmem:[#allocation4 + $0x48] sm:$0xf0]
  %v2443 = vld [vmem:[#allocation4 + $0x50] sm:$0xf0]
  %v2444 = vld [vmem:[#allocation4 + $0x58] sm:$0xf0]
  %2448 = vrot.lane.b32.xlu0 %v2442, 127
  %v2449 = vpop.permute.xlu0 %2448
  %2450 = vrot.lane.b32.xlu0 %v2443, 127
  %v2451 = vpop.permute.xlu0 %2450
  %2452 = vrot.lane.b32.xlu0 %v2444, 127
  %v2453 = vpop.permute.xlu0 %2452
  %v2454 = vsel %vm595, %v2449, %v2451
  %v2455 = vsel %vm595, %v2451, %v2453
  %v2458 = vadd.f32 %v2436, %v2454
  %v2459 = vadd.f32 %v2437, %v2455
  %v2460 = vld [vmem:[#allocation4 + $0x68] sm:$0xf]
  %v2461 = vld [vmem:[#allocation4 + $0x70] sm:$0xf]
  %v2462 = vld [vmem:[#allocation4 + $0x78] sm:$0xf]
  %2466 = vrot.lane.b32.xlu0 %v2460, 118
  %v2467 = vpop.permute.xlu0 %2466
  %2468 = vrot.lane.b32.xlu0 %v2461, 118
  %v2469 = vpop.permute.xlu0 %2468
  %2470 = vrot.lane.b32.xlu0 %v2462, 118
  %v2471 = vpop.permute.xlu0 %2470
  %v2472 = vsel %vm640, %v2467, %v2469
  %v2473 = vsel %vm640, %v2469, %v2471
  %v2476 = vadd.f32 %v2432, %v2472
  %v2477 = vadd.f32 %v2433, %v2473
  %v2478 = vld [vmem:[#allocation4 + $0x68] sm:$0xf0]
  %v2479 = vld [vmem:[#allocation4 + $0x70] sm:$0xf0]
  %v2480 = vld [vmem:[#allocation4 + $0x78] sm:$0xf0]
  %2484 = vrot.lane.b32.xlu0 %v2478, 118
  %v2485 = vpop.permute.xlu0 %2484
  %2486 = vrot.lane.b32.xlu0 %v2479, 118
  %v2487 = vpop.permute.xlu0 %2486
  %2488 = vrot.lane.b32.xlu0 %v2480, 118
  %v2489 = vpop.permute.xlu0 %2488
  %v2490 = vsel %vm640, %v2485, %v2487
  %v2491 = vsel %vm640, %v2487, %v2489
  %v2494 = vadd.f32 %v2414, %v2490
  %v2495 = vadd.f32 %v2415, %v2491
  %v2496 = vld [vmem:[#allocation4 + $0x88] sm:$0xf]
  %v2497 = vld [vmem:[#allocation4 + $0x90] sm:$0xf]
  %v2498 = vld [vmem:[#allocation4 + $0x98] sm:$0xf]
  %2502 = vrot.lane.b32.xlu0 %v2496, 117
  %v2503 = vpop.permute.xlu0 %2502
  %2504 = vrot.lane.b32.xlu0 %v2497, 117
  %v2505 = vpop.permute.xlu0 %2504
  %2506 = vrot.lane.b32.xlu0 %v2498, 117
  %v2507 = vpop.permute.xlu0 %2506
  %v2508 = vsel %vm677, %v2503, %v2505
  %v2509 = vsel %vm677, %v2505, %v2507
  %v2512 = vadd.f32 %v2476, %v2508
  %v2513 = vadd.f32 %v2477, %v2509
  %v2514 = vld [vmem:[#allocation3] sm:$0xc]
  %v2515 = vld [vmem:[#allocation3 + $0x8] sm:$0xc]
  %v2516 = vld [vmem:[#allocation3 + $0x10] sm:$0xc]
  %v2517 = vld [vmem:[#allocation3 + $0x18] sm:$0xc]
  %v2522 = vrot.slane %v2514, 2
  %v2523 = vrot.slane %v2515, 2
  %v2524 = vrot.slane %v2516, 2
  %v2525 = vrot.slane %v2517, 2
  %v2527 = vsel %vm264, %v2522, 0
  %v2530 = vsel %vm264, %v2523, 0
  %v2533 = vsel %vm264, %v2524, 0
  %v2536 = vsel %vm264, %v2525, 0
  %2538 = vmatprep.subr.bf16.mxu0 %v2530
  %2539 = vmatpush1.bf16.msra.mxu0 %v2527
  %2540 = vmatprep.subr.bf16.mxu0 0
  %2541 = vmatpush1.bf16.msra.mxu0 0
  %2542 = vmatprep.subr.bf16.mxu0 0
  %2543 = vmatpush1.bf16.msra.mxu0 0
  %2544 = vmatprep.subr.bf16.mxu0 0
  %2545 = vmatpush1.bf16.msra.mxu0 0
  %2546 = vmatprep.subr.bf16.mxu0 0
  %2547 = vmatpush1.bf16.msra.mxu0 0
  %2548 = vmatprep.subr.bf16.mxu0 0
  %2549 = vmatpush1.bf16.msra.mxu0 0
  %2550 = vmatprep.subr.bf16.mxu0 0
  %2551 = vmatpush1.bf16.msra.mxu0 0
  %2552 = vmatprep.subr.bf16.mxu0 0
  %2553 = vmatpush1.bf16.msra.mxu0 0
  %2554 = vmatprep.subr.bf16.mxu0 0
  %2555 = vmatpush1.bf16.msra.mxu0 0
  %2556 = vmatprep.subr.bf16.mxu0 0
  %2557 = vmatpush1.bf16.msra.mxu0 0
  %2558 = vmatprep.subr.bf16.mxu0 0
  %2559 = vmatpush1.bf16.msra.mxu0 0
  %2560 = vmatprep.subr.bf16.mxu0 0
  %2561 = vmatpush1.bf16.msra.mxu0 0
  %2562 = vmatprep.subr.bf16.mxu0 0
  %2563 = vmatpush1.bf16.msra.mxu0 0
  %2564 = vmatprep.subr.bf16.mxu0 0
  %2565 = vmatpush1.bf16.msra.mxu0 0
  %2566 = vmatprep.subr.bf16.mxu0 0
  %2567 = vmatpush1.bf16.msra.mxu0 0
  %2568 = vmatprep.subr.bf16.mxu0 0
  %2569 = vmatpush1.bf16.msra.mxu0 0
  %2570 = vmatprep.mubr.bf16.mxu0 0
  %2571 = vmatmul.mubr.bf16.gmra.mrb[0].mxu0 %v2246
  %v2572 = vpop.f32.mrb[0].mxu0
  %v2573 = vadd.f32 0.0, %v2572
  %v2574 = vpop.f32.mrb[0].mxu0
  %v2575 = vadd.f32 0.0, %v2574
  %v2576 = vpop.f32.mrb[0].mxu0
  %v2577 = vadd.f32 0.0, %v2576
  %v2578 = vpop.f32.mrb[0].mxu0
  %v2579 = vadd.f32 0.0, %v2578
  %2580 = vmatprep.mubr.bf16.mxu0 0
  %2581 = vmatmul.mubr.bf16.gmra.mrb[0].mxu0 %v2249
  %v2582 = vpop.f32.mrb[0].mxu0
  %v2583 = vadd.f32 0.0, %v2582
  %v2584 = vpop.f32.mrb[0].mxu0
  %v2585 = vadd.f32 0.0, %v2584
  %v2586 = vpop.f32.mrb[0].mxu0
  %v2587 = vadd.f32 0.0, %v2586
  %v2588 = vpop.f32.mrb[0].mxu0
  %v2589 = vadd.f32 0.0, %v2588
  %2590 = vmatprep.mubr.bf16.mxu0 0
  %2591 = vmatmul.mubr.bf16.gmra.mrb[0].mxu0 %v2252
  %v2592 = vpop.f32.mrb[0].mxu0
  %v2593 = vadd.f32 0.0, %v2592
  %v2594 = vpop.f32.mrb[0].mxu0
  %v2595 = vadd.f32 0.0, %v2594
  %v2596 = vpop.f32.mrb[0].mxu0
  %v2597 = vpop.f32.mrb[0].mxu0
  %2598 = vdwg.mxu0
  %2599 = vmatprep.subr.bf16.mxu0 %v2536
  %2600 = vmatpush1.bf16.msra.mxu0 %v2533
  %2601 = vmatprep.subr.bf16.mxu0 0
  %2602 = vmatpush1.bf16.msra.mxu0 0
  %2603 = vmatprep.subr.bf16.mxu0 0
  %2604 = vmatpush1.bf16.msra.mxu0 0
  %2605 = vmatprep.subr.bf16.mxu0 0
  %2606 = vmatpush1.bf16.msra.mxu0 0
  %2607 = vmatprep.subr.bf16.mxu0 0
  %2608 = vmatpush1.bf16.msra.mxu0 0
  %2609 = vmatprep.subr.bf16.mxu0 0
  %2610 = vmatpush1.bf16.msra.mxu0 0
  %2611 = vmatprep.subr.bf16.mxu0 0
  %2612 = vmatpush1.bf16.msra.mxu0 0
  %2613 = vmatprep.subr.bf16.mxu0 0
  %2614 = vmatpush1.bf16.msra.mxu0 0
  %2615 = vmatprep.subr.bf16.mxu0 0
  %2616 = vmatpush1.bf16.msra.mxu0 0
  %2617 = vmatprep.subr.bf16.mxu0 0
  %2618 = vmatpush1.bf16.msra.mxu0 0
  %2619 = vmatprep.subr.bf16.mxu0 0
  %2620 = vmatpush1.bf16.msra.mxu0 0
  %2621 = vmatprep.subr.bf16.mxu0 0
  %2622 = vmatpush1.bf16.msra.mxu0 0
  %2623 = vmatprep.subr.bf16.mxu0 0
  %2624 = vmatpush1.bf16.msra.mxu0 0
  %2625 = vmatprep.subr.bf16.mxu0 0
  %2626 = vmatpush1.bf16.msra.mxu0 0
  %2627 = vmatprep.subr.bf16.mxu0 0
  %2628 = vmatpush1.bf16.msra.mxu0 0
  %2629 = vmatprep.subr.bf16.mxu0 0
  %2630 = vmatpush1.bf16.msra.mxu0 0
  %2631 = vmatprep.mubr.bf16.mxu0 0
  %2632 = vmatmul.mubr.bf16.gmra.mrb[0].mxu0 %v2246
  %v2633 = vpop.f32.mrb[0].mxu0
  %v2634 = vadd.f32 0.0, %v2633
  %v2635 = vpop.f32.mrb[0].mxu0
  %v2636 = vadd.f32 0.0, %v2635
  %v2637 = vpop.f32.mrb[0].mxu0
  %v2638 = vadd.f32 0.0, %v2637
  %v2639 = vpop.f32.mrb[0].mxu0
  %v2640 = vadd.f32 0.0, %v2639
  %2641 = vmatprep.mubr.bf16.mxu0 0
  %2642 = vmatmul.mubr.bf16.gmra.mrb[0].mxu0 %v2249
  %v2643 = vpop.f32.mrb[0].mxu0
  %v2644 = vadd.f32 0.0, %v2643
  %v2645 = vpop.f32.mrb[0].mxu0
  %v2646 = vadd.f32 0.0, %v2645
  %v2647 = vpop.f32.mrb[0].mxu0
  %v2648 = vadd.f32 0.0, %v2647
  %v2649 = vpop.f32.mrb[0].mxu0
  %v2650 = vadd.f32 0.0, %v2649
  %2651 = vmatprep.mubr.bf16.mxu0 0
  %2652 = vmatmul.mubr.bf16.gmra.mrb[0].mxu0 %v2252
  %v2653 = vpop.f32.mrb[0].mxu0
  %v2654 = vadd.f32 0.0, %v2653
  %v2655 = vpop.f32.mrb[0].mxu0
  %v2656 = vadd.f32 0.0, %v2655
  %v2657 = vpop.f32.mrb[0].mxu0
  %v2658 = vpop.f32.mrb[0].mxu0
  %2659 = vdwg.mxu0
  %2660 = vst [vmem:[#allocation4] sm:$0xff] %v2573
  %2661 = vst [vmem:[#allocation4 + $0x8] sm:$0xff] %v2575
  %2662 = vst [vmem:[#allocation4 + $0x10] sm:$0xff] %v2634
  %2663 = vst [vmem:[#allocation4 + $0x18] sm:$0xff] %v2636
  %2664 = vst [vmem:[#allocation4 + $0x20] sm:$0xff] %v2577
  %2665 = vst [vmem:[#allocation4 + $0x28] sm:$0xff] %v2579
  %2666 = vst [vmem:[#allocation4 + $0x30] sm:$0xff] %v2638
  %2667 = vst [vmem:[#allocation4 + $0x38] sm:$0xff] %v2640
  %2668 = vst [vmem:[#allocation4 + $0x40] sm:$0xff] %v2583
  %2669 = vst [vmem:[#allocation4 + $0x48] sm:$0xff] %v2585
  %2670 = vst [vmem:[#allocation4 + $0x50] sm:$0xff] %v2644
  %2671 = vst [vmem:[#allocation4 + $0x58] sm:$0xff] %v2646
  %2672 = vst [vmem:[#allocation4 + $0x60] sm:$0xff] %v2587
  %2673 = vst [vmem:[#allocation4 + $0x68] sm:$0xff] %v2589
  %2674 = vst [vmem:[#allocation4 + $0x70] sm:$0xff] %v2648
  %2675 = vst [vmem:[#allocation4 + $0x78] sm:$0xff] %v2650
  %2676 = vst [vmem:[#allocation4 + $0x80] sm:$0xf] %v2593
  %2677 = vst [vmem:[#allocation4 + $0x88] sm:$0xf] %v2595
  %2678 = vst [vmem:[#allocation4 + $0x90] sm:$0xf] %v2654
  %2679 = vst [vmem:[#allocation4 + $0x98] sm:$0xf] %v2656
  %v2680 = vld [vmem:[#allocation4] sm:$0xf]
  %v2681 = vld [vmem:[#allocation4 + $0x8] sm:$0xf]
  %v2682 = vld [vmem:[#allocation4 + $0x10] sm:$0xf]
  %v2686 = vrot.slane %v2680, 4
  %v2687 = vrot.slane %v2681, 4
  %v2688 = vrot.slane %v2682, 4
  %2689 = vrot.lane.b32.xlu0 %v2686, 1
  %v2690 = vpop.permute.xlu0 %2689
  %2691 = vrot.lane.b32.xlu0 %v2687, 1
  %v2692 = vpop.permute.xlu0 %2691
  %2693 = vrot.lane.b32.xlu0 %v2688, 1
  %v2694 = vpop.permute.xlu0 %2693
  %v2695 = vsel %vm1015, %v2690, %v2692
  %v2696 = vsel %vm1015, %v2692, %v2694
  %v2699 = vadd.f32 %v2494, %v2695
  %v2700 = vadd.f32 %v2495, %v2696
  %v2701 = vld [vmem:[#allocation4 + $0x8] sm:$0xf0]
  %v2702 = vld [vmem:[#allocation4 + $0x10] sm:$0xf0]
  %v2705 = vrot.slane %v2701, 4
  %v2706 = vrot.slane %v2702, 4
  %v2709 = vadd.f32 %v2512, %v2705
  %v2710 = vadd.f32 %v2513, %v2706
  %v2711 = vld [vmem:[#allocation4 + $0x28] sm:$0xf]
  %v2712 = vld [vmem:[#allocation4 + $0x30] sm:$0xf]
  %v2715 = vrot.slane %v2711, 4
  %v2716 = vrot.slane %v2712, 4
  %v2719 = vadd.f32 %v2699, %v2715
  %v2720 = vadd.f32 %v2700, %v2716
  %v2721 = vld [vmem:[#allocation4 + $0x20] sm:$0xf0]
  %v2722 = vld [vmem:[#allocation4 + $0x28] sm:$0xf0]
  %v2723 = vld [vmem:[#allocation4 + $0x30] sm:$0xf0]
  %v2727 = vrot.slane %v2721, 4
  %v2728 = vrot.slane %v2722, 4
  %v2729 = vrot.slane %v2723, 4
  %2730 = vrot.lane.b32.xlu0 %v2727, 1
  %v2731 = vpop.permute.xlu0 %2730
  %2732 = vrot.lane.b32.xlu0 %v2728, 1
  %v2733 = vpop.permute.xlu0 %2732
  %2734 = vrot.lane.b32.xlu0 %v2729, 1
  %v2735 = vpop.permute.xlu0 %2734
  %v2736 = vsel %vm1015, %v2731, %v2733
  %v2737 = vsel %vm1015, %v2733, %v2735
  %v2740 = vadd.f32 %v2440, %v2736
  %v2741 = vadd.f32 %v2441, %v2737
  %v2742 = vld [vmem:[#allocation4 + $0x48] sm:$0xf]
  %v2743 = vld [vmem:[#allocation4 + $0x50] sm:$0xf]
  %v2746 = vrot.slane %v2742, 4
  %v2747 = vrot.slane %v2743, 4
  %v2750 = vadd.f32 %v2458, %v2746
  %v2751 = vadd.f32 %v2459, %v2747
  %v2752 = vld [vmem:[#allocation4 + $0x48] sm:$0xf0]
  %v2753 = vld [vmem:[#allocation4 + $0x50] sm:$0xf0]
  %v2756 = vrot.slane %v2752, 4
  %v2757 = vrot.slane %v2753, 4
  %v2760 = vadd.f32 %v2740, %v2756
  %v2761 = vadd.f32 %v2741, %v2757
  %v2762 = vld [vmem:[#allocation4 + $0x68] sm:$0xf]
  %v2763 = vld [vmem:[#allocation4 + $0x70] sm:$0xf]
  %v2764 = vld [vmem:[#allocation4 + $0x78] sm:$0xf]
  %v2768 = vrot.slane %v2762, 4
  %v2769 = vrot.slane %v2763, 4
  %v2770 = vrot.slane %v2764, 4
  %2771 = vrot.lane.b32.xlu0 %v2768, 119
  %v2772 = vpop.permute.xlu0 %2771
  %2773 = vrot.lane.b32.xlu0 %v2769, 119
  %v2774 = vpop.permute.xlu0 %2773
  %2775 = vrot.lane.b32.xlu0 %v2770, 119
  %v2776 = vpop.permute.xlu0 %2775
  %v2777 = vsel %vm1098, %v2772, %v2774
  %v2778 = vsel %vm1098, %v2774, %v2776
  %v2781 = vadd.f32 %v2719, %v2777
  %v2782 = vadd.f32 %v2720, %v2778
  %v2783 = vld [vmem:[#allocation4 + $0x68] sm:$0xf0]
  %v2784 = vld [vmem:[#allocation4 + $0x70] sm:$0xf0]
  %v2785 = vld [vmem:[#allocation4 + $0x78] sm:$0xf0]
  %v2789 = vrot.slane %v2783, 4
  %v2790 = vrot.slane %v2784, 4
  %v2791 = vrot.slane %v2785, 4
  %2792 = vrot.lane.b32.xlu0 %v2789, 118
  %v2793 = vpop.permute.xlu0 %2792
  %2794 = vrot.lane.b32.xlu0 %v2790, 118
  %v2795 = vpop.permute.xlu0 %2794
  %2796 = vrot.lane.b32.xlu0 %v2791, 118
  %v2797 = vpop.permute.xlu0 %2796
  %v2798 = vsel %vm640, %v2793, %v2795
  %v2799 = vsel %vm640, %v2795, %v2797
  %v2802 = vadd.f32 %v2709, %v2798
  %v2803 = vadd.f32 %v2710, %v2799
  %v2804 = vld [vmem:[#allocation4 + $0x88] sm:$0xf]
  %v2805 = vld [vmem:[#allocation4 + $0x90] sm:$0xf]
  %v2806 = vld [vmem:[#allocation4 + $0x98] sm:$0xf]
  %v2810 = vrot.slane %v2804, 4
  %v2811 = vrot.slane %v2805, 4
  %v2812 = vrot.slane %v2806, 4
  %2813 = vrot.lane.b32.xlu0 %v2810, 118
  %v2814 = vpop.permute.xlu0 %2813
  %2815 = vrot.lane.b32.xlu0 %v2811, 118
  %v2816 = vpop.permute.xlu0 %2815
  %2817 = vrot.lane.b32.xlu0 %v2812, 118
  %v2818 = vpop.permute.xlu0 %2817
  %v2819 = vsel %vm640, %v2814, %v2816
  %v2820 = vsel %vm640, %v2816, %v2818
  %v2823 = vadd.f32 %v2781, %v2819
  %v2824 = vadd.f32 %v2782, %v2820
  %v2825 = vld [vmem:[#allocation3] sm:$0x30]
  %v2826 = vld [vmem:[#allocation3 + $0x8] sm:$0x30]
  %v2827 = vld [vmem:[#allocation3 + $0x10] sm:$0x30]
  %v2828 = vld [vmem:[#allocation3 + $0x18] sm:$0x30]
  %v2833 = vrot.slane %v2825, 4
  %v2834 = vrot.slane %v2826, 4
  %v2835 = vrot.slane %v2827, 4
  %v2836 = vrot.slane %v2828, 4
  %v2838 = vsel %vm264, %v2833, 0
  %v2841 = vsel %vm264, %v2834, 0
  %v2844 = vsel %vm264, %v2835, 0
  %v2847 = vsel %vm264, %v2836, 0
  %2849 = vmatprep.subr.bf16.mxu0 %v2841
  %2850 = vmatpush1.bf16.msra.mxu0 %v2838
  %2851 = vmatprep.subr.bf16.mxu0 0
  %2852 = vmatpush1.bf16.msra.mxu0 0
  %2853 = vmatprep.subr.bf16.mxu0 0
  %2854 = vmatpush1.bf16.msra.mxu0 0
  %2855 = vmatprep.subr.bf16.mxu0 0
  %2856 = vmatpush1.bf16.msra.mxu0 0
  %2857 = vmatprep.subr.bf16.mxu0 0
  %2858 = vmatpush1.bf16.msra.mxu0 0
  %2859 = vmatprep.subr.bf16.mxu0 0
  %2860 = vmatpush1.bf16.msra.mxu0 0
  %2861 = vmatprep.subr.bf16.mxu0 0
  %2862 = vmatpush1.bf16.msra.mxu0 0
  %2863 = vmatprep.subr.bf16.mxu0 0
  %2864 = vmatpush1.bf16.msra.mxu0 0
  %2865 = vmatprep.subr.bf16.mxu0 0
  %2866 = vmatpush1.bf16.msra.mxu0 0
  %2867 = vmatprep.subr.bf16.mxu0 0
  %2868 = vmatpush1.bf16.msra.mxu0 0
  %2869 = vmatprep.subr.bf16.mxu0 0
  %2870 = vmatpush1.bf16.msra.mxu0 0
  %2871 = vmatprep.subr.bf16.mxu0 0
  %2872 = vmatpush1.bf16.msra.mxu0 0
  %2873 = vmatprep.subr.bf16.mxu0 0
  %2874 = vmatpush1.bf16.msra.mxu0 0
  %2875 = vmatprep.subr.bf16.mxu0 0
  %2876 = vmatpush1.bf16.msra.mxu0 0
  %2877 = vmatprep.subr.bf16.mxu0 0
  %2878 = vmatpush1.bf16.msra.mxu0 0
  %2879 = vmatprep.subr.bf16.mxu0 0
  %2880 = vmatpush1.bf16.msra.mxu0 0
  %2881 = vmatprep.mubr.bf16.mxu0 0
  %2882 = vmatmul.mubr.bf16.gmra.mrb[0].mxu0 %v2246
  %v2883 = vpop.f32.mrb[0].mxu0
  %v2884 = vadd.f32 0.0, %v2883
  %v2885 = vpop.f32.mrb[0].mxu0
  %v2886 = vadd.f32 0.0, %v2885
  %v2887 = vpop.f32.mrb[0].mxu0
  %v2888 = vadd.f32 0.0, %v2887
  %v2889 = vpop.f32.mrb[0].mxu0
  %v2890 = vadd.f32 0.0, %v2889
  %2891 = vmatprep.mubr.bf16.mxu0 0
  %2892 = vmatmul.mubr.bf16.gmra.mrb[0].mxu0 %v2249
  %v2893 = vpop.f32.mrb[0].mxu0
  %v2894 = vadd.f32 0.0, %v2893
  %v2895 = vpop.f32.mrb[0].mxu0
  %v2896 = vadd.f32 0.0, %v2895
  %v2897 = vpop.f32.mrb[0].mxu0
  %v2898 = vadd.f32 0.0, %v2897
  %v2899 = vpop.f32.mrb[0].mxu0
  %v2900 = vadd.f32 0.0, %v2899
  %2901 = vmatprep.mubr.bf16.mxu0 0
  %2902 = vmatmul.mubr.bf16.gmra.mrb[0].mxu0 %v2252
  %v2903 = vpop.f32.mrb[0].mxu0
  %v2904 = vadd.f32 0.0, %v2903
  %v2905 = vpop.f32.mrb[0].mxu0
  %v2906 = vadd.f32 0.0, %v2905
  %v2907 = vpop.f32.mrb[0].mxu0
  %v2908 = vpop.f32.mrb[0].mxu0
  %2909 = vdwg.mxu0
  %2910 = vmatprep.subr.bf16.mxu0 %v2847
  %2911 = vmatpush1.bf16.msra.mxu0 %v2844
  %2912 = vmatprep.subr.bf16.mxu0 0
  %2913 = vmatpush1.bf16.msra.mxu0 0
  %2914 = vmatprep.subr.bf16.mxu0 0
  %2915 = vmatpush1.bf16.msra.mxu0 0
  %2916 = vmatprep.subr.bf16.mxu0 0
  %2917 = vmatpush1.bf16.msra.mxu0 0
  %2918 = vmatprep.subr.bf16.mxu0 0
  %2919 = vmatpush1.bf16.msra.mxu0 0
  %2920 = vmatprep.subr.bf16.mxu0 0
  %2921 = vmatpush1.bf16.msra.mxu0 0
  %2922 = vmatprep.subr.bf16.mxu0 0
  %2923 = vmatpush1.bf16.msra.mxu0 0
  %2924 = vmatprep.subr.bf16.mxu0 0
  %2925 = vmatpush1.bf16.msra.mxu0 0
  %2926 = vmatprep.subr.bf16.mxu0 0
  %2927 = vmatpush1.bf16.msra.mxu0 0
  %2928 = vmatprep.subr.bf16.mxu0 0
  %2929 = vmatpush1.bf16.msra.mxu0 0
  %2930 = vmatprep.subr.bf16.mxu0 0
  %2931 = vmatpush1.bf16.msra.mxu0 0
  %2932 = vmatprep.subr.bf16.mxu0 0
  %2933 = vmatpush1.bf16.msra.mxu0 0
  %2934 = vmatprep.subr.bf16.mxu0 0
  %2935 = vmatpush1.bf16.msra.mxu0 0
  %2936 = vmatprep.subr.bf16.mxu0 0
  %2937 = vmatpush1.bf16.msra.mxu0 0
  %2938 = vmatprep.subr.bf16.mxu0 0
  %2939 = vmatpush1.bf16.msra.mxu0 0
  %2940 = vmatprep.subr.bf16.mxu0 0
  %2941 = vmatpush1.bf16.msra.mxu0 0
  %2942 = vmatprep.mubr.bf16.mxu0 0
  %2943 = vmatmul.mubr.bf16.gmra.mrb[0].mxu0 %v2246
  %v2944 = vpop.f32.mrb[0].mxu0
  %v2945 = vadd.f32 0.0, %v2944
  %v2946 = vpop.f32.mrb[0].mxu0
  %v2947 = vadd.f32 0.0, %v2946
  %v2948 = vpop.f32.mrb[0].mxu0
  %v2949 = vadd.f32 0.0, %v2948
  %v2950 = vpop.f32.mrb[0].mxu0
  %v2951 = vadd.f32 0.0, %v2950
  %2952 = vmatprep.mubr.bf16.mxu0 0
  %2953 = vmatmul.mubr.bf16.gmra.mrb[0].mxu0 %v2249
  %v2954 = vpop.f32.mrb[0].mxu0
  %v2955 = vadd.f32 0.0, %v2954
  %v2956 = vpop.f32.mrb[0].mxu0
  %v2957 = vadd.f32 0.0, %v2956
  %v2958 = vpop.f32.mrb[0].mxu0
  %v2959 = vadd.f32 0.0, %v2958
  %v2960 = vpop.f32.mrb[0].mxu0
  %v2961 = vadd.f32 0.0, %v2960
  %2962 = vmatprep.mubr.bf16.mxu0 0
  %2963 = vmatmul.mubr.bf16.gmra.mrb[0].mxu0 %v2252
  %v2964 = vpop.f32.mrb[0].mxu0
  %v2965 = vadd.f32 0.0, %v2964
  %v2966 = vpop.f32.mrb[0].mxu0
  %v2967 = vadd.f32 0.0, %v2966
  %v2968 = vpop.f32.mrb[0].mxu0
  %v2969 = vpop.f32.mrb[0].mxu0
  %2970 = vdwg.mxu0
  %2971 = vst [vmem:[#allocation4] sm:$0xff] %v2884
  %2972 = vst [vmem:[#allocation4 + $0x8] sm:$0xff] %v2886
  %2973 = vst [vmem:[#allocation4 + $0x10] sm:$0xff] %v2945
  %2974 = vst [vmem:[#allocation4 + $0x18] sm:$0xff] %v2947
  %2975 = vst [vmem:[#allocation4 + $0x20] sm:$0xff] %v2888
  %2976 = vst [vmem:[#allocation4 + $0x28] sm:$0xff] %v2890
  %2977 = vst [vmem:[#allocation4 + $0x30] sm:$0xff] %v2949
  %2978 = vst [vmem:[#allocation4 + $0x38] sm:$0xff] %v2951
  %2979 = vst [vmem:[#allocation4 + $0x40] sm:$0xff] %v2894
  %2980 = vst [vmem:[#allocation4 + $0x48] sm:$0xff] %v2896
  %2981 = vst [vmem:[#allocation4 + $0x50] sm:$0xff] %v2955
  %2982 = vst [vmem:[#allocation4 + $0x58] sm:$0xff] %v2957
  %2983 = vst [vmem:[#allocation4 + $0x60] sm:$0xff] %v2898
  %2984 = vst [vmem:[#allocation4 + $0x68] sm:$0xff] %v2900
  %2985 = vst [vmem:[#allocation4 + $0x70] sm:$0xff] %v2959
  %2986 = vst [vmem:[#allocation4 + $0x78] sm:$0xff] %v2961
  %2987 = vst [vmem:[#allocation4 + $0x80] sm:$0xf] %v2904
  %2988 = vst [vmem:[#allocation4 + $0x88] sm:$0xf] %v2906
  %2989 = vst [vmem:[#allocation4 + $0x90] sm:$0xf] %v2965
  %2990 = vst [vmem:[#allocation4 + $0x98] sm:$0xf] %v2967
  %v2991 = vld [vmem:[#allocation4] sm:$0xf]
  %v2992 = vld [vmem:[#allocation4 + $0x8] sm:$0xf]
  %v2993 = vld [vmem:[#allocation4 + $0x10] sm:$0xf]
  %v2997 = vrot.slane %v2991, 4
  %v2998 = vrot.slane %v2992, 4
  %v2999 = vrot.slane %v2993, 4
  %3000 = vrot.lane.b32.xlu0 %v2997, 10
  %v3001 = vpop.permute.xlu0 %3000
  %3002 = vrot.lane.b32.xlu0 %v2998, 10
  %v3003 = vpop.permute.xlu0 %3002
  %3004 = vrot.lane.b32.xlu0 %v2999, 10
  %v3005 = vpop.permute.xlu0 %3004
  %v3006 = vsel %vm1474, %v3001, %v3003
  %v3007 = vsel %vm1474, %v3003, %v3005
  %v3010 = vadd.f32 %v2750, %v3006
  %v3011 = vadd.f32 %v2751, %v3007
  %v3012 = vld [vmem:[#allocation4] sm:$0xf0]
  %v3013 = vld [vmem:[#allocation4 + $0x8] sm:$0xf0]
  %v3014 = vld [vmem:[#allocation4 + $0x10] sm:$0xf0]
  %v3018 = vrot.slane %v3012, 4
  %v3019 = vrot.slane %v3013, 4
  %v3020 = vrot.slane %v3014, 4
  %3021 = vrot.lane.b32.xlu0 %v3018, 10
  %v3022 = vpop.permute.xlu0 %3021
  %3023 = vrot.lane.b32.xlu0 %v3019, 10
  %v3024 = vpop.permute.xlu0 %3023
  %3025 = vrot.lane.b32.xlu0 %v3020, 10
  %v3026 = vpop.permute.xlu0 %3025
  %v3027 = vsel %vm1474, %v3022, %v3024
  %v3028 = vsel %vm1474, %v3024, %v3026
  %v3031 = vadd.f32 %v2760, %v3027
  %v3032 = vadd.f32 %v2761, %v3028
  %v3033 = vld [vmem:[#allocation4 + $0x20] sm:$0xf]
  %v3034 = vld [vmem:[#allocation4 + $0x28] sm:$0xf]
  %v3035 = vld [vmem:[#allocation4 + $0x30] sm:$0xf]
  %v3039 = vrot.slane %v3033, 4
  %v3040 = vrot.slane %v3034, 4
  %v3041 = vrot.slane %v3035, 4
  %3042 = vrot.lane.b32.xlu0 %v3039, 9
  %v3043 = vpop.permute.xlu0 %3042
  %3044 = vrot.lane.b32.xlu0 %v3040, 9
  %v3045 = vpop.permute.xlu0 %3044
  %3046 = vrot.lane.b32.xlu0 %v3041, 9
  %v3047 = vpop.permute.xlu0 %3046
  %v3048 = vsel %vm1517, %v3043, %v3045
  %v3049 = vsel %vm1517, %v3045, %v3047
  %v3052 = vadd.f32 %v3010, %v3048
  %v3053 = vadd.f32 %v3011, %v3049
  %v3054 = vld [vmem:[#allocation4 + $0x28] sm:$0xf0]
  %v3055 = vld [vmem:[#allocation4 + $0x30] sm:$0xf0]
  %v3058 = vrot.slane %v3054, 4
  %v3059 = vrot.slane %v3055, 4
  %v3062 = vadd.f32 %v2802, %v3058
  %v3063 = vadd.f32 %v2803, %v3059
  %v3064 = vld [vmem:[#allocation4 + $0x48] sm:$0xf]
  %v3065 = vld [vmem:[#allocation4 + $0x50] sm:$0xf]
  %v3068 = vrot.slane %v3064, 4
  %v3069 = vrot.slane %v3065, 4
  %v3072 = vadd.f32 %v2823, %v3068
  %v3073 = vadd.f32 %v2824, %v3069
  %v3074 = vld [vmem:[#allocation4 + $0x48] sm:$0xf0]
  %v3075 = vld [vmem:[#allocation4 + $0x50] sm:$0xf0]
  %v3076 = vld [vmem:[#allocation4 + $0x58] sm:$0xf0]
  %v3080 = vrot.slane %v3074, 4
  %v3081 = vrot.slane %v3075, 4
  %v3082 = vrot.slane %v3076, 4
  %3083 = vrot.lane.b32.xlu0 %v3080, 127
  %v3084 = vpop.permute.xlu0 %3083
  %3085 = vrot.lane.b32.xlu0 %v3081, 127
  %v3086 = vpop.permute.xlu0 %3085
  %3087 = vrot.lane.b32.xlu0 %v3082, 127
  %v3088 = vpop.permute.xlu0 %3087
  %v3089 = vsel %vm595, %v3084, %v3086
  %v3090 = vsel %vm595, %v3086, %v3088
  %v3093 = vadd.f32 %v3062, %v3089
  %v3094 = vadd.f32 %v3063, %v3090
  %v3095 = vld [vmem:[#allocation4 + $0x68] sm:$0xf]
  %v3096 = vld [vmem:[#allocation4 + $0x70] sm:$0xf]
  %v3099 = vrot.slane %v3095, 4
  %v3100 = vrot.slane %v3096, 4
  %v3103 = vadd.f32 %v3052, %v3099
  %v3104 = vadd.f32 %v3053, %v3100
  %v3105 = vld [vmem:[#allocation4 + $0x68] sm:$0xf0]
  %v3106 = vld [vmem:[#allocation4 + $0x70] sm:$0xf0]
  %v3109 = vrot.slane %v3105, 4
  %v3110 = vrot.slane %v3106, 4
  %v3113 = vadd.f32 %v3031, %v3109
  %v3114 = vadd.f32 %v3032, %v3110
  %v3115 = vld [vmem:[#allocation4 + $0x88] sm:$0xf]
  %v3116 = vld [vmem:[#allocation4 + $0x90] sm:$0xf]
  %v3117 = vld [vmem:[#allocation4 + $0x98] sm:$0xf]
  %v3121 = vrot.slane %v3115, 4
  %v3122 = vrot.slane %v3116, 4
  %v3123 = vrot.slane %v3117, 4
  %3124 = vrot.lane.b32.xlu0 %v3121, 127
  %v3125 = vpop.permute.xlu0 %3124
  %3126 = vrot.lane.b32.xlu0 %v3122, 127
  %v3127 = vpop.permute.xlu0 %3126
  %3128 = vrot.lane.b32.xlu0 %v3123, 127
  %v3129 = vpop.permute.xlu0 %3128
  %v3130 = vsel %vm595, %v3125, %v3127
  %v3131 = vsel %vm595, %v3127, %v3129
  %v3134 = vadd.f32 %v3103, %v3130
  %v3135 = vadd.f32 %v3104, %v3131
  %v3136 = vld [vmem:[#allocation3] sm:$0xc0]
  %v3137 = vld [vmem:[#allocation3 + $0x8] sm:$0xc0]
  %v3138 = vld [vmem:[#allocation3 + $0x10] sm:$0xc0]
  %v3139 = vld [vmem:[#allocation3 + $0x18] sm:$0xc0]
  %v3144 = vrot.slane %v3136, 6
  %v3145 = vrot.slane %v3137, 6
  %v3146 = vrot.slane %v3138, 6
  %v3147 = vrot.slane %v3139, 6
  %v3149 = vsel %vm264, %v3144, 0
  %v3152 = vsel %vm264, %v3145, 0
  %v3155 = vsel %vm264, %v3146, 0
  %v3158 = vsel %vm264, %v3147, 0
  %3160 = vmatprep.subr.bf16.mxu0 %v3152
  %3161 = vmatpush1.bf16.msra.mxu0 %v3149
  %3162 = vmatprep.subr.bf16.mxu0 0
  %3163 = vmatpush1.bf16.msra.mxu0 0
  %3164 = vmatprep.subr.bf16.mxu0 0
  %3165 = vmatpush1.bf16.msra.mxu0 0
  %3166 = vmatprep.subr.bf16.mxu0 0
  %3167 = vmatpush1.bf16.msra.mxu0 0
  %3168 = vmatprep.subr.bf16.mxu0 0
  %3169 = vmatpush1.bf16.msra.mxu0 0
  %3170 = vmatprep.subr.bf16.mxu0 0
  %3171 = vmatpush1.bf16.msra.mxu0 0
  %3172 = vmatprep.subr.bf16.mxu0 0
  %3173 = vmatpush1.bf16.msra.mxu0 0
  %3174 = vmatprep.subr.bf16.mxu0 0
  %3175 = vmatpush1.bf16.msra.mxu0 0
  %3176 = vmatprep.subr.bf16.mxu0 0
  %3177 = vmatpush1.bf16.msra.mxu0 0
  %3178 = vmatprep.subr.bf16.mxu0 0
  %3179 = vmatpush1.bf16.msra.mxu0 0
  %3180 = vmatprep.subr.bf16.mxu0 0
  %3181 = vmatpush1.bf16.msra.mxu0 0
  %3182 = vmatprep.subr.bf16.mxu0 0
  %3183 = vmatpush1.bf16.msra.mxu0 0
  %3184 = vmatprep.subr.bf16.mxu0 0
  %3185 = vmatpush1.bf16.msra.mxu0 0
  %3186 = vmatprep.subr.bf16.mxu0 0
  %3187 = vmatpush1.bf16.msra.mxu0 0
  %3188 = vmatprep.subr.bf16.mxu0 0
  %3189 = vmatpush1.bf16.msra.mxu0 0
  %3190 = vmatprep.subr.bf16.mxu0 0
  %3191 = vmatpush1.bf16.msra.mxu0 0
  %3192 = vmatprep.mubr.bf16.mxu0 0
  %3193 = vmatmul.mubr.bf16.gmra.mrb[0].mxu0 %v2246
  %v3194 = vpop.f32.mrb[0].mxu0
  %v3195 = vadd.f32 0.0, %v3194
  %v3196 = vpop.f32.mrb[0].mxu0
  %v3197 = vadd.f32 0.0, %v3196
  %v3198 = vpop.f32.mrb[0].mxu0
  %v3199 = vadd.f32 0.0, %v3198
  %v3200 = vpop.f32.mrb[0].mxu0
  %v3201 = vadd.f32 0.0, %v3200
  %3202 = vmatprep.mubr.bf16.mxu0 0
  %3203 = vmatmul.mubr.bf16.gmra.mrb[0].mxu0 %v2249
  %v3204 = vpop.f32.mrb[0].mxu0
  %v3205 = vadd.f32 0.0, %v3204
  %v3206 = vpop.f32.mrb[0].mxu0
  %v3207 = vadd.f32 0.0, %v3206
  %v3208 = vpop.f32.mrb[0].mxu0
  %v3209 = vadd.f32 0.0, %v3208
  %v3210 = vpop.f32.mrb[0].mxu0
  %v3211 = vadd.f32 0.0, %v3210
  %3212 = vmatprep.mubr.bf16.mxu0 0
  %3213 = vmatmul.mubr.bf16.gmra.mrb[0].mxu0 %v2252
  %v3214 = vpop.f32.mrb[0].mxu0
  %v3215 = vadd.f32 0.0, %v3214
  %v3216 = vpop.f32.mrb[0].mxu0
  %v3217 = vadd.f32 0.0, %v3216
  %v3218 = vpop.f32.mrb[0].mxu0
  %v3219 = vpop.f32.mrb[0].mxu0
  %3220 = vdwg.mxu0
  %3221 = vmatprep.subr.bf16.mxu0 %v3158
  %3222 = vmatpush1.bf16.msra.mxu0 %v3155
  %3223 = vmatprep.subr.bf16.mxu0 0
  %3224 = vmatpush1.bf16.msra.mxu0 0
  %3225 = vmatprep.subr.bf16.mxu0 0
  %3226 = vmatpush1.bf16.msra.mxu0 0
  %3227 = vmatprep.subr.bf16.mxu0 0
  %3228 = vmatpush1.bf16.msra.mxu0 0
  %3229 = vmatprep.subr.bf16.mxu0 0
  %3230 = vmatpush1.bf16.msra.mxu0 0
  %3231 = vmatprep.subr.bf16.mxu0 0
  %3232 = vmatpush1.bf16.msra.mxu0 0
  %3233 = vmatprep.subr.bf16.mxu0 0
  %3234 = vmatpush1.bf16.msra.mxu0 0
  %3235 = vmatprep.subr.bf16.mxu0 0
  %3236 = vmatpush1.bf16.msra.mxu0 0
  %3237 = vmatprep.subr.bf16.mxu0 0
  %3238 = vmatpush1.bf16.msra.mxu0 0
  %3239 = vmatprep.subr.bf16.mxu0 0
  %3240 = vmatpush1.bf16.msra.mxu0 0
  %3241 = vmatprep.subr.bf16.mxu0 0
  %3242 = vmatpush1.bf16.msra.mxu0 0
  %3243 = vmatprep.subr.bf16.mxu0 0
  %3244 = vmatpush1.bf16.msra.mxu0 0
  %3245 = vmatprep.subr.bf16.mxu0 0
  %3246 = vmatpush1.bf16.msra.mxu0 0
  %3247 = vmatprep.subr.bf16.mxu0 0
  %3248 = vmatpush1.bf16.msra.mxu0 0
  %3249 = vmatprep.subr.bf16.mxu0 0
  %3250 = vmatpush1.bf16.msra.mxu0 0
  %3251 = vmatprep.subr.bf16.mxu0 0
  %3252 = vmatpush1.bf16.msra.mxu0 0
  %3253 = vmatprep.mubr.bf16.mxu0 0
  %3254 = vmatmul.mubr.bf16.gmra.mrb[0].mxu0 %v2246
  %v3255 = vpop.f32.mrb[0].mxu0
  %v3256 = vadd.f32 0.0, %v3255
  %v3257 = vpop.f32.mrb[0].mxu0
  %v3258 = vadd.f32 0.0, %v3257
  %v3259 = vpop.f32.mrb[0].mxu0
  %v3260 = vadd.f32 0.0, %v3259
  %v3261 = vpop.f32.mrb[0].mxu0
  %v3262 = vadd.f32 0.0, %v3261
  %3263 = vmatprep.mubr.bf16.mxu0 0
  %3264 = vmatmul.mubr.bf16.gmra.mrb[0].mxu0 %v2249
  %v3265 = vpop.f32.mrb[0].mxu0
  %v3266 = vadd.f32 0.0, %v3265
  %v3267 = vpop.f32.mrb[0].mxu0
  %v3268 = vadd.f32 0.0, %v3267
  %v3269 = vpop.f32.mrb[0].mxu0
  %v3270 = vadd.f32 0.0, %v3269
  %v3271 = vpop.f32.mrb[0].mxu0
  %v3272 = vadd.f32 0.0, %v3271
  %3273 = vmatprep.mubr.bf16.mxu0 0
  %3274 = vmatmul.mubr.bf16.gmra.mrb[0].mxu0 %v2252
  %v3275 = vpop.f32.mrb[0].mxu0
  %v3276 = vadd.f32 0.0, %v3275
  %v3277 = vpop.f32.mrb[0].mxu0
  %v3278 = vadd.f32 0.0, %v3277
  %v3279 = vpop.f32.mrb[0].mxu0
  %v3280 = vpop.f32.mrb[0].mxu0
  %3281 = vdwg.mxu0
  %3282 = vst [vmem:[#allocation4] sm:$0xff] %v3195
  %3283 = vst [vmem:[#allocation4 + $0x8] sm:$0xff] %v3197
  %3284 = vst [vmem:[#allocation4 + $0x10] sm:$0xff] %v3256
  %3285 = vst [vmem:[#allocation4 + $0x18] sm:$0xff] %v3258
  %3286 = vst [vmem:[#allocation4 + $0x20] sm:$0xff] %v3199
  %3287 = vst [vmem:[#allocation4 + $0x28] sm:$0xff] %v3201
  %3288 = vst [vmem:[#allocation4 + $0x30] sm:$0xff] %v3260
  %3289 = vst [vmem:[#allocation4 + $0x38] sm:$0xff] %v3262
  %3290 = vst [vmem:[#allocation4 + $0x40] sm:$0xff] %v3205
  %3291 = vst [vmem:[#allocation4 + $0x48] sm:$0xff] %v3207
  %3292 = vst [vmem:[#allocation4 + $0x50] sm:$0xff] %v3266
  %3293 = vst [vmem:[#allocation4 + $0x58] sm:$0xff] %v3268
  %3294 = vst [vmem:[#allocation4 + $0x60] sm:$0xff] %v3209
  %3295 = vst [vmem:[#allocation4 + $0x68] sm:$0xff] %v3211
  %3296 = vst [vmem:[#allocation4 + $0x70] sm:$0xff] %v3270
  %3297 = vst [vmem:[#allocation4 + $0x78] sm:$0xff] %v3272
  %3298 = vst [vmem:[#allocation4 + $0x80] sm:$0xf] %v3215
  %3299 = vst [vmem:[#allocation4 + $0x88] sm:$0xf] %v3217
  %3300 = vst [vmem:[#allocation4 + $0x90] sm:$0xf] %v3276
  %3301 = vst [vmem:[#allocation4 + $0x98] sm:$0xf] %v3278
  %v3302 = vld [vmem:[#allocation4] sm:$0xf]
  %v3303 = vld [vmem:[#allocation4 + $0x8] sm:$0xf]
  %v3304 = vld [vmem:[#allocation4 + $0x10] sm:$0xf]
  %3308 = vrot.lane.b32.xlu0 %v3302, 11
  %v3309 = vpop.permute.xlu0 %3308
  %3310 = vrot.lane.b32.xlu0 %v3303, 11
  %v3311 = vpop.permute.xlu0 %3310
  %3312 = vrot.lane.b32.xlu0 %v3304, 11
  %v3313 = vpop.permute.xlu0 %3312
  %v3314 = vsel %vm1934, %v3309, %v3311
  %v3315 = vsel %vm1934, %v3311, %v3313
  %v3318 = vadd.f32 %v3113, %v3314
  %v3319 = vadd.f32 %v3114, %v3315
  %v3320 = vld [vmem:[#allocation4] sm:$0xf0]
  %v3321 = vld [vmem:[#allocation4 + $0x8] sm:$0xf0]
  %v3322 = vld [vmem:[#allocation4 + $0x10] sm:$0xf0]
  %3326 = vrot.lane.b32.xlu0 %v3320, 10
  %v3327 = vpop.permute.xlu0 %3326
  %3328 = vrot.lane.b32.xlu0 %v3321, 10
  %v3329 = vpop.permute.xlu0 %3328
  %3330 = vrot.lane.b32.xlu0 %v3322, 10
  %v3331 = vpop.permute.xlu0 %3330
  %v3332 = vsel %vm1474, %v3327, %v3329
  %v3333 = vsel %vm1474, %v3329, %v3331
  %v3336 = vadd.f32 %v3134, %v3332
  %v3337 = vadd.f32 %v3135, %v3333
  %v3338 = vld [vmem:[#allocation4 + $0x20] sm:$0xf]
  %v3339 = vld [vmem:[#allocation4 + $0x28] sm:$0xf]
  %v3340 = vld [vmem:[#allocation4 + $0x30] sm:$0xf]
  %3344 = vrot.lane.b32.xlu0 %v3338, 10
  %v3345 = vpop.permute.xlu0 %3344
  %3346 = vrot.lane.b32.xlu0 %v3339, 10
  %v3347 = vpop.permute.xlu0 %3346
  %3348 = vrot.lane.b32.xlu0 %v3340, 10
  %v3349 = vpop.permute.xlu0 %3348
  %v3350 = vsel %vm1474, %v3345, %v3347
  %v3351 = vsel %vm1474, %v3347, %v3349
  %v3354 = vadd.f32 %v3318, %v3350
  %v3355 = vadd.f32 %v3319, %v3351
  %v3356 = vld [vmem:[#allocation4 + $0x20] sm:$0xf0]
  %v3357 = vld [vmem:[#allocation4 + $0x28] sm:$0xf0]
  %v3358 = vld [vmem:[#allocation4 + $0x30] sm:$0xf0]
  %3362 = vrot.lane.b32.xlu0 %v3356, 1
  %v3363 = vpop.permute.xlu0 %3362
  %3364 = vrot.lane.b32.xlu0 %v3357, 1
  %v3365 = vpop.permute.xlu0 %3364
  %3366 = vrot.lane.b32.xlu0 %v3358, 1
  %v3367 = vpop.permute.xlu0 %3366
  %v3368 = vsel %vm1015, %v3363, %v3365
  %v3369 = vsel %vm1015, %v3365, %v3367
  %v3372 = vadd.f32 %v3072, %v3368
  %v3373 = vadd.f32 %v3073, %v3369
  %v3374 = vld [vmem:[#allocation4 + $0x48] sm:$0xf]
  %v3375 = vld [vmem:[#allocation4 + $0x50] sm:$0xf]
  %v3376 = vadd.f32 %v3093, %v3374
  %v3377 = vadd.f32 %v3094, %v3375
  %v3378 = vld [vmem:[#allocation4 + $0x48] sm:$0xf0]
  %v3379 = vld [vmem:[#allocation4 + $0x50] sm:$0xf0]
  %v3380 = vadd.f32 %v3372, %v3378
  %v3381 = vadd.f32 %v3373, %v3379
  %v3382 = vld [vmem:[#allocation4 + $0x60] sm:$0xf]
  %v3383 = vld [vmem:[#allocation4 + $0x68] sm:$0xf]
  %v3384 = vld [vmem:[#allocation4 + $0x70] sm:$0xf]
  %3388 = vrot.lane.b32.xlu0 %v3382, 1
  %v3389 = vpop.permute.xlu0 %3388
  %3390 = vrot.lane.b32.xlu0 %v3383, 1
  %v3391 = vpop.permute.xlu0 %3390
  %3392 = vrot.lane.b32.xlu0 %v3384, 1
  %v3393 = vpop.permute.xlu0 %3392
  %v3394 = vsel %vm1015, %v3389, %v3391
  %v3395 = vsel %vm1015, %v3391, %v3393
  %v3398 = vadd.f32 %v3354, %v3394
  %v3399 = vadd.f32 %v3355, %v3395
  %v3400 = vld [vmem:[#allocation4 + $0x68] sm:$0xf0]
  %v3401 = vld [vmem:[#allocation4 + $0x70] sm:$0xf0]
  %v3402 = vadd.f32 %v3336, %v3400
  %v3403 = vadd.f32 %v3337, %v3401
  %v3404 = vld [vmem:[#allocation4 + $0x88] sm:$0xf]
  %v3405 = vld [vmem:[#allocation4 + $0x90] sm:$0xf]
  %v3406 = vadd.f32 %v3398, %v3404
  %v3407 = vadd.f32 %v3399, %v3405
  %v3408 = vmul.f32 %v3406, %v2033
  %v3409 = vmul.f32 %v3407, %v2037
  %v3410 = vsel %vm108, %v3408, 0.0
  %v3411 = vsel %vm108, %v3409, 0.0
  %v3412 = vadd.f32 %v3410, %v3411
  %3413 = vadd.xlane.f32.xlu0 %v3412
  %v3414 = vpop.xlane.xlu0 %3413
  %v3415 = vadd.f32 %v3414, 0.0
  %v3416 = vmul.f32 %v3402, %v2033
  %v3417 = vmul.f32 %v3403, %v2037
  %v3418 = vsel %vm2050, %v3416, 0.0
  %v3419 = vsel %vm2050, %v3417, 0.0
  %v3420 = vadd.f32 %v3418, %v3419
  %3421 = vadd.xlane.f32.xlu0 %v3420
  %v3422 = vpop.xlane.xlu0 %3421
  %v3424 = vrot.slane %v3422, 4
  %v3426 = vadd.f32 %v3415, %v3424
  %v3427 = vmul.f32 %v3380, %v2033
  %v3428 = vmul.f32 %v3381, %v2037
  %v3429 = vsel %vm2050, %v3427, 0.0
  %v3430 = vsel %vm2050, %v3428, 0.0
  %v3431 = vadd.f32 %v3429, %v3430
  %3432 = vadd.xlane.f32.xlu0 %v3431
  %v3433 = vpop.xlane.xlu0 %3432
  %v3435 = vrot.slane %v3433, 4
  %v3437 = vadd.f32 %v3426, %v3435
  %v3438 = vmul.f32 %v3376, %v2033
  %v3439 = vmul.f32 %v3377, %v2037
  %v3440 = vsel %vm108, %v3438, 0.0
  %v3441 = vsel %vm108, %v3439, 0.0
  %v3442 = vadd.f32 %v3440, %v3441
  %3443 = vadd.xlane.f32.xlu0 %v3442
  %v3444 = vpop.xlane.xlu0 %3443
  %v3445 = vadd.f32 %v3437, %v3444
  %v3446 = vmul.f32 %v3445, 0.001953125
  %3448 = vset.pattern.permute.xlu0 0
  %3449 = vperm.xlu0 %3448, %v3446
  %v3450 = vpop.permute.xlu0 %3449
  %v3452 = vsub.f32 %v3406, %v3450
  %v3453 = vsub.f32 %v3407, %v3450
  %v3454 = vmul.f32 %v3452, %v2033
  %v3455 = vmul.f32 %v3453, %v2037
  %v3456 = vrot.slane %v3450, 4
  %v3458 = vsub.f32 %v3402, %v3456
  %v3459 = vsub.f32 %v3403, %v3456
  %v3460 = vmul.f32 %v3458, %v2033
  %v3461 = vmul.f32 %v3459, %v2037
  %v3462 = vsub.f32 %v3380, %v3456
  %v3463 = vsub.f32 %v3381, %v3456
  %v3464 = vmul.f32 %v3462, %v2033
  %v3465 = vmul.f32 %v3463, %v2037
  %v3466 = vsub.f32 %v3376, %v3450
  %v3467 = vsub.f32 %v3377, %v3450
  %v3468 = vmul.f32 %v3466, %v2033
  %v3469 = vmul.f32 %v3467, %v2037
  %v3470 = vmul.f32 %v3454, %v3454
  %v3471 = vmul.f32 %v3455, %v3455
  %v3472 = vsel %vm108, %v3470, 0.0
  %v3473 = vsel %vm108, %v3471, 0.0
  %v3474 = vadd.f32 %v3472, %v3473
  %3475 = vadd.xlane.f32.xlu0 %v3474
  %v3476 = vpop.xlane.xlu0 %3475
  %v3477 = vadd.f32 %v3476, 0.0
  %v3478 = vmul.f32 %v3460, %v3460
  %v3479 = vmul.f32 %v3461, %v3461
  %v3480 = vsel %vm2050, %v3478, 0.0
  %v3481 = vsel %vm2050, %v3479, 0.0
  %v3482 = vadd.f32 %v3480, %v3481
  %3483 = vadd.xlane.f32.xlu0 %v3482
  %v3484 = vpop.xlane.xlu0 %3483
  %v3486 = vrot.slane %v3484, 4
  %v3488 = vadd.f32 %v3477, %v3486
  %v3489 = vmul.f32 %v3464, %v3464
  %v3490 = vmul.f32 %v3465, %v3465
  %v3491 = vsel %vm2050, %v3489, 0.0
  %v3492 = vsel %vm2050, %v3490, 0.0
  %v3493 = vadd.f32 %v3491, %v3492
  %3494 = vadd.xlane.f32.xlu0 %v3493
  %v3495 = vpop.xlane.xlu0 %3494
  %v3497 = vrot.slane %v3495, 4
  %v3499 = vadd.f32 %v3488, %v3497
  %v3500 = vmul.f32 %v3468, %v3468
  %v3501 = vmul.f32 %v3469, %v3469
  %v3502 = vsel %vm108, %v3500, 0.0
  %v3503 = vsel %vm108, %v3501, 0.0
  %v3504 = vadd.f32 %v3502, %v3503
  %3505 = vadd.xlane.f32.xlu0 %v3504
  %v3506 = vpop.xlane.xlu0 %3505
  %v3507 = vadd.f32 %v3499, %v3506
  %v3508 = vmul.f32 %v3507, 0.001953125
  %v3509 = vld [vmem:[%s9] sm:$0xf]
  %v3510 = vadd.f32 %v3508, 1e-05
  %v3511 = vrsqrt.pop %v3510
  %v3512 = vmul.f32 %v3509, %v3511
  %v3513 = vld [vmem:[%s10] sm:$0xf]
  %3515 = vset.pattern.permute.xlu0 0
  %3516 = vperm.xlu0 %3515, %v3513
  %v3517 = vpop.permute.xlu0 %3516
  %v3519 = vmul.f32 %v3517, %v2033
  %v3520 = vmul.f32 %v3517, %v2037
  %3522 = vset.pattern.permute.xlu0 0
  %3523 = vperm.xlu0 %3522, %v3512
  %v3524 = vpop.permute.xlu0 %3523
  %v3526 = vmul.f32 %v3454, %v3524
  %v3527 = vmul.f32 %v3455, %v3524
  %v3528 = vadd.f32 %v3526, %v3519
  %v3529 = vadd.f32 %v3527, %v3520
  %v3530 = vmax.f32 %v3528, 0.0
  %v3531 = vmax.f32 %v3529, 0.0
  %v3532 = vrot.slane %v3524, 4
  %v3534 = vmul.f32 %v3460, %v3532
  %v3535 = vmul.f32 %v3461, %v3532
  %v3538 = vrot.slane %v3519, 4
  %v3539 = vrot.slane %v3520, 4
  %v3542 = vadd.f32 %v3534, %v3538
  %v3543 = vadd.f32 %v3535, %v3539
  %v3544 = vmax.f32 %v3542, 0.0
  %v3545 = vmax.f32 %v3543, 0.0
  %v3546 = vmul.f32 %v3464, %v3532
  %v3547 = vmul.f32 %v3465, %v3532
  %v3548 = vadd.f32 %v3546, %v3538
  %v3549 = vadd.f32 %v3547, %v3539
  %v3550 = vmax.f32 %v3548, 0.0
  %v3551 = vmax.f32 %v3549, 0.0
  %v3552 = vmul.f32 %v3468, %v3524
  %v3553 = vmul.f32 %v3469, %v3524
  %v3554 = vadd.f32 %v3552, %v3519
  %v3555 = vadd.f32 %v3553, %v3520
  %v3556 = vmax.f32 %v3554, 0.0
  %v3557 = vmax.f32 %v3555, 0.0
  %3558 = vst [vmem:[%s12] sm:$0xf] %v3530
  %3559 = vst [vmem:[%s12 + $0x8] sm:$0xf] %v3531
  %3560 = vst [vmem:[%s12] sm:$0xf0] %v3544
  %3561 = vst [vmem:[%s12 + $0x8] sm:$0xf0] %v3545
  %v3564 = vrot.slane %v3550, 4
  %v3565 = vrot.slane %v3551, 4
  %3568 = vst [vmem:[%s12 + $0x10] sm:$0xf] %v3564
  %3569 = vst [vmem:[%s12 + $0x18] sm:$0xf] %v3565
  %v3572 = vrot.slane %v3556, 4
  %v3573 = vrot.slane %v3557, 4
  %3576 = vst [vmem:[%s12 + $0x10] sm:$0xf0] %v3572
  %3577 = vst [vmem:[%s12 + $0x18] sm:$0xf0] %v3573
  // Predicated region
  $region50: #{deconv_block_forward.1} parent=0 // pred_check
    _
  $region51: #{deconv_block_forward.1} parent=0 // pred_check_branch
    %3579 = sbr.rel (0) target = $region53
  $region52: #{deconv_block_forward.1} parent=0 // pred_region
    _
  $region53: #{deconv_block_forward.1} parent=0 // pred_fallthru
    _
  // Predicated region
  $region54: #{deconv_block_forward.1} parent=0 // pred_check
    _
  $region55: #{deconv_block_forward.1} parent=0 // pred_check_branch
    %3581 = sbr.rel (0) target = $region57
  $region56: #{deconv_block_forward.1} parent=0 // pred_region
    _
  $region57: #{deconv_block_forward.1} parent=0 // pred_fallthru
    _

</llo_original>
